<compile_context>
chip_gen: v6e
topology: v6e:2x2x1
jax: 0.10.0
libtpu: 0.0.40
codegen_flags: <defaults>
</compile_context>

<pallas_src>
import functools
import numpy as np

import jax
import jax.numpy as jnp
from jax.experimental import pallas as pl
from jax.experimental.pallas import tpu as pltpu


# ----------------------------------------------------------------------------
# Pallas kernel: one grid step = `tb` batch elements, flattened to tb*S rows.
# ----------------------------------------------------------------------------
def _ri_kernel(sent_ref, mt_ref, dp_ref, pool_ref,
               mlp_w_ref, mlp_b_ref,
               w1s_ref, w1m_ref, b1_ref, w2_ref,
               mlp2_w_ref, mlp2_b_ref,
               dws_ref, dwp_ref, db_ref,
               out_ref, *, tb, seq, mt_len, dep_dim, act_dtype):
    f32, bf16 = jnp.float32, jnp.bfloat16
    rows = tb * seq          # sentence rows in this batch tile
    mrows = tb * mt_len      # mt rows in this batch tile

    def segment_matrix(n_rows, seg_len, rows_first, value, dtype):
        # membership[r, b] (or [b, r]) = value iff flattened row r belongs to local
        # batch element b.  Built from 2-D iota + compares: no reshapes, no int div.
        if rows_first:                                    # (n_rows, tb)
            r = jax.lax.broadcasted_iota(jnp.int32, (n_rows, tb), 0)
            b = jax.lax.broadcasted_iota(jnp.int32, (n_rows, tb), 1)
        else:                                             # (tb, n_rows)
            b = jax.lax.broadcasted_iota(jnp.int32, (tb, n_rows), 0)
            r = jax.lax.broadcasted_iota(jnp.int32, (tb, n_rows), 1)
        lo = b * seg_len
        inside = (r >= lo) & (r < lo + seg_len)
        return jnp.where(inside, value, 0.0).astype(dtype)

    # 0/1 membership used for segment broadcast / softmax mask; mean-folded bf16
    # selectors feed the MXU directly (1/seg_len folded in — review item "fold scales").
    seg01 = segment_matrix(rows, seq, True, 1.0, f32)             # (rows, tb)
    sel_s = segment_matrix(rows, seq, False, 1.0 / seq, bf16)     # (tb, rows)
    sel_m = segment_matrix(mrows, mt_len, False, 1.0 / mt_len, bf16)  # (tb, mrows)

    # attn_1 = sigmoid(mlp(max(dep_emb, pos_emb))); dep||pos arrive lane-concatenated.
    dp = dp_ref[...]                                              # (rows, 2D) bf16
    pooled = jnp.maximum(dp[:, :dep_dim], dp[:, dep_dim:]).astype(f32)
    a_logit = (jnp.sum(pooled * mlp_w_ref[...], axis=-1, keepdims=True)
               + mlp_b_ref[...])                                  # (rows, 1) f32
    attn1 = jax.nn.sigmoid(a_logit.astype(act_dtype)).astype(bf16)

    # Sentence activations stay bf16 end-to-end (largest VMEM-pressure reduction).
    sent_scaled = sent_ref[...] * attn1                           # (rows, H) bf16

    # linear1 on concat([sent, mean(mt)]) — weight split into the two halves.
    # Sentence half: one (tb*S, H) @ (H, H) bf16 MXU matmul for the whole tile.
    h1s = jnp.dot(sent_scaled, w1s_ref[...], preferred_element_type=f32)   # (rows, H)
    # mt half: per-batch mean over the *padded* mt length (matches torch.mean on the
    # padded tensor); the 1/mt_len scale is folded into sel_m.
    mt_mean = jnp.dot(sel_m, mt_ref[...], preferred_element_type=f32)      # (tb, H)
    h1m = jnp.dot(mt_mean.astype(bf16), w1m_ref[...],
                  preferred_element_type=f32)                              # (tb, H)
    # Broadcast each batch row to its seq rows.  K=tb matmul is fine at tb<=16; for
    # large tb replace with a contiguous per-segment repeat (see perf review).
    h1m_rows = jnp.dot(seg01, h1m, preferred_element_type=f32)             # (rows, H)
    h1 = jnp.tanh((h1s + h1m_rows + b1_ref[...]).astype(act_dtype))        # (rows, H)

    # beta = softmax(linear2(h1)) over each sentence segment, per-SEGMENT max.
    u = jnp.sum(h1 * w2_ref[...], axis=-1, keepdims=True)                  # (rows, 1) f32
    u_seg = jnp.where(seg01 > 0.5, u, -1e30)                               # (rows, tb)
    seg_max = jnp.max(u_seg, axis=0, keepdims=True)                        # (1, tb)
    m_rows = jnp.sum(seg01 * seg_max, axis=-1, keepdims=True)              # (rows, 1)
    e = jnp.exp(u - m_rows)                                                # (rows, 1)
    colsum = jnp.sum(e * seg01, axis=0, keepdims=True)                     # (1, tb)
    denom = jnp.sum(seg01 * colsum, axis=-1, keepdims=True)                # (rows, 1)
    beta = (e * pl.reciprocal(denom, approx=True)).astype(bf16)            # (rows, 1)

    # x = mean(tanh(mlp2(sent * attn1 * beta)), seq) — the two scalings are fused,
    # everything stays bf16 into the MXU, and the 1/seq mean is folded into sel_s.
    sent2 = sent_scaled * beta                                             # (rows, H) bf16
    x = jnp.tanh((jnp.dot(sent2, mlp2_w_ref[...], preferred_element_type=f32)
                  + mlp2_b_ref[...]).astype(act_dtype))                    # (rows, H)
    xm = jnp.dot(sel_s, x.astype(bf16), preferred_element_type=f32)        # (tb, H)

    # dense on concat([x, pool_out]) — weight split; output padded to 128 lanes so
    # the writeback is a single unmasked lane-dense store.
    out_ref[...] = (jnp.dot(xm.astype(bf16), dws_ref[...], preferred_element_type=f32)
                    + jnp.dot(pool_ref[...], dwp_ref[...], preferred_element_type=f32)
                    + db_ref[...])                                         # (tb, C_pad)


def result_identification_pallas(sent, mt, dep_emb, pos_emb, pool_out, params,
                                 *, batch_tile=8):
    """sent: (B,S,H)  mt: (B,M,H)  dep/pos_emb: (B,S,D)  pool_out: (B,H) -> (B,C)."""
    B, S, H = sent.shape
    M = mt.shape[1]
    D = dep_emb.shape[2]
    C = params["dense_b"].shape[-1]
    C_pad = ((C + 127) // 128) * 128

    # Batch tile: multiple of 8 keeps every 2-D block sublane-aligned.  No forced
    # 2-step padding: on single-TC chips it only doubles work for small batches;
    # on v7x megacore pick batch_tile so that B / tb >= 2.
    tb = max(8, 8 * (batch_tile // 8))
    B_pad = ((B + tb - 1) // tb) * tb
    pad_b = B_pad - B
    grid = (B_pad // tb,)

    f32, bf16 = jnp.float32, jnp.bfloat16

    # bf16 transcendentals only where the VPU/EUP has a bf16 path (v6e / v7x).
    kind = jax.devices()[0].device_kind.lower()
    act_dtype = f32 if any(t in kind for t in ("v2", "v3", "v4", "v5")) else bf16

    def pad_batch(x):
        return jnp.pad(x, ((0, pad_b),) + ((0, 0),) * (x.ndim - 1)) if pad_b else x

    # Flatten (batch, seq) -> rows host-side; pre-cast activations to bf16.
    sent2 = pad_batch(sent).astype(bf16).reshape(B_pad * S, H)
    mt2 = pad_batch(mt).astype(bf16).reshape(B_pad * M, H)
    # dep || pos concatenated on the lane axis, bf16: one DMA stream instead of two f32.
    dp2 = pad_batch(jnp.concatenate([dep_emb, pos_emb], axis=-1)
                    ).astype(bf16).reshape(B_pad * S, 2 * D)
    pool2 = pad_batch(pool_out).astype(bf16)                        # (B_pad, H)

    def pad_lanes(w):
        extra = C_pad - w.shape[-1]
        return jnp.pad(w, ((0, 0), (0, extra))) if extra else w

    w1s = params["lin1_ws"].astype(bf16)
    w1m = params["lin1_wm"].astype(bf16)
    mlp2_w = params["mlp2_w"].astype(bf16)
    dws = pad_lanes(params["dense_ws"]).astype(bf16)
    dwp = pad_lanes(params["dense_wp"]).astype(bf16)
    db = pad_lanes(params["dense_b"]).astype(f32)

    kernel = functools.partial(_ri_kernel, tb=tb, seq=S, mt_len=M, dep_dim=D,
                               act_dtype=act_dtype)

    # Explicit scoped-VMEM budget: 2x the streamed tiles + single-buffered weights +
    # headroom for the f32 (tb*S, H) matmul accumulators, clamped so it is valid on
    # every generation (v7x physical VMEM is 64 MiB -> cap at 48 MiB).
    stream = 2 * (tb * S * H * 2 + tb * M * H * 2 + tb * S * 2 * D * 2
                  + tb * H * 2 + tb * C_pad * 4)
    weights = 3 * H * H * 2 + 2 * H * C_pad * 2 + (D + 1 + 3 * H + C_pad) * 4
    interm = 8 * tb * S * H * 4
    vmem_limit = int(min(max(stream + weights + interm, 32 << 20), 48 << 20))

    def make_call(const_mode):
        def const_spec(shape):
            # Constant index_map across the grid -> single-buffer these blocks.
            if const_mode is None:
                return pl.BlockSpec(shape, lambda b: (0,) * len(shape))
            return pl.BlockSpec(shape, lambda b: (0,) * len(shape),
                                pipeline_mode=const_mode)

        in_specs = [
            pl.BlockSpec((tb * S, H), lambda b: (b, 0)),       # sentence rows (bf16)
            pl.BlockSpec((tb * M, H), lambda b: (b, 0)),       # mt rows (bf16)
            pl.BlockSpec((tb * S, 2 * D), lambda b: (b, 0)),   # dep||pos embeds (bf16)
            pl.BlockSpec((tb, H), lambda b: (b, 0)),           # pooled BERT out (bf16)
            const_spec((1, D)),          # mlp weight (row form of (D,1))
            const_spec((1, 1)),          # mlp bias
            const_spec((H, H)),          # linear1 weight, sentence half (bf16)
            const_spec((H, H)),          # linear1 weight, mt half (bf16)
            const_spec((1, H)),          # linear1 bias
            const_spec((1, H)),          # linear2 weight (row form of (H,1))
            const_spec((H, H)),          # mlp2 weight (bf16)
            const_spec((1, H)),          # mlp2 bias
            const_spec((H, C_pad)),      # dense weight, x half (bf16, lane-padded)
            const_spec((H, C_pad)),      # dense weight, pool half (bf16, lane-padded)
            const_spec((1, C_pad)),      # dense bias (lane-padded)
        ]
        return pl.pallas_call(
            kernel,
            out_shape=jax.ShapeDtypeStruct((B_pad, C_pad), jnp.float32),
            grid=grid,
            in_specs=in_specs,
            out_specs=pl.BlockSpec((tb, C_pad), lambda b: (b, 0)),
            compiler_params=pltpu.CompilerParams(
                dimension_semantics=("parallel",),
                vmem_limit_bytes=vmem_limit),
        )

    args = (sent2, mt2, dp2, pool2,
            params["mlp_w"].astype(f32), params["mlp_b"].astype(f32),
            w1s, w1m, params["lin1_b"].astype(f32), params["lin2_w"].astype(f32),
            mlp2_w, params["mlp2_b"].astype(f32),
            dws, dwp, db)

    try:
        out = make_call(pl.Buffered(1))(*args)     # single-buffered constant weights
    except Exception:
        # Fallback if this jax build rejects pipeline_mode / Buffered(1): identical
        # kernel, default (double) buffering for the constant blocks.
        out = make_call(None)(*args)
    return out[:B, :C]


# ----------------------------------------------------------------------------
# Plain-JAX glue: index_select / pad_sequence equivalent (zero padding).
# ----------------------------------------------------------------------------
def build_padded(feature, idx_pairs, max_len, clip_to_seq=False):
    B, L, H = feature.shape
    starts = idx_pairs[:, 0]
    ends = idx_pairs[:, 1]
    if clip_to_seq:
        ends = jnp.minimum(ends, L)
    lengths = ends - starts
    posn = jnp.arange(max_len)
    gather_idx = jnp.clip(starts[:, None] + posn[None, :], 0, L - 1)   # (B, max_len)
    mask = (posn[None, :] < lengths[:, None]).astype(feature.dtype)
    gathered = jnp.take_along_axis(feature, gather_idx[:, :, None], axis=1)
    return gathered * mask[:, :, None]


# ----------------------------------------------------------------------------
# Pure-JAX reference of the post-BERT head (mirrors the torch forward).
# ----------------------------------------------------------------------------
def ri_reference(sent, mt, dep, pos, pool, params):
    pooled = jnp.maximum(dep, pos)
    attn1 = jax.nn.sigmoid(jnp.einsum("bsd,d->bs", pooled, params["mlp_w"][0])
                           + params["mlp_b"][0, 0])[..., None]
    sent = sent * attn1
    mt_mean = jnp.mean(mt, axis=1, keepdims=True)
    h1 = jnp.tanh(jnp.einsum("bsh,hk->bsk", sent, params["lin1_ws"])
                  + jnp.einsum("bxh,hk->bxk", mt_mean, params["lin1_wm"])
                  + params["lin1_b"])
    u = jnp.einsum("bsh,h->bs", h1, params["lin2_w"][0])[..., None]
    beta = jax.nn.softmax(u, axis=1)
    sent = sent * beta
    x = jnp.tanh(jnp.einsum("bsh,hk->bsk", sent, params["mlp2_w"]) + params["mlp2_b"])
    xm = jnp.mean(x, axis=1)
    return xm @ params["dense_ws"] + pool @ params["dense_wp"] + params["dense_b"]


if __name__ == "__main__":
    # Small, forward-consistent shapes.
    B, L, H = 4, 16, 32          # batch, BERT seq len, hidden_size
    D = 16                       # dependency_dim
    C = 3                        # num_classes
    dep_tag_num, pos_tag_num = 5, 7

    key = jax.random.PRNGKey(0)
    ks = jax.random.split(key, 16)

    # Synthetic stand-in for BertModel outputs (sequence output + pooled output).
    feature_output = jax.random.normal(ks[0], (B, L, H), jnp.float32)
    pool_out = jnp.tanh(jax.random.normal(ks[1], (B, H), jnp.float32))

    # Index pairs (concrete, host-side) — variable sentence lengths exercise padding.
    sent_idx = np.array([[1, 9], [2, 8], [0, 7], [3, 11]], dtype=np.int32)
    mt_idx = np.array([[9, 13], [8, 12], [7, 11], [11, 15]], dtype=np.int32)
    S = int((sent_idx[:, 1] - sent_idx[:, 0]).max())                 # 8
    M = int((np.minimum(mt_idx[:, 1], L) - mt_idx[:, 0]).max())      # 4

    sentence_output = build_padded(feature_output, jnp.asarray(sent_idx), S)
    mt_output = build_padded(feature_output, jnp.asarray(mt_idx), M, clip_to_seq=True)

    # Dependency / POS tag ids aligned with the padded sentence length.
    dep_tags = jax.random.randint(ks[2], (B, S), 0, dep_tag_num + 1)
    dep_pos = jax.random.randint(ks[3], (B, S), 0, pos_tag_num + 1)

    # Deterministic parameter init (embedding tables + linear layers, (in, out) layout).
    scale = 0.05
    type_embed = scale * jax.random.normal(ks[4], (dep_tag_num + 1, D), jnp.float32)
    pos_embed = scale * jax.random.normal(ks[5], (pos_tag_num + 1, D), jnp.float32)
    params = {
        "mlp_w":    scale * jax.random.normal(ks[6], (1, D), jnp.float32),
        "mlp_b":    scale * jax.random.normal(ks[7], (1, 1), jnp.float32),
        "lin1_ws":  scale * jax.random.normal(ks[8], (H, H), jnp.float32),
        "lin1_wm":  scale * jax.random.normal(ks[9], (H, H), jnp.float32),
        "lin1_b":   scale * jax.random.normal(ks[10], (1, H), jnp.float32),
        "lin2_w":   scale * jax.random.normal(ks[11], (1, H), jnp.float32),
        "mlp2_w":   scale * jax.random.normal(ks[12], (H, H), jnp.float32),
        "mlp2_b":   scale * jax.random.normal(ks[13], (1, H), jnp.float32),
        "dense_ws": scale * jax.random.normal(ks[14], (H, C), jnp.float32),
        "dense_wp": scale * jax.random.normal(ks[15], (H, C), jnp.float32),
        "dense_b":  jnp.zeros((1, C), jnp.float32),
    }

    # Embedding lookups (glue).
    dep_type_embed = jnp.take(type_embed, dep_tags, axis=0)   # (B, S, D)
    pos_type_embed = jnp.take(pos_embed, dep_pos, axis=0)     # (B, S, D)

    logits = result_identification_pallas(
        sentence_output, mt_output, dep_type_embed, pos_type_embed, pool_out, params)
    logits = jax.block_until_ready(logits)
    assert logits.shape == (B, C)

    ref = ri_reference(sentence_output, mt_output, dep_type_embed, pos_type_embed,
                       pool_out, params)
    np.testing.assert_allclose(np.asarray(logits), np.asarray(ref),
                               rtol=5e-2, atol=5e-2)
    print("KERNEL_OK")
</pallas_src>

<mosaic_0001>
module attributes {stable_mosaic.version = 11 : i64} {
  func.func @_ri_kernel(%arg0: i32, %arg1: memref<64x32xbf16, #tpu.memory_space<vmem>>, %arg2: memref<32x32xbf16, #tpu.memory_space<vmem>>, %arg3: memref<64x32xbf16, #tpu.memory_space<vmem>>, %arg4: memref<8x32xbf16, #tpu.memory_space<vmem>>, %arg5: memref<1x16xf32, #tpu.memory_space<vmem>>, %arg6: memref<1x1xf32, #tpu.memory_space<vmem>>, %arg7: memref<32x32xbf16, #tpu.memory_space<vmem>>, %arg8: memref<32x32xbf16, #tpu.memory_space<vmem>>, %arg9: memref<1x32xf32, #tpu.memory_space<vmem>>, %arg10: memref<1x32xf32, #tpu.memory_space<vmem>>, %arg11: memref<32x32xbf16, #tpu.memory_space<vmem>>, %arg12: memref<1x32xf32, #tpu.memory_space<vmem>>, %arg13: memref<32x128xbf16, #tpu.memory_space<vmem>>, %arg14: memref<32x128xbf16, #tpu.memory_space<vmem>>, %arg15: memref<1x128xf32, #tpu.memory_space<vmem>>, %arg16: memref<8x128xf32, #tpu.memory_space<vmem>>) attributes {dimension_semantics = [#tpu.dimension_semantics<parallel>], iteration_bounds = array<i64: 1>, scalar_prefetch = 0 : i64, scratch_operands = 0 : i64, tpu.core_type = #tpu.core_type<tc>, window_params = [{transform_indices = @transform_0, window_bounds = array<i64: 64, 32>}, {transform_indices = @transform_1, window_bounds = array<i64: 32, 32>}, {transform_indices = @transform_2, window_bounds = array<i64: 64, 32>}, {transform_indices = @transform_3, window_bounds = array<i64: 8, 32>}, {pipeline_mode = #tpu.pipeline_mode<synchronous>, transform_indices = @transform_4, window_bounds = array<i64: 1, 16>}, {pipeline_mode = #tpu.pipeline_mode<synchronous>, transform_indices = @transform_5, window_bounds = array<i64: 1, 1>}, {pipeline_mode = #tpu.pipeline_mode<synchronous>, transform_indices = @transform_6, window_bounds = array<i64: 32, 32>}, {pipeline_mode = #tpu.pipeline_mode<synchronous>, transform_indices = @transform_7, window_bounds = array<i64: 32, 32>}, {pipeline_mode = #tpu.pipeline_mode<synchronous>, transform_indices = @transform_8, window_bounds = array<i64: 1, 32>}, {pipeline_mode = #tpu.pipeline_mode<synchronous>, transform_indices = @transform_9, window_bounds = array<i64: 1, 32>}, {pipeline_mode = #tpu.pipeline_mode<synchronous>, transform_indices = @transform_10, window_bounds = array<i64: 32, 32>}, {pipeline_mode = #tpu.pipeline_mode<synchronous>, transform_indices = @transform_11, window_bounds = array<i64: 1, 32>}, {pipeline_mode = #tpu.pipeline_mode<synchronous>, transform_indices = @transform_12, window_bounds = array<i64: 32, 128>}, {pipeline_mode = #tpu.pipeline_mode<synchronous>, transform_indices = @transform_13, window_bounds = array<i64: 32, 128>}, {pipeline_mode = #tpu.pipeline_mode<synchronous>, transform_indices = @transform_14, window_bounds = array<i64: 1, 128>}, {transform_indices = @transform_15, window_bounds = array<i64: 8, 128>}]} {
    %0 = tpu.iota {dimensions = array<i32: 0>} : vector<64x8xi32>
    %1 = tpu.iota {dimensions = array<i32: 1>} : vector<64x8xi32>
    %c8_i32 = arith.constant 8 : i32
    %2 = vector.broadcast %c8_i32 : i32 to vector<64x8xi32>
    %3 = arith.muli %1, %2 : vector<64x8xi32>
    %4 = arith.cmpi sge, %0, %3 : vector<64x8xi32>
    %c8_i32_0 = arith.constant 8 : i32
    %5 = vector.broadcast %c8_i32_0 : i32 to vector<64x8xi32>
    %6 = arith.addi %3, %5 : vector<64x8xi32>
    %7 = arith.cmpi slt, %0, %6 : vector<64x8xi32>
    %8 = arith.andi %4, %7 : vector<64x8xi1>
    %cst = arith.constant 1.000000e+00 : f32
    %cst_1 = arith.constant 0.000000e+00 : f32
    %9 = vector.broadcast %cst : f32 to vector<64x8xf32>
    %10 = vector.broadcast %cst_1 : f32 to vector<64x8xf32>
    %11 = arith.select %8, %9, %10 : vector<64x8xi1>, vector<64x8xf32>
    %12 = tpu.iota {dimensions = array<i32: 0>} : vector<8x64xi32>
    %13 = tpu.iota {dimensions = array<i32: 1>} : vector<8x64xi32>
    %c8_i32_2 = arith.constant 8 : i32
    %14 = vector.broadcast %c8_i32_2 : i32 to vector<8x64xi32>
    %15 = arith.muli %12, %14 : vector<8x64xi32>
    %16 = arith.cmpi sge, %13, %15 : vector<8x64xi32>
    %c8_i32_3 = arith.constant 8 : i32
    %17 = vector.broadcast %c8_i32_3 : i32 to vector<8x64xi32>
    %18 = arith.addi %15, %17 : vector<8x64xi32>
    %19 = arith.cmpi slt, %13, %18 : vector<8x64xi32>
    %20 = arith.andi %16, %19 : vector<8x64xi1>
    %cst_4 = arith.constant 1.250000e-01 : f32
    %cst_5 = arith.constant 0.000000e+00 : f32
    %21 = vector.broadcast %cst_4 : f32 to vector<8x64xf32>
    %22 = vector.broadcast %cst_5 : f32 to vector<8x64xf32>
    %23 = arith.select %20, %21, %22 : vector<8x64xi1>, vector<8x64xf32>
    %24 = arith.truncf %23 : vector<8x64xf32> to vector<8x64xbf16>
    %25 = tpu.iota {dimensions = array<i32: 0>} : vector<8x32xi32>
    %26 = tpu.iota {dimensions = array<i32: 1>} : vector<8x32xi32>
    %c4_i32 = arith.constant 4 : i32
    %27 = vector.broadcast %c4_i32 : i32 to vector<8x32xi32>
    %28 = arith.muli %25, %27 : vector<8x32xi32>
    %29 = arith.cmpi sge, %26, %28 : vector<8x32xi32>
    %c4_i32_6 = arith.constant 4 : i32
    %30 = vector.broadcast %c4_i32_6 : i32 to vector<8x32xi32>
    %31 = arith.addi %28, %30 : vector<8x32xi32>
    %32 = arith.cmpi slt, %26, %31 : vector<8x32xi32>
    %33 = arith.andi %29, %32 : vector<8x32xi1>
    %cst_7 = arith.constant 2.500000e-01 : f32
    %cst_8 = arith.constant 0.000000e+00 : f32
    %34 = vector.broadcast %cst_7 : f32 to vector<8x32xf32>
    %35 = vector.broadcast %cst_8 : f32 to vector<8x32xf32>
    %36 = arith.select %33, %34, %35 : vector<8x32xi1>, vector<8x32xf32>
    %37 = arith.truncf %36 : vector<8x32xf32> to vector<8x32xbf16>
    %c0 = arith.constant 0 : index
    %c0_9 = arith.constant 0 : index
    %38 = vector.load %arg3[%c0, %c0_9] : memref<64x32xbf16, #tpu.memory_space<vmem>>, vector<64x32xbf16>
    %39 = vector.extract_strided_slice %38 {offsets = [0, 0], sizes = [64, 16], strides = [1, 1]} : vector<64x32xbf16> to vector<64x16xbf16>
    %40 = vector.extract_strided_slice %38 {offsets = [0, 16], sizes = [64, 16], strides = [1, 1]} : vector<64x32xbf16> to vector<64x16xbf16>
    %41 = arith.maximumf %39, %40 : vector<64x16xbf16>
    %42 = arith.extf %41 : vector<64x16xbf16> to vector<64x16xf32>
    %c0_10 = arith.constant 0 : index
    %c0_11 = arith.constant 0 : index
    %43 = vector.load %arg5[%c0_10, %c0_11] : memref<1x16xf32, #tpu.memory_space<vmem>>, vector<1x16xf32>
    %44 = vector.broadcast %43 : vector<1x16xf32> to vector<64x16xf32>
    %45 = arith.mulf %42, %44 : vector<64x16xf32>
    %cst_12 = arith.constant dense<0.000000e+00> : vector<64xf32>
    %46 = vector.multi_reduction <add>, %45, %cst_12 [1] : vector<64x16xf32> to vector<64xf32>
    %47 = vector.shape_cast %46 : vector<64xf32> to vector<64x1xf32>
    %c0_13 = arith.constant 0 : index
    %c0_14 = arith.constant 0 : index
    %48 = vector.load %arg6[%c0_13, %c0_14] : memref<1x1xf32, #tpu.memory_space<vmem>>, vector<1x1xf32>
    %49 = vector.broadcast %48 : vector<1x1xf32> to vector<64x1xf32>
    %50 = arith.addf %47, %49 : vector<64x1xf32>
    %51 = arith.truncf %50 : vector<64x1xf32> to vector<64x1xbf16>
    %52 = arith.negf %51 : vector<64x1xbf16>
    %53 = math.exp %52 : vector<64x1xbf16>
    %cst_15 = arith.constant 1.000000e+00 : bf16
    %54 = vector.broadcast %cst_15 : bf16 to vector<64x1xbf16>
    %55 = arith.addf %54, %53 : vector<64x1xbf16>
    %56 = arith.divf %54, %55 : vector<64x1xbf16>
    %c0_16 = arith.constant 0 : index
    %c0_17 = arith.constant 0 : index
    %57 = vector.load %arg1[%c0_16, %c0_17] : memref<64x32xbf16, #tpu.memory_space<vmem>>, vector<64x32xbf16>
    %58 = vector.broadcast %56 : vector<64x1xbf16> to vector<64x32xbf16>
    %59 = arith.mulf %57, %58 : vector<64x32xbf16>
    %c0_18 = arith.constant 0 : index
    %c0_19 = arith.constant 0 : index
    %60 = vector.load %arg7[%c0_18, %c0_19] : memref<32x32xbf16, #tpu.memory_space<vmem>>, vector<32x32xbf16>
    %cst_20 = arith.constant dense<0.000000e+00> : vector<64x32xf32>
    %61 = tpu.matmul %59, %60, %cst_20 {dimension_numbers = #tpu.dot_dimension_numbers<[1], [0], [0], [1], [0, 0, 1, 1], [], []>} : vector<64x32xbf16>, vector<32x32xbf16>, vector<64x32xf32> -> vector<64x32xf32>
    %c0_21 = arith.constant 0 : index
    %c0_22 = arith.constant 0 : index
    %62 = vector.load %arg2[%c0_21, %c0_22] : memref<32x32xbf16, #tpu.memory_space<vmem>>, vector<32x32xbf16>
    %cst_23 = arith.constant dense<0.000000e+00> : vector<8x32xf32>
    %63 = tpu.matmul %37, %62, %cst_23 {dimension_numbers = #tpu.dot_dimension_numbers<[1], [0], [0], [1], [0, 0, 1, 1], [], []>} : vector<8x32xbf16>, vector<32x32xbf16>, vector<8x32xf32> -> vector<8x32xf32>
    %64 = arith.truncf %63 : vector<8x32xf32> to vector<8x32xbf16>
    %c0_24 = arith.constant 0 : index
    %c0_25 = arith.constant 0 : index
    %65 = vector.load %arg8[%c0_24, %c0_25] : memref<32x32xbf16, #tpu.memory_space<vmem>>, vector<32x32xbf16>
    %cst_26 = arith.constant dense<0.000000e+00> : vector<8x32xf32>
    %66 = tpu.matmul %64, %65, %cst_26 {dimension_numbers = #tpu.dot_dimension_numbers<[1], [0], [0], [1], [0, 0, 1, 1], [], []>} : vector<8x32xbf16>, vector<32x32xbf16>, vector<8x32xf32> -> vector<8x32xf32>
    %cst_27 = arith.constant dense<0.000000e+00> : vector<64x32xf32>
    %67 = tpu.matmul %11, %66, %cst_27 {dimension_numbers = #tpu.dot_dimension_numbers<[1], [0], [0], [1], [0, 0, 1, 1], [], []>} : vector<64x8xf32>, vector<8x32xf32>, vector<64x32xf32> -> vector<64x32xf32>
    %68 = arith.addf %61, %67 : vector<64x32xf32>
    %c0_28 = arith.constant 0 : index
    %c0_29 = arith.constant 0 : index
    %69 = vector.load %arg9[%c0_28, %c0_29] : memref<1x32xf32, #tpu.memory_space<vmem>>, vector<1x32xf32>
    %70 = vector.broadcast %69 : vector<1x32xf32> to vector<64x32xf32>
    %71 = arith.addf %68, %70 : vector<64x32xf32>
    %72 = arith.truncf %71 : vector<64x32xf32> to vector<64x32xbf16>
    %73 = math.tanh %72 : vector<64x32xbf16>
    %c0_30 = arith.constant 0 : index
    %c0_31 = arith.constant 0 : index
    %74 = vector.load %arg10[%c0_30, %c0_31] : memref<1x32xf32, #tpu.memory_space<vmem>>, vector<1x32xf32>
    %75 = arith.extf %73 : vector<64x32xbf16> to vector<64x32xf32>
    %76 = vector.broadcast %74 : vector<1x32xf32> to vector<64x32xf32>
    %77 = arith.mulf %75, %76 : vector<64x32xf32>
    %cst_32 = arith.constant dense<0.000000e+00> : vector<64xf32>
    %78 = vector.multi_reduction <add>, %77, %cst_32 [1] : vector<64x32xf32> to vector<64xf32>
    %79 = vector.shape_cast %78 : vector<64xf32> to vector<64x1xf32>
    %cst_33 = arith.constant 5.000000e-01 : f32
    %80 = vector.broadcast %cst_33 : f32 to vector<64x8xf32>
    %81 = arith.cmpf ogt, %11, %80 : vector<64x8xf32>
    %cst_34 = arith.constant -1.000000e+30 : f32
    %82 = vector.shape_cast %79 : vector<64x1xf32> to vector<64x1xf32>
    %83 = vector.broadcast %82 : vector<64x1xf32> to vector<64x8xf32>
    %84 = vector.broadcast %cst_34 : f32 to vector<64x8xf32>
    %85 = arith.select %81, %83, %84 : vector<64x8xi1>, vector<64x8xf32>
    %cst_35 = arith.constant dense<0xFF800000> : vector<8xf32>
    %86 = vector.multi_reduction <maximumf>, %85, %cst_35 [0] : vector<64x8xf32> to vector<8xf32>
    %87 = vector.shape_cast %86 : vector<8xf32> to vector<1x8xf32>
    %88 = vector.broadcast %87 : vector<1x8xf32> to vector<64x8xf32>
    %89 = arith.mulf %11, %88 : vector<64x8xf32>
    %cst_36 = arith.constant dense<0.000000e+00> : vector<64xf32>
    %90 = vector.multi_reduction <add>, %89, %cst_36 [1] : vector<64x8xf32> to vector<64xf32>
    %91 = vector.shape_cast %90 : vector<64xf32> to vector<64x1xf32>
    %92 = arith.subf %79, %91 : vector<64x1xf32>
    %93 = math.exp %92 : vector<64x1xf32>
    %94 = vector.broadcast %93 : vector<64x1xf32> to vector<64x8xf32>
    %95 = arith.mulf %94, %11 : vector<64x8xf32>
    %cst_37 = arith.constant dense<0.000000e+00> : vector<8xf32>
    %96 = vector.multi_reduction <add>, %95, %cst_37 [0] : vector<64x8xf32> to vector<8xf32>
    %97 = vector.shape_cast %96 : vector<8xf32> to vector<1x8xf32>
    %98 = vector.broadcast %97 : vector<1x8xf32> to vector<64x8xf32>
    %99 = arith.mulf %11, %98 : vector<64x8xf32>
    %cst_38 = arith.constant dense<0.000000e+00> : vector<64xf32>
    %100 = vector.multi_reduction <add>, %99, %cst_38 [1] : vector<64x8xf32> to vector<64xf32>
    %101 = vector.shape_cast %100 : vector<64xf32> to vector<64x1xf32>
    %102 = tpu.reciprocal %101 {approx = true} : vector<64x1xf32> -> vector<64x1xf32>
    %103 = arith.mulf %93, %102 : vector<64x1xf32>
    %104 = arith.truncf %103 : vector<64x1xf32> to vector<64x1xbf16>
    %105 = vector.broadcast %104 : vector<64x1xbf16> to vector<64x32xbf16>
    %106 = arith.mulf %59, %105 : vector<64x32xbf16>
    %c0_39 = arith.constant 0 : index
    %c0_40 = arith.constant 0 : index
    %107 = vector.load %arg11[%c0_39, %c0_40] : memref<32x32xbf16, #tpu.memory_space<vmem>>, vector<32x32xbf16>
    %cst_41 = arith.constant dense<0.000000e+00> : vector<64x32xf32>
    %108 = tpu.matmul %106, %107, %cst_41 {dimension_numbers = #tpu.dot_dimension_numbers<[1], [0], [0], [1], [0, 0, 1, 1], [], []>} : vector<64x32xbf16>, vector<32x32xbf16>, vector<64x32xf32> -> vector<64x32xf32>
    %c0_42 = arith.constant 0 : index
    %c0_43 = arith.constant 0 : index
    %109 = vector.load %arg12[%c0_42, %c0_43] : memref<1x32xf32, #tpu.memory_space<vmem>>, vector<1x32xf32>
    %110 = vector.broadcast %109 : vector<1x32xf32> to vector<64x32xf32>
    %111 = arith.addf %108, %110 : vector<64x32xf32>
    %112 = arith.truncf %111 : vector<64x32xf32> to vector<64x32xbf16>
    %113 = math.tanh %112 : vector<64x32xbf16>
    %cst_44 = arith.constant dense<0.000000e+00> : vector<8x32xf32>
    %114 = tpu.matmul %24, %113, %cst_44 {dimension_numbers = #tpu.dot_dimension_numbers<[1], [0], [0], [1], [0, 0, 1, 1], [], []>} : vector<8x64xbf16>, vector<64x32xbf16>, vector<8x32xf32> -> vector<8x32xf32>
    %115 = arith.truncf %114 : vector<8x32xf32> to vector<8x32xbf16>
    %c0_45 = arith.constant 0 : index
    %c0_46 = arith.constant 0 : index
    %116 = vector.load %arg13[%c0_45, %c0_46] : memref<32x128xbf16, #tpu.memory_space<vmem>>, vector<32x128xbf16>
    %cst_47 = arith.constant dense<0.000000e+00> : vector<8x128xf32>
    %117 = tpu.matmul %115, %116, %cst_47 {dimension_numbers = #tpu.dot_dimension_numbers<[1], [0], [0], [1], [0, 0, 1, 1], [], []>} : vector<8x32xbf16>, vector<32x128xbf16>, vector<8x128xf32> -> vector<8x128xf32>
    %c0_48 = arith.constant 0 : index
    %c0_49 = arith.constant 0 : index
    %118 = vector.load %arg4[%c0_48, %c0_49] : memref<8x32xbf16, #tpu.memory_space<vmem>>, vector<8x32xbf16>
    %c0_50 = arith.constant 0 : index
    %c0_51 = arith.constant 0 : index
    %119 = vector.load %arg14[%c0_50, %c0_51] : memref<32x128xbf16, #tpu.memory_space<vmem>>, vector<32x128xbf16>
    %cst_52 = arith.constant dense<0.000000e+00> : vector<8x128xf32>
    %120 = tpu.matmul %118, %119, %cst_52 {dimension_numbers = #tpu.dot_dimension_numbers<[1], [0], [0], [1], [0, 0, 1, 1], [], []>} : vector<8x32xbf16>, vector<32x128xbf16>, vector<8x128xf32> -> vector<8x128xf32>
    %121 = arith.addf %117, %120 : vector<8x128xf32>
    %c0_53 = arith.constant 0 : index
    %c0_54 = arith.constant 0 : index
    %122 = vector.load %arg15[%c0_53, %c0_54] : memref<1x128xf32, #tpu.memory_space<vmem>>, vector<1x128xf32>
    %123 = vector.broadcast %122 : vector<1x128xf32> to vector<8x128xf32>
    %124 = arith.addf %121, %123 : vector<8x128xf32>
    %c0_55 = arith.constant 0 : index
    %c0_56 = arith.constant 0 : index
    %125 = vector.load %arg16[%c0_55, %c0_56] : memref<8x128xf32, #tpu.memory_space<vmem>>, vector<8x128xf32>
    tpu.vector_store %arg16[%c0_55, %c0_56], %124 {strides = array<i32>} : memref<8x128xf32, #tpu.memory_space<vmem>>, vector<8x128xf32>,
    return
  }
  func.func @transform_0(%arg0: i32) -> (i32, i32) {
    %c0_i32 = arith.constant 0 : i32
    %c0_i32_0 = arith.constant 0 : i32
    return %arg0, %c0_i32 : i32, i32
  }
  func.func @transform_1(%arg0: i32) -> (i32, i32) {
    %c0_i32 = arith.constant 0 : i32
    %c0_i32_0 = arith.constant 0 : i32
    return %arg0, %c0_i32 : i32, i32
  }
  func.func @transform_2(%arg0: i32) -> (i32, i32) {
    %c0_i32 = arith.constant 0 : i32
    %c0_i32_0 = arith.constant 0 : i32
    return %arg0, %c0_i32 : i32, i32
  }
  func.func @transform_3(%arg0: i32) -> (i32, i32) {
    %c0_i32 = arith.constant 0 : i32
    %c0_i32_0 = arith.constant 0 : i32
    return %arg0, %c0_i32 : i32, i32
  }
  func.func @transform_4(%arg0: i32) -> (i32, i32) {
    %c0_i32 = arith.constant 0 : i32
    %c0_i32_0 = arith.constant 0 : i32
    %c0_i32_1 = arith.constant 0 : i32
    return %c0_i32, %c0_i32_0 : i32, i32
  }
  func.func @transform_5(%arg0: i32) -> (i32, i32) {
    %c0_i32 = arith.constant 0 : i32
    %c0_i32_0 = arith.constant 0 : i32
    %c0_i32_1 = arith.constant 0 : i32
    return %c0_i32, %c0_i32_0 : i32, i32
  }
  func.func @transform_6(%arg0: i32) -> (i32, i32) {
    %c0_i32 = arith.constant 0 : i32
    %c0_i32_0 = arith.constant 0 : i32
    %c0_i32_1 = arith.constant 0 : i32
    return %c0_i32, %c0_i32_0 : i32, i32
  }
  func.func @transform_7(%arg0: i32) -> (i32, i32) {
    %c0_i32 = arith.constant 0 : i32
    %c0_i32_0 = arith.constant 0 : i32
    %c0_i32_1 = arith.constant 0 : i32
    return %c0_i32, %c0_i32_0 : i32, i32
  }
  func.func @transform_8(%arg0: i32) -> (i32, i32) {
    %c0_i32 = arith.constant 0 : i32
    %c0_i32_0 = arith.constant 0 : i32
    %c0_i32_1 = arith.constant 0 : i32
    return %c0_i32, %c0_i32_0 : i32, i32
  }
  func.func @transform_9(%arg0: i32) -> (i32, i32) {
    %c0_i32 = arith.constant 0 : i32
    %c0_i32_0 = arith.constant 0 : i32
    %c0_i32_1 = arith.constant 0 : i32
    return %c0_i32, %c0_i32_0 : i32, i32
  }
  func.func @transform_10(%arg0: i32) -> (i32, i32) {
    %c0_i32 = arith.constant 0 : i32
    %c0_i32_0 = arith.constant 0 : i32
    %c0_i32_1 = arith.constant 0 : i32
    return %c0_i32, %c0_i32_0 : i32, i32
  }
  func.func @transform_11(%arg0: i32) -> (i32, i32) {
    %c0_i32 = arith.constant 0 : i32
    %c0_i32_0 = arith.constant 0 : i32
    %c0_i32_1 = arith.constant 0 : i32
    return %c0_i32, %c0_i32_0 : i32, i32
  }
  func.func @transform_12(%arg0: i32) -> (i32, i32) {
    %c0_i32 = arith.constant 0 : i32
    %c0_i32_0 = arith.constant 0 : i32
    %c0_i32_1 = arith.constant 0 : i32
    return %c0_i32, %c0_i32_0 : i32, i32
  }
  func.func @transform_13(%arg0: i32) -> (i32, i32) {
    %c0_i32 = arith.constant 0 : i32
    %c0_i32_0 = arith.constant 0 : i32
    %c0_i32_1 = arith.constant 0 : i32
    return %c0_i32, %c0_i32_0 : i32, i32
  }
  func.func @transform_14(%arg0: i32) -> (i32, i32) {
    %c0_i32 = arith.constant 0 : i32
    %c0_i32_0 = arith.constant 0 : i32
    %c0_i32_1 = arith.constant 0 : i32
    return %c0_i32, %c0_i32_0 : i32, i32
  }
  func.func @transform_15(%arg0: i32) -> (i32, i32) {
    %c0_i32 = arith.constant 0 : i32
    %c0_i32_0 = arith.constant 0 : i32
    return %arg0, %c0_i32 : i32, i32
  }
}

module attributes {stable_mosaic.version = 11 : i64} {
  func.func @_ri_kernel(%arg0: i32, %arg1: memref<64x32xbf16, #tpu.memory_space<vmem>>, %arg2: memref<32x32xbf16, #tpu.memory_space<vmem>>, %arg3: memref<64x32xbf16, #tpu.memory_space<vmem>>, %arg4: memref<8x32xbf16, #tpu.memory_space<vmem>>, %arg5: memref<1x16xf32, #tpu.memory_space<vmem>>, %arg6: memref<1x1xf32, #tpu.memory_space<vmem>>, %arg7: memref<32x32xbf16, #tpu.memory_space<vmem>>, %arg8: memref<32x32xbf16, #tpu.memory_space<vmem>>, %arg9: memref<1x32xf32, #tpu.memory_space<vmem>>, %arg10: memref<1x32xf32, #tpu.memory_space<vmem>>, %arg11: memref<32x32xbf16, #tpu.memory_space<vmem>>, %arg12: memref<1x32xf32, #tpu.memory_space<vmem>>, %arg13: memref<32x128xbf16, #tpu.memory_space<vmem>>, %arg14: memref<32x128xbf16, #tpu.memory_space<vmem>>, %arg15: memref<1x128xf32, #tpu.memory_space<vmem>>, %arg16: memref<8x128xf32, #tpu.memory_space<vmem>>) attributes {dimension_semantics = [#tpu.dimension_semantics<parallel>], iteration_bounds = array<i64: 1>, scalar_prefetch = 0 : i64, scratch_operands = 0 : i64, tpu.core_type = #tpu.core_type<tc>, window_params = [{transform_indices = @transform_0, window_bounds = array<i64: 64, 32>}, {transform_indices = @transform_1, window_bounds = array<i64: 32, 32>}, {transform_indices = @transform_2, window_bounds = array<i64: 64, 32>}, {transform_indices = @transform_3, window_bounds = array<i64: 8, 32>}, {pipeline_mode = #tpu.pipeline_mode<synchronous>, transform_indices = @transform_4, window_bounds = array<i64: 1, 16>}, {pipeline_mode = #tpu.pipeline_mode<synchronous>, transform_indices = @transform_5, window_bounds = array<i64: 1, 1>}, {pipeline_mode = #tpu.pipeline_mode<synchronous>, transform_indices = @transform_6, window_bounds = array<i64: 32, 32>}, {pipeline_mode = #tpu.pipeline_mode<synchronous>, transform_indices = @transform_7, window_bounds = array<i64: 32, 32>}, {pipeline_mode = #tpu.pipeline_mode<synchronous>, transform_indices = @transform_8, window_bounds = array<i64: 1, 32>}, {pipeline_mode = #tpu.pipeline_mode<synchronous>, transform_indices = @transform_9, window_bounds = array<i64: 1, 32>}, {pipeline_mode = #tpu.pipeline_mode<synchronous>, transform_indices = @transform_10, window_bounds = array<i64: 32, 32>}, {pipeline_mode = #tpu.pipeline_mode<synchronous>, transform_indices = @transform_11, window_bounds = array<i64: 1, 32>}, {pipeline_mode = #tpu.pipeline_mode<synchronous>, transform_indices = @transform_12, window_bounds = array<i64: 32, 128>}, {pipeline_mode = #tpu.pipeline_mode<synchronous>, transform_indices = @transform_13, window_bounds = array<i64: 32, 128>}, {pipeline_mode = #tpu.pipeline_mode<synchronous>, transform_indices = @transform_14, window_bounds = array<i64: 1, 128>}, {transform_indices = @transform_15, window_bounds = array<i64: 8, 128>}]} {
    %0 = tpu.iota {dimensions = array<i32: 0>} : vector<64x8xi32>
    %1 = tpu.iota {dimensions = array<i32: 1>} : vector<64x8xi32>
    %c8_i32 = arith.constant 8 : i32
    %2 = vector.broadcast %c8_i32 : i32 to vector<64x8xi32>
    %3 = arith.muli %1, %2 : vector<64x8xi32>
    %4 = arith.cmpi sge, %0, %3 : vector<64x8xi32>
    %c8_i32_0 = arith.constant 8 : i32
    %5 = vector.broadcast %c8_i32_0 : i32 to vector<64x8xi32>
    %6 = arith.addi %3, %5 : vector<64x8xi32>
    %7 = arith.cmpi slt, %0, %6 : vector<64x8xi32>
    %8 = arith.andi %4, %7 : vector<64x8xi1>
    %cst = arith.constant 1.000000e+00 : f32
    %cst_1 = arith.constant 0.000000e+00 : f32
    %9 = vector.broadcast %cst : f32 to vector<64x8xf32>
    %10 = vector.broadcast %cst_1 : f32 to vector<64x8xf32>
    %11 = arith.select %8, %9, %10 : vector<64x8xi1>, vector<64x8xf32>
    %12 = tpu.iota {dimensions = array<i32: 0>} : vector<8x64xi32>
    %13 = tpu.iota {dimensions = array<i32: 1>} : vector<8x64xi32>
    %c8_i32_2 = arith.constant 8 : i32
    %14 = vector.broadcast %c8_i32_2 : i32 to vector<8x64xi32>
    %15 = arith.muli %12, %14 : vector<8x64xi32>
    %16 = arith.cmpi sge, %13, %15 : vector<8x64xi32>
    %c8_i32_3 = arith.constant 8 : i32
    %17 = vector.broadcast %c8_i32_3 : i32 to vector<8x64xi32>
    %18 = arith.addi %15, %17 : vector<8x64xi32>
    %19 = arith.cmpi slt, %13, %18 : vector<8x64xi32>
    %20 = arith.andi %16, %19 : vector<8x64xi1>
    %cst_4 = arith.constant 1.250000e-01 : f32
    %cst_5 = arith.constant 0.000000e+00 : f32
    %21 = vector.broadcast %cst_4 : f32 to vector<8x64xf32>
    %22 = vector.broadcast %cst_5 : f32 to vector<8x64xf32>
    %23 = arith.select %20, %21, %22 : vector<8x64xi1>, vector<8x64xf32>
    %24 = arith.truncf %23 : vector<8x64xf32> to vector<8x64xbf16>
    %25 = tpu.iota {dimensions = array<i32: 0>} : vector<8x32xi32>
    %26 = tpu.iota {dimensions = array<i32: 1>} : vector<8x32xi32>
    %c4_i32 = arith.constant 4 : i32
    %27 = vector.broadcast %c4_i32 : i32 to vector<8x32xi32>
    %28 = arith.muli %25, %27 : vector<8x32xi32>
    %29 = arith.cmpi sge, %26, %28 : vector<8x32xi32>
    %c4_i32_6 = arith.constant 4 : i32
    %30 = vector.broadcast %c4_i32_6 : i32 to vector<8x32xi32>
    %31 = arith.addi %28, %30 : vector<8x32xi32>
    %32 = arith.cmpi slt, %26, %31 : vector<8x32xi32>
    %33 = arith.andi %29, %32 : vector<8x32xi1>
    %cst_7 = arith.constant 2.500000e-01 : f32
    %cst_8 = arith.constant 0.000000e+00 : f32
    %34 = vector.broadcast %cst_7 : f32 to vector<8x32xf32>
    %35 = vector.broadcast %cst_8 : f32 to vector<8x32xf32>
    %36 = arith.select %33, %34, %35 : vector<8x32xi1>, vector<8x32xf32>
    %37 = arith.truncf %36 : vector<8x32xf32> to vector<8x32xbf16>
    %c0 = arith.constant 0 : index
    %c0_9 = arith.constant 0 : index
    %38 = vector.load %arg3[%c0, %c0_9] : memref<64x32xbf16, #tpu.memory_space<vmem>>, vector<64x32xbf16>
    %39 = vector.extract_strided_slice %38 {offsets = [0, 0], sizes = [64, 16], strides = [1, 1]} : vector<64x32xbf16> to vector<64x16xbf16>
    %40 = vector.extract_strided_slice %38 {offsets = [0, 16], sizes = [64, 16], strides = [1, 1]} : vector<64x32xbf16> to vector<64x16xbf16>
    %41 = arith.maximumf %39, %40 : vector<64x16xbf16>
    %42 = arith.extf %41 : vector<64x16xbf16> to vector<64x16xf32>
    %c0_10 = arith.constant 0 : index
    %c0_11 = arith.constant 0 : index
    %43 = vector.load %arg5[%c0_10, %c0_11] : memref<1x16xf32, #tpu.memory_space<vmem>>, vector<1x16xf32>
    %44 = vector.broadcast %43 : vector<1x16xf32> to vector<64x16xf32>
    %45 = arith.mulf %42, %44 : vector<64x16xf32>
    %cst_12 = arith.constant dense<0.000000e+00> : vector<64xf32>
    %46 = vector.multi_reduction <add>, %45, %cst_12 [1] : vector<64x16xf32> to vector<64xf32>
    %47 = vector.shape_cast %46 : vector<64xf32> to vector<64x1xf32>
    %c0_13 = arith.constant 0 : index
    %c0_14 = arith.constant 0 : index
    %48 = vector.load %arg6[%c0_13, %c0_14] : memref<1x1xf32, #tpu.memory_space<vmem>>, vector<1x1xf32>
    %49 = vector.broadcast %48 : vector<1x1xf32> to vector<64x1xf32>
    %50 = arith.addf %47, %49 : vector<64x1xf32>
    %51 = arith.truncf %50 : vector<64x1xf32> to vector<64x1xbf16>
    %52 = arith.negf %51 : vector<64x1xbf16>
    %53 = math.exp %52 : vector<64x1xbf16>
    %cst_15 = arith.constant 1.000000e+00 : bf16
    %54 = vector.broadcast %cst_15 : bf16 to vector<64x1xbf16>
    %55 = arith.addf %54, %53 : vector<64x1xbf16>
    %56 = arith.divf %54, %55 : vector<64x1xbf16>
    %c0_16 = arith.constant 0 : index
    %c0_17 = arith.constant 0 : index
    %57 = vector.load %arg1[%c0_16, %c0_17] : memref<64x32xbf16, #tpu.memory_space<vmem>>, vector<64x32xbf16>
    %58 = vector.broadcast %56 : vector<64x1xbf16> to vector<64x32xbf16>
    %59 = arith.mulf %57, %58 : vector<64x32xbf16>
    %c0_18 = arith.constant 0 : index
    %c0_19 = arith.constant 0 : index
    %60 = vector.load %arg7[%c0_18, %c0_19] : memref<32x32xbf16, #tpu.memory_space<vmem>>, vector<32x32xbf16>
    %cst_20 = arith.constant dense<0.000000e+00> : vector<64x32xf32>
    %61 = tpu.matmul %59, %60, %cst_20 {dimension_numbers = #tpu.dot_dimension_numbers<[1], [0], [0], [1], [0, 0, 1, 1], [], []>} : vector<64x32xbf16>, vector<32x32xbf16>, vector<64x32xf32> -> vector<64x32xf32>
    %c0_21 = arith.constant 0 : index
    %c0_22 = arith.constant 0 : index
    %62 = vector.load %arg2[%c0_21, %c0_22] : memref<32x32xbf16, #tpu.memory_space<vmem>>, vector<32x32xbf16>
    %cst_23 = arith.constant dense<0.000000e+00> : vector<8x32xf32>
    %63 = tpu.matmul %37, %62, %cst_23 {dimension_numbers = #tpu.dot_dimension_numbers<[1], [0], [0], [1], [0, 0, 1, 1], [], []>} : vector<8x32xbf16>, vector<32x32xbf16>, vector<8x32xf32> -> vector<8x32xf32>
    %64 = arith.truncf %63 : vector<8x32xf32> to vector<8x32xbf16>
    %c0_24 = arith.constant 0 : index
    %c0_25 = arith.constant 0 : index
    %65 = vector.load %arg8[%c0_24, %c0_25] : memref<32x32xbf16, #tpu.memory_space<vmem>>, vector<32x32xbf16>
    %cst_26 = arith.constant dense<0.000000e+00> : vector<8x32xf32>
    %66 = tpu.matmul %64, %65, %cst_26 {dimension_numbers = #tpu.dot_dimension_numbers<[1], [0], [0], [1], [0, 0, 1, 1], [], []>} : vector<8x32xbf16>, vector<32x32xbf16>, vector<8x32xf32> -> vector<8x32xf32>
    %cst_27 = arith.constant dense<0.000000e+00> : vector<64x32xf32>
    %67 = tpu.matmul %11, %66, %cst_27 {dimension_numbers = #tpu.dot_dimension_numbers<[1], [0], [0], [1], [0, 0, 1, 1], [], []>} : vector<64x8xf32>, vector<8x32xf32>, vector<64x32xf32> -> vector<64x32xf32>
    %68 = arith.addf %61, %67 : vector<64x32xf32>
    %c0_28 = arith.constant 0 : index
    %c0_29 = arith.constant 0 : index
    %69 = vector.load %arg9[%c0_28, %c0_29] : memref<1x32xf32, #tpu.memory_space<vmem>>, vector<1x32xf32>
    %70 = vector.broadcast %69 : vector<1x32xf32> to vector<64x32xf32>
    %71 = arith.addf %68, %70 : vector<64x32xf32>
    %72 = arith.truncf %71 : vector<64x32xf32> to vector<64x32xbf16>
    %73 = math.tanh %72 : vector<64x32xbf16>
    %c0_30 = arith.constant 0 : index
    %c0_31 = arith.constant 0 : index
    %74 = vector.load %arg10[%c0_30, %c0_31] : memref<1x32xf32, #tpu.memory_space<vmem>>, vector<1x32xf32>
    %75 = arith.extf %73 : vector<64x32xbf16> to vector<64x32xf32>
    %76 = vector.broadcast %74 : vector<1x32xf32> to vector<64x32xf32>
    %77 = arith.mulf %75, %76 : vector<64x32xf32>
    %cst_32 = arith.constant dense<0.000000e+00> : vector<64xf32>
    %78 = vector.multi_reduction <add>, %77, %cst_32 [1] : vector<64x32xf32> to vector<64xf32>
    %79 = vector.shape_cast %78 : vector<64xf32> to vector<64x1xf32>
    %cst_33 = arith.constant 5.000000e-01 : f32
    %80 = vector.broadcast %cst_33 : f32 to vector<64x8xf32>
    %81 = arith.cmpf ogt, %11, %80 : vector<64x8xf32>
    %cst_34 = arith.constant -1.000000e+30 : f32
    %82 = vector.shape_cast %79 : vector<64x1xf32> to vector<64x1xf32>
    %83 = vector.broadcast %82 : vector<64x1xf32> to vector<64x8xf32>
    %84 = vector.broadcast %cst_34 : f32 to vector<64x8xf32>
    %85 = arith.select %81, %83, %84 : vector<64x8xi1>, vector<64x8xf32>
    %cst_35 = arith.constant dense<0xFF800000> : vector<8xf32>
    %86 = vector.multi_reduction <maximumf>, %85, %cst_35 [0] : vector<64x8xf32> to vector<8xf32>
    %87 = vector.shape_cast %86 : vector<8xf32> to vector<1x8xf32>
    %88 = vector.broadcast %87 : vector<1x8xf32> to vector<64x8xf32>
    %89 = arith.mulf %11, %88 : vector<64x8xf32>
    %cst_36 = arith.constant dense<0.000000e+00> : vector<64xf32>
    %90 = vector.multi_reduction <add>, %89, %cst_36 [1] : vector<64x8xf32> to vector<64xf32>
    %91 = vector.shape_cast %90 : vector<64xf32> to vector<64x1xf32>
    %92 = arith.subf %79, %91 : vector<64x1xf32>
    %93 = math.exp %92 : vector<64x1xf32>
    %94 = vector.broadcast %93 : vector<64x1xf32> to vector<64x8xf32>
    %95 = arith.mulf %94, %11 : vector<64x8xf32>
    %cst_37 = arith.constant dense<0.000000e+00> : vector<8xf32>
    %96 = vector.multi_reduction <add>, %95, %cst_37 [0] : vector<64x8xf32> to vector<8xf32>
    %97 = vector.shape_cast %96 : vector<8xf32> to vector<1x8xf32>
    %98 = vector.broadcast %97 : vector<1x8xf32> to vector<64x8xf32>
    %99 = arith.mulf %11, %98 : vector<64x8xf32>
    %cst_38 = arith.constant dense<0.000000e+00> : vector<64xf32>
    %100 = vector.multi_reduction <add>, %99, %cst_38 [1] : vector<64x8xf32> to vector<64xf32>
    %101 = vector.shape_cast %100 : vector<64xf32> to vector<64x1xf32>
    %102 = tpu.reciprocal %101 {approx = true} : vector<64x1xf32> -> vector<64x1xf32>
    %103 = arith.mulf %93, %102 : vector<64x1xf32>
    %104 = arith.truncf %103 : vector<64x1xf32> to vector<64x1xbf16>
    %105 = vector.broadcast %104 : vector<64x1xbf16> to vector<64x32xbf16>
    %106 = arith.mulf %59, %105 : vector<64x32xbf16>
    %c0_39 = arith.constant 0 : index
    %c0_40 = arith.constant 0 : index
    %107 = vector.load %arg11[%c0_39, %c0_40] : memref<32x32xbf16, #tpu.memory_space<vmem>>, vector<32x32xbf16>
    %cst_41 = arith.constant dense<0.000000e+00> : vector<64x32xf32>
    %108 = tpu.matmul %106, %107, %cst_41 {dimension_numbers = #tpu.dot_dimension_numbers<[1], [0], [0], [1], [0, 0, 1, 1], [], []>} : vector<64x32xbf16>, vector<32x32xbf16>, vector<64x32xf32> -> vector<64x32xf32>
    %c0_42 = arith.constant 0 : index
    %c0_43 = arith.constant 0 : index
    %109 = vector.load %arg12[%c0_42, %c0_43] : memref<1x32xf32, #tpu.memory_space<vmem>>, vector<1x32xf32>
    %110 = vector.broadcast %109 : vector<1x32xf32> to vector<64x32xf32>
    %111 = arith.addf %108, %110 : vector<64x32xf32>
    %112 = arith.truncf %111 : vector<64x32xf32> to vector<64x32xbf16>
    %113 = math.tanh %112 : vector<64x32xbf16>
    %cst_44 = arith.constant dense<0.000000e+00> : vector<8x32xf32>
    %114 = tpu.matmul %24, %113, %cst_44 {dimension_numbers = #tpu.dot_dimension_numbers<[1], [0], [0], [1], [0, 0, 1, 1], [], []>} : vector<8x64xbf16>, vector<64x32xbf16>, vector<8x32xf32> -> vector<8x32xf32>
    %115 = arith.truncf %114 : vector<8x32xf32> to vector<8x32xbf16>
    %c0_45 = arith.constant 0 : index
    %c0_46 = arith.constant 0 : index
    %116 = vector.load %arg13[%c0_45, %c0_46] : memref<32x128xbf16, #tpu.memory_space<vmem>>, vector<32x128xbf16>
    %cst_47 = arith.constant dense<0.000000e+00> : vector<8x128xf32>
    %117 = tpu.matmul %115, %116, %cst_47 {dimension_numbers = #tpu.dot_dimension_numbers<[1], [0], [0], [1], [0, 0, 1, 1], [], []>} : vector<8x32xbf16>, vector<32x128xbf16>, vector<8x128xf32> -> vector<8x128xf32>
    %c0_48 = arith.constant 0 : index
    %c0_49 = arith.constant 0 : index
    %118 = vector.load %arg4[%c0_48, %c0_49] : memref<8x32xbf16, #tpu.memory_space<vmem>>, vector<8x32xbf16>
    %c0_50 = arith.constant 0 : index
    %c0_51 = arith.constant 0 : index
    %119 = vector.load %arg14[%c0_50, %c0_51] : memref<32x128xbf16, #tpu.memory_space<vmem>>, vector<32x128xbf16>
    %cst_52 = arith.constant dense<0.000000e+00> : vector<8x128xf32>
    %120 = tpu.matmul %118, %119, %cst_52 {dimension_numbers = #tpu.dot_dimension_numbers<[1], [0], [0], [1], [0, 0, 1, 1], [], []>} : vector<8x32xbf16>, vector<32x128xbf16>, vector<8x128xf32> -> vector<8x128xf32>
    %121 = arith.addf %117, %120 : vector<8x128xf32>
    %c0_53 = arith.constant 0 : index
    %c0_54 = arith.constant 0 : index
    %122 = vector.load %arg15[%c0_53, %c0_54] : memref<1x128xf32, #tpu.memory_space<vmem>>, vector<1x128xf32>
    %123 = vector.broadcast %122 : vector<1x128xf32> to vector<8x128xf32>
    %124 = arith.addf %121, %123 : vector<8x128xf32>
    %c0_55 = arith.constant 0 : index
    %c0_56 = arith.constant 0 : index
    %125 = vector.load %arg16[%c0_55, %c0_56] : memref<8x128xf32, #tpu.memory_space<vmem>>, vector<8x128xf32>
    tpu.vector_store %arg16[%c0_55, %c0_56], %124 {strides = array<i32>} : memref<8x128xf32, #tpu.memory_space<vmem>>, vector<8x128xf32>,
    return
  }
  func.func @transform_0(%arg0: i32) -> (i32, i32) {
    %c0_i32 = arith.constant 0 : i32
    %c0_i32_0 = arith.constant 0 : i32
    return %arg0, %c0_i32 : i32, i32
  }
  func.func @transform_1(%arg0: i32) -> (i32, i32) {
    %c0_i32 = arith.constant 0 : i32
    %c0_i32_0 = arith.constant 0 : i32
    return %arg0, %c0_i32 : i32, i32
  }
  func.func @transform_2(%arg0: i32) -> (i32, i32) {
    %c0_i32 = arith.constant 0 : i32
    %c0_i32_0 = arith.constant 0 : i32
    return %arg0, %c0_i32 : i32, i32
  }
  func.func @transform_3(%arg0: i32) -> (i32, i32) {
    %c0_i32 = arith.constant 0 : i32
    %c0_i32_0 = arith.constant 0 : i32
    return %arg0, %c0_i32 : i32, i32
  }
  func.func @transform_4(%arg0: i32) -> (i32, i32) {
    %c0_i32 = arith.constant 0 : i32
    %c0_i32_0 = arith.constant 0 : i32
    %c0_i32_1 = arith.constant 0 : i32
    return %c0_i32, %c0_i32_0 : i32, i32
  }
  func.func @transform_5(%arg0: i32) -> (i32, i32) {
    %c0_i32 = arith.constant 0 : i32
    %c0_i32_0 = arith.constant 0 : i32
    %c0_i32_1 = arith.constant 0 : i32
    return %c0_i32, %c0_i32_0 : i32, i32
  }
  func.func @transform_6(%arg0: i32) -> (i32, i32) {
    %c0_i32 = arith.constant 0 : i32
    %c0_i32_0 = arith.constant 0 : i32
    %c0_i32_1 = arith.constant 0 : i32
    return %c0_i32, %c0_i32_0 : i32, i32
  }
  func.func @transform_7(%arg0: i32) -> (i32, i32) {
    %c0_i32 = arith.constant 0 : i32
    %c0_i32_0 = arith.constant 0 : i32
    %c0_i32_1 = arith.constant 0 : i32
    return %c0_i32, %c0_i32_0 : i32, i32
  }
  func.func @transform_8(%arg0: i32) -> (i32, i32) {
    %c0_i32 = arith.constant 0 : i32
    %c0_i32_0 = arith.constant 0 : i32
    %c0_i32_1 = arith.constant 0 : i32
    return %c0_i32, %c0_i32_0 : i32, i32
  }
  func.func @transform_9(%arg0: i32) -> (i32, i32) {
    %c0_i32 = arith.constant 0 : i32
    %c0_i32_0 = arith.constant 0 : i32
    %c0_i32_1 = arith.constant 0 : i32
    return %c0_i32, %c0_i32_0 : i32, i32
  }
  func.func @transform_10(%arg0: i32) -> (i32, i32) {
    %c0_i32 = arith.constant 0 : i32
    %c0_i32_0 = arith.constant 0 : i32
    %c0_i32_1 = arith.constant 0 : i32
    return %c0_i32, %c0_i32_0 : i32, i32
  }
  func.func @transform_11(%arg0: i32) -> (i32, i32) {
    %c0_i32 = arith.constant 0 : i32
    %c0_i32_0 = arith.constant 0 : i32
    %c0_i32_1 = arith.constant 0 : i32
    return %c0_i32, %c0_i32_0 : i32, i32
  }
  func.func @transform_12(%arg0: i32) -> (i32, i32) {
    %c0_i32 = arith.constant 0 : i32
    %c0_i32_0 = arith.constant 0 : i32
    %c0_i32_1 = arith.constant 0 : i32
    return %c0_i32, %c0_i32_0 : i32, i32
  }
  func.func @transform_13(%arg0: i32) -> (i32, i32) {
    %c0_i32 = arith.constant 0 : i32
    %c0_i32_0 = arith.constant 0 : i32
    %c0_i32_1 = arith.constant 0 : i32
    return %c0_i32, %c0_i32_0 : i32, i32
  }
  func.func @transform_14(%arg0: i32) -> (i32, i32) {
    %c0_i32 = arith.constant 0 : i32
    %c0_i32_0 = arith.constant 0 : i32
    %c0_i32_1 = arith.constant 0 : i32
    return %c0_i32, %c0_i32_0 : i32, i32
  }
  func.func @transform_15(%arg0: i32) -> (i32, i32) {
    %c0_i32 = arith.constant 0 : i32
    %c0_i32_0 = arith.constant 0 : i32
    return %arg0, %c0_i32 : i32, i32
  }
}

</mosaic_0001>

<llo_original>
// kernel: tpu_custom_call.1
$region0: #{tpu_custom_call.1}
  #allocation0 [shape = 'u32[]', space=smem, size = 0x4, offset = 0x4, fixed_abs, tag = 'smem constant byte address 0x4 - core index']
  #allocation1 [shape = 'u32[144,128]{1,0:T(1,128)}', space=vmem, size = 0x12000, scoped, tag = 'internal scratch']
  #allocation2 [shape = 'f32[1,1]{1,0:T(1,128)S(1)}', space=vmem, size = 0x200, scoped, tag = 'scoped memory for tpu_custom_call.1']
  %s0 = inlined_call_operand.vmem [shape: bf16[64,32], index: 0, kind: input, shape index: {}]
  %s1 = inlined_call_operand.vmem [shape: bf16[32,32], index: 1, kind: input, shape index: {}]
  %s2 = inlined_call_operand.vmem [shape: bf16[64,32], index: 2, kind: input, shape index: {}]
  %s3 = inlined_call_operand.vmem [shape: bf16[8,32], index: 3, kind: input, shape index: {}]
  %s4 = inlined_call_operand.vmem [shape: f32[1,16], index: 4, kind: input, shape index: {}]
  %s5 = inlined_call_operand.<no memory space> [shape: f32[1,1], index: 5, kind: input, shape index: {}]
  %s6 = inlined_call_operand.vmem [shape: bf16[32,32], index: 6, kind: input, shape index: {}]
  %s7 = inlined_call_operand.vmem [shape: bf16[32,32], index: 7, kind: input, shape index: {}]
  %s8 = inlined_call_operand.vmem [shape: f32[1,32], index: 8, kind: input, shape index: {}]
  %s9 = inlined_call_operand.vmem [shape: f32[1,32], index: 9, kind: input, shape index: {}]
  %s10 = inlined_call_operand.vmem [shape: bf16[32,32], index: 10, kind: input, shape index: {}]
  %s11 = inlined_call_operand.vmem [shape: f32[1,32], index: 11, kind: input, shape index: {}]
  %s12 = inlined_call_operand.vmem [shape: bf16[32,128], index: 12, kind: input, shape index: {}]
  %s13 = inlined_call_operand.vmem [shape: bf16[32,128], index: 13, kind: input, shape index: {}]
  %s14 = inlined_call_operand.vmem [shape: f32[1,128], index: 14, kind: input, shape index: {}]
  %s15 = inlined_call_operand.hbm [shape: f32[8,128], index: 15, kind: output, shape index: {}]
  %s16 = sld [smem:[#allocation0]]
  $region70: #{tpu_custom_call.1} parent=0
    _
  %s18 = ssub.s32 1, %s16
  %s19 = scalar_select 0, %s18, %s16
  %v20 = vstv %s5
  %21 = vst [vmem:[#allocation2] sm:$0x1] %v20
  $region1: #{tpu_custom_call.1} parent=0
    #allocation3 [shape = 'u8[4096]{0}', space=vmem, size = 0x1000, scoped, tag = 'output window, operand 0, single buffered']
    #allocation4 [shape = 's32[1]{0}', space=sflag, size = 0x4, scoped, tag = 'scoped memory for tpu_custom_call.1']
    %22 = vsyncpa [#allocation4], 0
    // Predicated region
    $region2: #{tpu_custom_call.1} parent=1 // pred_check
      _
    $region3: #{tpu_custom_call.1} parent=1 // pred_check_branch
      %24 = sbr.rel (0) target = $region5
    $region4: #{tpu_custom_call.1} parent=1 // pred_region
      _
    $region5: #{tpu_custom_call.1} parent=1 // pred_fallthru
      _
    // Predicated region
    $region6: #{tpu_custom_call.1} parent=1 // pred_check
      _
    $region7: #{tpu_custom_call.1} parent=1 // pred_check_branch
      %26 = sbr.rel (0) target = $region9
    $region8: #{tpu_custom_call.1} parent=1 // pred_region
      _
    $region9: #{tpu_custom_call.1} parent=1 // pred_fallthru
      _
    // Predicated region
    $region10: #{tpu_custom_call.1} parent=1 // pred_check
      _
    $region11: #{tpu_custom_call.1} parent=1 // pred_check_branch
      %28 = sbr.rel (0) target = $region13
    $region12: #{tpu_custom_call.1} parent=1 // pred_region
      _
    $region13: #{tpu_custom_call.1} parent=1 // pred_fallthru
      _
    // Predicated region
    $region14: #{tpu_custom_call.1} parent=1 // pred_check
      _
    $region15: #{tpu_custom_call.1} parent=1 // pred_check_branch
      %30 = sbr.rel (0) target = $region17
    $region16: #{tpu_custom_call.1} parent=1 // pred_region
      _
    $region17: #{tpu_custom_call.1} parent=1 // pred_fallthru
      _
    // Predicated region
    $region18: #{tpu_custom_call.1} parent=1 // pred_check
      _
    $region19: #{tpu_custom_call.1} parent=1 // pred_check_branch
      %32 = sbr.rel (0) target = $region21
    $region20: #{tpu_custom_call.1} parent=1 // pred_region
      _
    $region21: #{tpu_custom_call.1} parent=1 // pred_fallthru
      _
    // Predicated region
    $region22: #{tpu_custom_call.1} parent=1 // pred_check
      _
    $region23: #{tpu_custom_call.1} parent=1 // pred_check_branch
      %34 = sbr.rel (0) target = $region25
    $region24: #{tpu_custom_call.1} parent=1 // pred_region
      _
    $region25: #{tpu_custom_call.1} parent=1 // pred_fallthru
      _
    // Predicated region
    $region26: #{tpu_custom_call.1} parent=1 // pred_check
      _
    $region27: #{tpu_custom_call.1} parent=1 // pred_check_branch
      %36 = sbr.rel (0) target = $region29
    $region28: #{tpu_custom_call.1} parent=1 // pred_region
      _
    $region29: #{tpu_custom_call.1} parent=1 // pred_fallthru
      _
    // Predicated region
    $region30: #{tpu_custom_call.1} parent=1 // pred_check
      _
    $region31: #{tpu_custom_call.1} parent=1 // pred_check_branch
      %38 = sbr.rel (0) target = $region33
    $region32: #{tpu_custom_call.1} parent=1 // pred_region
      _
    $region33: #{tpu_custom_call.1} parent=1 // pred_fallthru
      _
    // Predicated region
    $region34: #{tpu_custom_call.1} parent=1 // pred_check
      _
    $region35: #{tpu_custom_call.1} parent=1 // pred_check_branch
      %40 = sbr.rel (0) target = $region37
    $region36: #{tpu_custom_call.1} parent=1 // pred_region
      _
    $region37: #{tpu_custom_call.1} parent=1 // pred_fallthru
      _
    // Predicated region
    $region38: #{tpu_custom_call.1} parent=1 // pred_check
      _
    $region39: #{tpu_custom_call.1} parent=1 // pred_check_branch
      %42 = sbr.rel (0) target = $region41
    $region40: #{tpu_custom_call.1} parent=1 // pred_region
      _
    $region41: #{tpu_custom_call.1} parent=1 // pred_fallthru
      _
    // Predicated region
    $region42: #{tpu_custom_call.1} parent=1 // pred_check
      _
    $region43: #{tpu_custom_call.1} parent=1 // pred_check_branch
      %44 = sbr.rel (0) target = $region45
    $region44: #{tpu_custom_call.1} parent=1 // pred_region
      _
    $region45: #{tpu_custom_call.1} parent=1 // pred_fallthru
      _
    // Predicated region
    $region46: #{tpu_custom_call.1} parent=1 // pred_check
      _
    $region47: #{tpu_custom_call.1} parent=1 // pred_check_branch
      %46 = sbr.rel (0) target = $region49
    $region48: #{tpu_custom_call.1} parent=1 // pred_region
      _
    $region49: #{tpu_custom_call.1} parent=1 // pred_fallthru
      _
    // Predicated region
    $region50: #{tpu_custom_call.1} parent=1 // pred_check
      _
    $region51: #{tpu_custom_call.1} parent=1 // pred_check_branch
      %48 = sbr.rel (0) target = $region53
    $region52: #{tpu_custom_call.1} parent=1 // pred_region
      _
    $region53: #{tpu_custom_call.1} parent=1 // pred_fallthru
      _
    // Predicated region
    $region54: #{tpu_custom_call.1} parent=1 // pred_check
      _
    $region55: #{tpu_custom_call.1} parent=1 // pred_check_branch
      %50 = sbr.rel (0) target = $region57
    $region56: #{tpu_custom_call.1} parent=1 // pred_region
      _
    $region57: #{tpu_custom_call.1} parent=1 // pred_fallthru
      _
    // Predicated region
    $region58: #{tpu_custom_call.1} parent=1 // pred_check
      _
    $region59: #{tpu_custom_call.1} parent=1 // pred_check_branch
      %52 = sbr.rel (0) target = $region61
    $region60: #{tpu_custom_call.1} parent=1 // pred_region
      _
    $region61: #{tpu_custom_call.1} parent=1 // pred_fallthru
      _
    %v55 = vlaneseq
    %v56 = vshrl.u32 %v55, 7
    %v57 = vadd.s32 %v56, 8
    %v58 = vadd.s32 %v56, 16
    %v59 = vadd.s32 %v56, 24
    %v60 = vadd.s32 %v56, 32
    %v61 = vadd.s32 %v56, 40
    %v62 = vadd.s32 %v56, 48
    %v63 = vadd.s32 %v56, 56
    %v64 = vlaneseq
    %v65 = vand.u32 %v64, 127
    %v66 = vmul.u32 %v65, 8
    %vm67 = vcmp.ge.s32.totalorder %v56, %v66
    %vm68 = vcmp.ge.s32.totalorder %v57, %v66
    %vm69 = vcmp.ge.s32.totalorder %v58, %v66
    %vm70 = vcmp.ge.s32.totalorder %v59, %v66
    %vm71 = vcmp.ge.s32.totalorder %v60, %v66
    %vm72 = vcmp.ge.s32.totalorder %v61, %v66
    %vm73 = vcmp.ge.s32.totalorder %v62, %v66
    %vm74 = vcmp.ge.s32.totalorder %v63, %v66
    %v75 = vadd.s32 %v66, 8
    %vm76 = vcmp.lt.s32.totalorder %v56, %v75
    %vm77 = vcmp.lt.s32.totalorder %v57, %v75
    %vm78 = vcmp.lt.s32.totalorder %v58, %v75
    %vm79 = vcmp.lt.s32.totalorder %v59, %v75
    %vm80 = vcmp.lt.s32.totalorder %v60, %v75
    %vm81 = vcmp.lt.s32.totalorder %v61, %v75
    %vm82 = vcmp.lt.s32.totalorder %v62, %v75
    %vm83 = vcmp.lt.s32.totalorder %v63, %v75
    %vm84 = vmand %vm67, %vm76
    %vm85 = vmand %vm68, %vm77
    %vm86 = vmand %vm69, %vm78
    %vm87 = vmand %vm70, %vm79
    %vm88 = vmand %vm71, %vm80
    %vm89 = vmand %vm72, %vm81
    %vm90 = vmand %vm73, %vm82
    %vm91 = vmand %vm74, %vm83
    %v92 = vsel %vm84, 1.0, 0.0
    %v93 = vsel %vm85, 1.0, 0.0
    %v94 = vsel %vm86, 1.0, 0.0
    %v95 = vsel %vm87, 1.0, 0.0
    %v96 = vsel %vm88, 1.0, 0.0
    %v97 = vsel %vm89, 1.0, 0.0
    %v98 = vsel %vm90, 1.0, 0.0
    %v99 = vsel %vm91, 1.0, 0.0
    %v100 = vmul.u32 %v56, 8
    %vm101 = vcmp.ge.s32.totalorder %v65, %v100
    %v102 = vadd.s32 %v100, 8
    %vm103 = vcmp.lt.s32.totalorder %v65, %v102
    %vm104 = vmand %vm101, %vm103
    %v105 = vsel %vm104, 0.125, 0.0
    %v106 = vpack.c.bf16 %v105, %v105
    %v107 = vmul.u32 %v56, 4
    %vm108 = vcmp.ge.s32.totalorder %v65, %v107
    %v109 = vadd.s32 %v107, 4
    %vm110 = vcmp.lt.s32.totalorder %v65, %v109
    %vm111 = vmand %vm108, %vm110
    %v112 = vsel %vm111, 0.25, 0.0
    %v113 = vpack.c.bf16 %v112, %v112
    %v114 = vld [vmem:[%s2] sm:$0xf]
    %v115 = vld [vmem:[%s2 + $0x4] sm:$0xf]
    %v116 = vld [vmem:[%s2 + $0x8] sm:$0xf]
    %v117 = vld [vmem:[%s2 + $0xc] sm:$0xf]
    %v118 = vld [vmem:[%s2 + $0x10] sm:$0xf]
    %v119 = vld [vmem:[%s2 + $0x14] sm:$0xf]
    %v120 = vld [vmem:[%s2 + $0x18] sm:$0xf]
    %v121 = vld [vmem:[%s2 + $0x1c] sm:$0xf]
    %130 = vrot.lane.b32.xlu0 %v114, 112
    %v131 = vpop.permute.xlu0 %130
    %132 = vrot.lane.b32.xlu0 %v115, 112
    %v133 = vpop.permute.xlu0 %132
    %134 = vrot.lane.b32.xlu0 %v116, 112
    %v135 = vpop.permute.xlu0 %134
    %136 = vrot.lane.b32.xlu0 %v117, 112
    %v137 = vpop.permute.xlu0 %136
    %138 = vrot.lane.b32.xlu0 %v118, 112
    %v139 = vpop.permute.xlu0 %138
    %140 = vrot.lane.b32.xlu0 %v119, 112
    %v141 = vpop.permute.xlu0 %140
    %142 = vrot.lane.b32.xlu0 %v120, 112
    %v143 = vpop.permute.xlu0 %142
    %144 = vrot.lane.b32.xlu0 %v121, 112
    %v145 = vpop.permute.xlu0 %144
    %v154 = vmax.bf16 %v114, %v131
    %v155 = vmax.bf16 %v115, %v133
    %v156 = vmax.bf16 %v116, %v135
    %v157 = vmax.bf16 %v117, %v137
    %v158 = vmax.bf16 %v118, %v139
    %v159 = vmax.bf16 %v119, %v141
    %v160 = vmax.bf16 %v120, %v143
    %v161 = vmax.bf16 %v121, %v145
    %v162 = vunpack.c.l.bf16 %v154
    %v163 = vunpack.c.l.bf16 %v155
    %v164 = vunpack.c.l.bf16 %v156
    %v165 = vunpack.c.l.bf16 %v157
    %v166 = vunpack.c.l.bf16 %v158
    %v167 = vunpack.c.l.bf16 %v159
    %v168 = vunpack.c.l.bf16 %v160
    %v169 = vunpack.c.l.bf16 %v161
    %v170 = vld [vmem:[%s4] sm:$0x1]
    %v172 = vlaneseq
    %v173 = vshrl.u32 %v172, 7
    %v174 = vsub.s32 0, %v173
    %v175 = vrot.slane %v170, %v174
    %v177 = vmul.f32 %v162, %v175
    %v178 = vmul.f32 %v163, %v175
    %v179 = vmul.f32 %v164, %v175
    %v180 = vmul.f32 %v165, %v175
    %v181 = vmul.f32 %v166, %v175
    %v182 = vmul.f32 %v167, %v175
    %v183 = vmul.f32 %v168, %v175
    %v184 = vmul.f32 %v169, %v175
    %vm185 = vcmask 130048
    %v186 = vsel %vm185, %v177, 0.0
    %187 = vadd.xlane.f32.xlu0 %v186
    %v188 = vpop.xlane.xlu0 %187
    %v189 = vsel %vm185, %v178, 0.0
    %190 = vadd.xlane.f32.xlu0 %v189
    %v191 = vpop.xlane.xlu0 %190
    %v192 = vsel %vm185, %v179, 0.0
    %193 = vadd.xlane.f32.xlu0 %v192
    %v194 = vpop.xlane.xlu0 %193
    %v195 = vsel %vm185, %v180, 0.0
    %196 = vadd.xlane.f32.xlu0 %v195
    %v197 = vpop.xlane.xlu0 %196
    %v198 = vsel %vm185, %v181, 0.0
    %199 = vadd.xlane.f32.xlu0 %v198
    %v200 = vpop.xlane.xlu0 %199
    %v201 = vsel %vm185, %v182, 0.0
    %202 = vadd.xlane.f32.xlu0 %v201
    %v203 = vpop.xlane.xlu0 %202
    %v204 = vsel %vm185, %v183, 0.0
    %205 = vadd.xlane.f32.xlu0 %v204
    %v206 = vpop.xlane.xlu0 %205
    %v207 = vsel %vm185, %v184, 0.0
    %208 = vadd.xlane.f32.xlu0 %v207
    %v209 = vpop.xlane.xlu0 %208
    %v210 = vld [vmem:[#allocation2] sm:$0x1]
    %v212 = vlaneseq
    %v213 = vshrl.u32 %v212, 7
    %v214 = vsub.s32 0, %v213
    %v215 = vrot.slane %v210, %v214
    %v217 = vadd.f32 %v188, %v215
    %v218 = vadd.f32 %v191, %v215
    %v219 = vadd.f32 %v194, %v215
    %v220 = vadd.f32 %v197, %v215
    %v221 = vadd.f32 %v200, %v215
    %v222 = vadd.f32 %v203, %v215
    %v223 = vadd.f32 %v206, %v215
    %v224 = vadd.f32 %v209, %v215
    %v225 = vpack.c.bf16 %v218, %v217
    %v226 = vpack.c.bf16 %v220, %v219
    %v227 = vpack.c.bf16 %v222, %v221
    %v228 = vpack.c.bf16 %v224, %v223
    %v229 = vxor.u32 %v225, 2147516416
    %v230 = vxor.u32 %v226, 2147516416
    %v231 = vxor.u32 %v227, 2147516416
    %v232 = vxor.u32 %v228, 2147516416
    %v234 = vmul.bf16 %v229, 1069105081
    %v235 = vpow.bf16.pop %v234
    %v237 = vmul.bf16 %v230, 1069105081
    %v238 = vpow.bf16.pop %v237
    %v240 = vmul.bf16 %v231, 1069105081
    %v241 = vpow.bf16.pop %v240
    %v243 = vmul.bf16 %v232, 1069105081
    %v244 = vpow.bf16.pop %v243
    %v245 = vadd.bf16 %v235, 1065369472
    %v246 = vadd.bf16 %v238, 1065369472
    %v247 = vadd.bf16 %v241, 1065369472
    %v248 = vadd.bf16 %v244, 1065369472
    %v249 = vrcp.bf16.pop %v245
    %v250 = vmul.bf16 1065369472, %v249
    %v251 = vrcp.bf16.pop %v246
    %v252 = vmul.bf16 1065369472, %v251
    %v253 = vrcp.bf16.pop %v247
    %v254 = vmul.bf16 1065369472, %v253
    %v255 = vrcp.bf16.pop %v248
    %v256 = vmul.bf16 1065369472, %v255
    %v257 = vld [vmem:[%s0] sm:$0xf]
    %v258 = vld [vmem:[%s0 + $0x4] sm:$0xf]
    %v259 = vld [vmem:[%s0 + $0x8] sm:$0xf]
    %v260 = vld [vmem:[%s0 + $0xc] sm:$0xf]
    %v261 = vld [vmem:[%s0 + $0x10] sm:$0xf]
    %v262 = vld [vmem:[%s0 + $0x14] sm:$0xf]
    %v263 = vld [vmem:[%s0 + $0x18] sm:$0xf]
    %v264 = vld [vmem:[%s0 + $0x1c] sm:$0xf]
    %266 = vset.pattern.permute.xlu0 0
    %267 = vperm.xlu0 %266, %v250
    %v268 = vpop.permute.xlu0 %267
    %270 = vset.pattern.permute.xlu0 0
    %271 = vperm.xlu0 %270, %v252
    %v272 = vpop.permute.xlu0 %271
    %274 = vset.pattern.permute.xlu0 0
    %275 = vperm.xlu0 %274, %v254
    %v276 = vpop.permute.xlu0 %275
    %278 = vset.pattern.permute.xlu0 0
    %279 = vperm.xlu0 %278, %v256
    %v280 = vpop.permute.xlu0 %279
    %v286 = vunpack.c.l.s4 839922192
    %v287 = vunpack.c.0.s8 %v286
    %v288 = vlaneseq
    %v289 = vshrl.u32 %v288, 7
    %v290 = vsub.s32 %v287, %v289
    %v291 = vrot.slane %v268, %v290
    %v293 = vunpack.c.l.s4 1985246804
    %v294 = vunpack.c.0.s8 %v293
    %v295 = vlaneseq
    %v296 = vshrl.u32 %v295, 7
    %v297 = vsub.s32 %v294, %v296
    %v298 = vrot.slane %v268, %v297
    %v300 = vunpack.c.l.s4 839922192
    %v301 = vunpack.c.0.s8 %v300
    %v302 = vlaneseq
    %v303 = vshrl.u32 %v302, 7
    %v304 = vsub.s32 %v301, %v303
    %v305 = vrot.slane %v272, %v304
    %v307 = vunpack.c.l.s4 1985246804
    %v308 = vunpack.c.0.s8 %v307
    %v309 = vlaneseq
    %v310 = vshrl.u32 %v309, 7
    %v311 = vsub.s32 %v308, %v310
    %v312 = vrot.slane %v272, %v311
    %v314 = vunpack.c.l.s4 839922192
    %v315 = vunpack.c.0.s8 %v314
    %v316 = vlaneseq
    %v317 = vshrl.u32 %v316, 7
    %v318 = vsub.s32 %v315, %v317
    %v319 = vrot.slane %v276, %v318
    %v321 = vunpack.c.l.s4 1985246804
    %v322 = vunpack.c.0.s8 %v321
    %v323 = vlaneseq
    %v324 = vshrl.u32 %v323, 7
    %v325 = vsub.s32 %v322, %v324
    %v326 = vrot.slane %v276, %v325
    %v328 = vunpack.c.l.s4 839922192
    %v329 = vunpack.c.0.s8 %v328
    %v330 = vlaneseq
    %v331 = vshrl.u32 %v330, 7
    %v332 = vsub.s32 %v329, %v331
    %v333 = vrot.slane %v280, %v332
    %v335 = vunpack.c.l.s4 1985246804
    %v336 = vunpack.c.0.s8 %v335
    %v337 = vlaneseq
    %v338 = vshrl.u32 %v337, 7
    %v339 = vsub.s32 %v336, %v338
    %v340 = vrot.slane %v280, %v339
    %v349 = vmul.bf16 %v257, %v291
    %v350 = vmul.bf16 %v258, %v298
    %v351 = vmul.bf16 %v259, %v305
    %v352 = vmul.bf16 %v260, %v312
    %v353 = vmul.bf16 %v261, %v319
    %v354 = vmul.bf16 %v262, %v326
    %v355 = vmul.bf16 %v263, %v333
    %v356 = vmul.bf16 %v264, %v340
    %v357 = vld [vmem:[%s6] sm:$0xf]
    %v358 = vld [vmem:[%s6 + $0x4] sm:$0xf]
    %v359 = vld [vmem:[%s6 + $0x8] sm:$0xf]
    %v360 = vld [vmem:[%s6 + $0xc] sm:$0xf]
    %v361 = vld [vmem:[%s1] sm:$0xf]
    %v362 = vld [vmem:[%s1 + $0x4] sm:$0xf]
    %v363 = vld [vmem:[%s1 + $0x8] sm:$0xf]
    %v364 = vld [vmem:[%s1 + $0xc] sm:$0xf]
    %v369 = vunpack.c.l.b16 %v361
    %v370 = vunpack.c.l.b16 %v362
    %v371 = vunpack.c.l.b16 %v363
    %v372 = vunpack.c.l.b16 %v364
    %v373 = vpack.c.b16 %v370, %v369
    %v374 = vpack.c.b16 %v372, %v371
    %vm377 = vcmask 261120
    %v379 = vsel %vm377, %v113, 0
    %381 = vmatprep.subr.bf16.mxu0 0
    %382 = vmatpush1.bf16.msra.mxu0 0
    %383 = vmatprep.subr.bf16.mxu0 0
    %384 = vmatpush1.bf16.msra.mxu0 0
    %385 = vmatprep.subr.bf16.mxu0 0
    %386 = vmatpush1.bf16.msra.mxu0 0
    %387 = vmatprep.subr.bf16.mxu0 0
    %388 = vmatpush1.bf16.msra.mxu0 0
    %389 = vmatprep.subr.bf16.mxu0 0
    %390 = vmatpush1.bf16.msra.mxu0 0
    %391 = vmatprep.subr.bf16.mxu0 0
    %392 = vmatpush1.bf16.msra.mxu0 0
    %393 = vmatprep.subr.bf16.mxu0 0
    %394 = vmatpush1.bf16.msra.mxu0 %v374
    %395 = vmatprep.subr.bf16.mxu0 0
    %396 = vmatpush1.bf16.msra.mxu0 %v373
    %397 = vmatprep.subr.bf16.mxu0 0
    %398 = vmatpush2.bf16.msra.mxu0 0
    %399 = vmatprep.subr.bf16.mxu0 0
    %400 = vmatpush2.bf16.msra.mxu0 0
    %401 = vmatprep.subr.bf16.mxu0 0
    %402 = vmatpush2.bf16.msra.mxu0 0
    %403 = vmatprep.subr.bf16.mxu0 0
    %404 = vmatpush2.bf16.msra.mxu0 0
    %405 = vmatprep.subr.bf16.mxu0 0
    %406 = vmatpush2.bf16.msra.mxu0 0
    %407 = vmatprep.subr.bf16.mxu0 0
    %408 = vmatpush2.bf16.msra.mxu0 0
    %409 = vmatprep.subr.bf16.mxu0 0
    %410 = vmatpush2.bf16.msra.mxu0 0
    %411 = vmatprep.subr.bf16.mxu0 0
    %412 = vmatpush2.bf16.msra.mxu0 0
    %413 = vmatprep.mubr.bf16.mxu0 0
    %414 = vmatmul.mubr.bf16.gmra.mxu0 %v379
    %v415 = vpop.f32.mrf.mxu0
    %v416 = vadd.f32 0.0, %v415
    %v417 = vpop.f32.mrf.mxu0
    %v418 = vpop.f32.mrf.mxu0
    %v419 = vpop.f32.mrf.mxu0
    %420 = vdwg.mxu0
    %v421 = vpack.c.bf16 %v416, %v416
    %v422 = vld [vmem:[%s7] sm:$0xf]
    %v423 = vld [vmem:[%s7 + $0x4] sm:$0xf]
    %v424 = vld [vmem:[%s7 + $0x8] sm:$0xf]
    %v425 = vld [vmem:[%s7 + $0xc] sm:$0xf]
    %v430 = vunpack.c.l.b16 %v422
    %v431 = vunpack.c.l.b16 %v423
    %v432 = vunpack.c.l.b16 %v424
    %v433 = vunpack.c.l.b16 %v425
    %v434 = vpack.c.b16 %v431, %v430
    %v435 = vpack.c.b16 %v433, %v432
    %v439 = vsel %vm377, %v421, 0
    %441 = vmatprep.subr.bf16.mxu0 0
    %442 = vmatpush1.bf16.msra.mxu0 0
    %443 = vmatprep.subr.bf16.mxu0 0
    %444 = vmatpush1.bf16.msra.mxu0 0
    %445 = vmatprep.subr.bf16.mxu0 0
    %446 = vmatpush1.bf16.msra.mxu0 0
    %447 = vmatprep.subr.bf16.mxu0 0
    %448 = vmatpush1.bf16.msra.mxu0 0
    %449 = vmatprep.subr.bf16.mxu0 0
    %450 = vmatpush1.bf16.msra.mxu0 0
    %451 = vmatprep.subr.bf16.mxu0 0
    %452 = vmatpush1.bf16.msra.mxu0 0
    %453 = vmatprep.subr.bf16.mxu0 0
    %454 = vmatpush1.bf16.msra.mxu0 %v435
    %455 = vmatprep.subr.bf16.mxu0 0
    %456 = vmatpush1.bf16.msra.mxu0 %v434
    %457 = vmatprep.subr.bf16.mxu0 0
    %458 = vmatpush2.bf16.msra.mxu0 0
    %459 = vmatprep.subr.bf16.mxu0 0
    %460 = vmatpush2.bf16.msra.mxu0 0
    %461 = vmatprep.subr.bf16.mxu0 0
    %462 = vmatpush2.bf16.msra.mxu0 0
    %463 = vmatprep.subr.bf16.mxu0 0
    %464 = vmatpush2.bf16.msra.mxu0 0
    %465 = vmatprep.subr.bf16.mxu0 0
    %466 = vmatpush2.bf16.msra.mxu0 0
    %467 = vmatprep.subr.bf16.mxu0 0
    %468 = vmatpush2.bf16.msra.mxu0 0
    %469 = vmatprep.subr.bf16.mxu0 0
    %470 = vmatpush2.bf16.msra.mxu0 0
    %471 = vmatprep.subr.bf16.mxu0 0
    %472 = vmatpush2.bf16.msra.mxu0 0
    %473 = vmatprep.mubr.bf16.mxu0 0
    %474 = vmatmul.mubr.bf16.gmra.mxu0 %v439
    %v475 = vpop.f32.mrf.mxu0
    %v476 = vadd.f32 0.0, %v475
    %v477 = vpop.f32.mrf.mxu0
    %v478 = vpop.f32.mrf.mxu0
    %v479 = vpop.f32.mrf.mxu0
    %480 = vdwg.mxu0
    %vm481 = vcmask 64512
    %v483 = vsel %vm481, %v92, 0
    %v486 = vsel %vm481, %v93, 0
    %v489 = vsel %vm481, %v94, 0
    %v492 = vsel %vm481, %v95, 0
    %v495 = vsel %vm481, %v96, 0
    %v498 = vsel %vm481, %v97, 0
    %v501 = vsel %vm481, %v98, 0
    %v504 = vsel %vm481, %v99, 0
    %506 = vmatprep.subr.mxu0 0.0
    %507 = vmatpush1.msra.mxu0 0.0
    %508 = vmatprep.subr.mxu0 0.0
    %509 = vmatpush1.msra.mxu0 0.0
    %510 = vmatprep.subr.mxu0 0.0
    %511 = vmatpush1.msra.mxu0 0.0
    %512 = vmatprep.subr.mxu0 0.0
    %513 = vmatpush1.msra.mxu0 0.0
    %514 = vmatprep.subr.mxu0 0.0
    %515 = vmatpush1.msra.mxu0 0.0
    %516 = vmatprep.subr.mxu0 0.0
    %517 = vmatpush1.msra.mxu0 0.0
    %518 = vmatprep.subr.mxu0 0.0
    %519 = vmatpush1.msra.mxu0 0.0
    %520 = vmatprep.subr.mxu0 0.0
    %521 = vmatpush1.msra.mxu0 0.0
    %522 = vmatprep.subr.mxu0 0.0
    %523 = vmatpush1.msra.mxu0 0.0
    %524 = vmatprep.subr.mxu0 0.0
    %525 = vmatpush1.msra.mxu0 0.0
    %526 = vmatprep.subr.mxu0 0.0
    %527 = vmatpush1.msra.mxu0 0.0
    %528 = vmatprep.subr.mxu0 0.0
    %529 = vmatpush1.msra.mxu0 0.0
    %530 = vmatprep.subr.mxu0 0.0
    %531 = vmatpush1.msra.mxu0 0.0
    %532 = vmatprep.subr.mxu0 0.0
    %533 = vmatpush1.msra.mxu0 0.0
    %534 = vmatprep.subr.mxu0 0.0
    %535 = vmatpush1.msra.mxu0 0.0
    %536 = vmatprep.subr.mxu0 0.0
    %537 = vmatpush1.msra.mxu0 %v476
    %538 = vmatprep.subr.mxu0 0.0
    %539 = vmatpush2.msra.mxu0 0.0
    %540 = vmatprep.subr.mxu0 0.0
    %541 = vmatpush2.msra.mxu0 0.0
    %542 = vmatprep.subr.mxu0 0.0
    %543 = vmatpush2.msra.mxu0 0.0
    %544 = vmatprep.subr.mxu0 0.0
    %545 = vmatpush2.msra.mxu0 0.0
    %546 = vmatprep.subr.mxu0 0.0
    %547 = vmatpush2.msra.mxu0 0.0
    %548 = vmatprep.subr.mxu0 0.0
    %549 = vmatpush2.msra.mxu0 0.0
    %550 = vmatprep.subr.mxu0 0.0
    %551 = vmatpush2.msra.mxu0 0.0
    %552 = vmatprep.subr.mxu0 0.0
    %553 = vmatpush2.msra.mxu0 0.0
    %554 = vmatprep.subr.mxu0 0.0
    %555 = vmatpush2.msra.mxu0 0.0
    %556 = vmatprep.subr.mxu0 0.0
    %557 = vmatpush2.msra.mxu0 0.0
    %558 = vmatprep.subr.mxu0 0.0
    %559 = vmatpush2.msra.mxu0 0.0
    %560 = vmatprep.subr.mxu0 0.0
    %561 = vmatpush2.msra.mxu0 0.0
    %562 = vmatprep.subr.mxu0 0.0
    %563 = vmatpush2.msra.mxu0 0.0
    %564 = vmatprep.subr.mxu0 0.0
    %565 = vmatpush2.msra.mxu0 0.0
    %566 = vmatprep.subr.mxu0 0.0
    %567 = vmatpush2.msra.mxu0 0.0
    %568 = vmatprep.subr.mxu0 0.0
    %569 = vmatpush2.msra.mxu0 0.0
    %570 = vmatprep.mubr.f32.mxu0 0.0
    %571 = vmatmul.mubr.f32.gmra.mxu0 %v483
    %v572 = vpop.f32.mrf.mxu0
    %v573 = vadd.f32 0.0, %v572
    %v574 = vpop.f32.mrf.mxu0
    %575 = vmatprep.mubr.f32.mxu0 0.0
    %576 = vmatmul.mubr.f32.gmra.mxu0 %v486
    %v577 = vpop.f32.mrf.mxu0
    %v578 = vadd.f32 0.0, %v577
    %v579 = vpop.f32.mrf.mxu0
    %580 = vmatprep.mubr.f32.mxu0 0.0
    %581 = vmatmul.mubr.f32.gmra.mxu0 %v489
    %v582 = vpop.f32.mrf.mxu0
    %v583 = vadd.f32 0.0, %v582
    %v584 = vpop.f32.mrf.mxu0
    %585 = vmatprep.mubr.f32.mxu0 0.0
    %586 = vmatmul.mubr.f32.gmra.mxu0 %v492
    %v587 = vpop.f32.mrf.mxu0
    %v588 = vadd.f32 0.0, %v587
    %v589 = vpop.f32.mrf.mxu0
    %590 = vmatprep.mubr.f32.mxu0 0.0
    %591 = vmatmul.mubr.f32.gmra.mxu0 %v495
    %v592 = vpop.f32.mrf.mxu0
    %v593 = vadd.f32 0.0, %v592
    %v594 = vpop.f32.mrf.mxu0
    %595 = vmatprep.mubr.f32.mxu0 0.0
    %596 = vmatmul.mubr.f32.gmra.mxu0 %v498
    %v597 = vpop.f32.mrf.mxu0
    %v598 = vadd.f32 0.0, %v597
    %v599 = vpop.f32.mrf.mxu0
    %600 = vmatprep.mubr.f32.mxu0 0.0
    %601 = vmatmul.mubr.f32.gmra.mxu0 %v501
    %v602 = vpop.f32.mrf.mxu0
    %v603 = vadd.f32 0.0, %v602
    %v604 = vpop.f32.mrf.mxu0
    %605 = vmatprep.mubr.f32.mxu0 0.0
    %606 = vmatmul.mubr.f32.gmra.mxu0 %v504
    %v607 = vpop.f32.mrf.mxu0
    %v608 = vadd.f32 0.0, %v607
    %v609 = vpop.f32.mrf.mxu0
    %610 = vdwg.mxu0
    %v619 = vunpack.c.l.b16 %v349
    %v620 = vunpack.c.l.b16 %v350
    %v621 = vunpack.c.l.b16 %v351
    %v622 = vunpack.c.l.b16 %v352
    %v623 = vunpack.c.l.b16 %v353
    %v624 = vunpack.c.l.b16 %v354
    %v625 = vunpack.c.l.b16 %v355
    %v626 = vunpack.c.l.b16 %v356
    %v627 = vpack.c.b16 %v620, %v619
    %v628 = vpack.c.b16 %v622, %v621
    %v629 = vpack.c.b16 %v624, %v623
    %v630 = vpack.c.b16 %v626, %v625
    %v635 = vunpack.c.l.b16 %v357
    %v636 = vunpack.c.l.b16 %v358
    %v637 = vunpack.c.l.b16 %v359
    %v638 = vunpack.c.l.b16 %v360
    %v639 = vpack.c.b16 %v636, %v635
    %v640 = vpack.c.b16 %v638, %v637
    %v644 = vsel %vm377, %v627, 0
    %v647 = vsel %vm377, %v628, 0
    %v650 = vsel %vm377, %v629, 0
    %v653 = vsel %vm377, %v630, 0
    %655 = vmatprep.subr.bf16.mxu0 0
    %656 = vmatpush1.bf16.msra.mxu0 0
    %657 = vmatprep.subr.bf16.mxu0 0
    %658 = vmatpush1.bf16.msra.mxu0 0
    %659 = vmatprep.subr.bf16.mxu0 0
    %660 = vmatpush1.bf16.msra.mxu0 0
    %661 = vmatprep.subr.bf16.mxu0 0
    %662 = vmatpush1.bf16.msra.mxu0 0
    %663 = vmatprep.subr.bf16.mxu0 0
    %664 = vmatpush1.bf16.msra.mxu0 0
    %665 = vmatprep.subr.bf16.mxu0 0
    %666 = vmatpush1.bf16.msra.mxu0 0
    %667 = vmatprep.subr.bf16.mxu0 0
    %668 = vmatpush1.bf16.msra.mxu0 %v640
    %669 = vmatprep.subr.bf16.mxu0 0
    %670 = vmatpush1.bf16.msra.mxu0 %v639
    %671 = vmatprep.subr.bf16.mxu0 0
    %672 = vmatpush2.bf16.msra.mxu0 0
    %673 = vmatprep.subr.bf16.mxu0 0
    %674 = vmatpush2.bf16.msra.mxu0 0
    %675 = vmatprep.subr.bf16.mxu0 0
    %676 = vmatpush2.bf16.msra.mxu0 0
    %677 = vmatprep.subr.bf16.mxu0 0
    %678 = vmatpush2.bf16.msra.mxu0 0
    %679 = vmatprep.subr.bf16.mxu0 0
    %680 = vmatpush2.bf16.msra.mxu0 0
    %681 = vmatprep.subr.bf16.mxu0 0
    %682 = vmatpush2.bf16.msra.mxu0 0
    %683 = vmatprep.subr.bf16.mxu0 0
    %684 = vmatpush2.bf16.msra.mxu0 0
    %685 = vmatprep.subr.bf16.mxu0 0
    %686 = vmatpush2.bf16.msra.mxu0 0
    %687 = vmatprep.mubr.bf16.mxu0 0
    %688 = vmatmul.mubr.bf16.gmra.mxu0 %v644
    %v689 = vpop.f32.mrf.mxu0
    %v690 = vadd.f32 %v573, %v689
    %v691 = vpop.f32.mrf.mxu0
    %v692 = vpop.f32.mrf.mxu0
    %v693 = vadd.f32 %v578, %v692
    %v694 = vpop.f32.mrf.mxu0
    %695 = vmatprep.mubr.bf16.mxu0 0
    %696 = vmatmul.mubr.bf16.gmra.mxu0 %v647
    %v697 = vpop.f32.mrf.mxu0
    %v698 = vadd.f32 %v583, %v697
    %v699 = vpop.f32.mrf.mxu0
    %v700 = vpop.f32.mrf.mxu0
    %v701 = vadd.f32 %v588, %v700
    %v702 = vpop.f32.mrf.mxu0
    %703 = vmatprep.mubr.bf16.mxu0 0
    %704 = vmatmul.mubr.bf16.gmra.mxu0 %v650
    %v705 = vpop.f32.mrf.mxu0
    %v706 = vadd.f32 %v593, %v705
    %v707 = vpop.f32.mrf.mxu0
    %v708 = vpop.f32.mrf.mxu0
    %v709 = vadd.f32 %v598, %v708
    %v710 = vpop.f32.mrf.mxu0
    %711 = vmatprep.mubr.bf16.mxu0 0
    %712 = vmatmul.mubr.bf16.gmra.mxu0 %v653
    %v713 = vpop.f32.mrf.mxu0
    %v714 = vadd.f32 %v603, %v713
    %v715 = vpop.f32.mrf.mxu0
    %v716 = vpop.f32.mrf.mxu0
    %v717 = vadd.f32 %v608, %v716
    %v718 = vpop.f32.mrf.mxu0
    %719 = vdwg.mxu0
    %v720 = vld [vmem:[%s8] sm:$0x1]
    %v722 = vlaneseq
    %v723 = vshrl.u32 %v722, 7
    %v724 = vsub.s32 0, %v723
    %v725 = vrot.slane %v720, %v724
    %v727 = vadd.f32 %v690, %v725
    %v728 = vadd.f32 %v693, %v725
    %v729 = vadd.f32 %v698, %v725
    %v730 = vadd.f32 %v701, %v725
    %v731 = vadd.f32 %v706, %v725
    %v732 = vadd.f32 %v709, %v725
    %v733 = vadd.f32 %v714, %v725
    %v734 = vadd.f32 %v717, %v725
    %v735 = vpack.c.bf16 %v728, %v727
    %v736 = vpack.c.bf16 %v730, %v729
    %v737 = vpack.c.bf16 %v732, %v731
    %v738 = vpack.c.bf16 %v734, %v733
    %v739 = vtanh.bf16.pop %v735
    %v740 = vtanh.bf16.pop %v736
    %v741 = vtanh.bf16.pop %v737
    %v742 = vtanh.bf16.pop %v738
    %v743 = vld [vmem:[%s9] sm:$0x1]
    %v744 = vunpack.c.l.bf16 %v739
    %v745 = vunpack.c.h.bf16 %v739
    %v746 = vunpack.c.l.bf16 %v740
    %v747 = vunpack.c.h.bf16 %v740
    %v748 = vunpack.c.l.bf16 %v741
    %v749 = vunpack.c.h.bf16 %v741
    %v750 = vunpack.c.l.bf16 %v742
    %v751 = vunpack.c.h.bf16 %v742
    %v753 = vlaneseq
    %v754 = vshrl.u32 %v753, 7
    %v755 = vsub.s32 0, %v754
    %v756 = vrot.slane %v743, %v755
    %v758 = vmul.f32 %v744, %v756
    %v759 = vmul.f32 %v745, %v756
    %v760 = vmul.f32 %v746, %v756
    %v761 = vmul.f32 %v747, %v756
    %v762 = vmul.f32 %v748, %v756
    %v763 = vmul.f32 %v749, %v756
    %v764 = vmul.f32 %v750, %v756
    %v765 = vmul.f32 %v751, %v756
    %v766 = vsel %vm377, %v758, 0.0
    %767 = vadd.xlane.f32.xlu0 %v766
    %v768 = vpop.xlane.xlu0 %767
    %v769 = vsel %vm377, %v759, 0.0
    %770 = vadd.xlane.f32.xlu0 %v769
    %v771 = vpop.xlane.xlu0 %770
    %v772 = vsel %vm377, %v760, 0.0
    %773 = vadd.xlane.f32.xlu0 %v772
    %v774 = vpop.xlane.xlu0 %773
    %v775 = vsel %vm377, %v761, 0.0
    %776 = vadd.xlane.f32.xlu0 %v775
    %v777 = vpop.xlane.xlu0 %776
    %v778 = vsel %vm377, %v762, 0.0
    %779 = vadd.xlane.f32.xlu0 %v778
    %v780 = vpop.xlane.xlu0 %779
    %v781 = vsel %vm377, %v763, 0.0
    %782 = vadd.xlane.f32.xlu0 %v781
    %v783 = vpop.xlane.xlu0 %782
    %v784 = vsel %vm377, %v764, 0.0
    %785 = vadd.xlane.f32.xlu0 %v784
    %v786 = vpop.xlane.xlu0 %785
    %v787 = vsel %vm377, %v765, 0.0
    %788 = vadd.xlane.f32.xlu0 %v787
    %v789 = vpop.xlane.xlu0 %788
    %vm790 = vcmp.gt.f32.partialorder %v92, 0.5
    %vm791 = vcmp.gt.f32.partialorder %v93, 0.5
    %vm792 = vcmp.gt.f32.partialorder %v94, 0.5
    %vm793 = vcmp.gt.f32.partialorder %v95, 0.5
    %vm794 = vcmp.gt.f32.partialorder %v96, 0.5
    %vm795 = vcmp.gt.f32.partialorder %v97, 0.5
    %vm796 = vcmp.gt.f32.partialorder %v98, 0.5
    %vm797 = vcmp.gt.f32.partialorder %v99, 0.5
    %v798 = vsel %vm790, %v768, -1e+30
    %v799 = vsel %vm791, %v771, -1e+30
    %v800 = vsel %vm792, %v774, -1e+30
    %v801 = vsel %vm793, %v777, -1e+30
    %v802 = vsel %vm794, %v780, -1e+30
    %v803 = vsel %vm795, %v783, -1e+30
    %v804 = vsel %vm796, %v786, -1e+30
    %v805 = vsel %vm797, %v789, -1e+30
    %v806 = vsel %vm481, %v798, -inf
    %v807 = vsel %vm481, %v799, -inf
    %v808 = vsel %vm481, %v800, -inf
    %v809 = vsel %vm481, %v801, -inf
    %v810 = vsel %vm481, %v802, -inf
    %v811 = vmax.f32 %v806, %v810
    %v812 = vsel %vm481, %v803, -inf
    %v813 = vmax.f32 %v807, %v812
    %v814 = vsel %vm481, %v804, -inf
    %v815 = vmax.f32 %v808, %v814
    %v816 = vsel %vm481, %v805, -inf
    %v817 = vmax.f32 %v809, %v816
    %v818 = vmax.f32 %v811, %v813
    %v819 = vmax.f32 %v815, %v817
    %v820 = vmax.f32 %v818, %v819
    %v821 = vrot.slane %v820, 4
    %v822 = vmax.f32 %v820, %v821
    %v823 = vrot.slane %v822, 2
    %v824 = vmax.f32 %v822, %v823
    %v825 = vrot.slane %v824, 1
    %v826 = vmax.f32 %v824, %v825
    %v827 = vmul.f32 %v92, %v826
    %v828 = vmul.f32 %v93, %v826
    %v829 = vmul.f32 %v94, %v826
    %v830 = vmul.f32 %v95, %v826
    %v831 = vmul.f32 %v96, %v826
    %v832 = vmul.f32 %v97, %v826
    %v833 = vmul.f32 %v98, %v826
    %v834 = vmul.f32 %v99, %v826
    %v835 = vsel %vm481, %v827, 0.0
    %836 = vadd.xlane.f32.xlu0 %v835
    %v837 = vpop.xlane.xlu0 %836
    %v838 = vsel %vm481, %v828, 0.0
    %839 = vadd.xlane.f32.xlu0 %v838
    %v840 = vpop.xlane.xlu0 %839
    %v841 = vsel %vm481, %v829, 0.0
    %842 = vadd.xlane.f32.xlu0 %v841
    %v843 = vpop.xlane.xlu0 %842
    %v844 = vsel %vm481, %v830, 0.0
    %845 = vadd.xlane.f32.xlu0 %v844
    %v846 = vpop.xlane.xlu0 %845
    %v847 = vsel %vm481, %v831, 0.0
    %848 = vadd.xlane.f32.xlu0 %v847
    %v849 = vpop.xlane.xlu0 %848
    %v850 = vsel %vm481, %v832, 0.0
    %851 = vadd.xlane.f32.xlu0 %v850
    %v852 = vpop.xlane.xlu0 %851
    %v853 = vsel %vm481, %v833, 0.0
    %854 = vadd.xlane.f32.xlu0 %v853
    %v855 = vpop.xlane.xlu0 %854
    %v856 = vsel %vm481, %v834, 0.0
    %857 = vadd.xlane.f32.xlu0 %v856
    %v858 = vpop.xlane.xlu0 %857
    %v859 = vsub.f32 %v768, %v837
    %v860 = vsub.f32 %v771, %v840
    %v861 = vsub.f32 %v774, %v843
    %v862 = vsub.f32 %v777, %v846
    %v863 = vsub.f32 %v780, %v849
    %v864 = vsub.f32 %v783, %v852
    %v865 = vsub.f32 %v786, %v855
    %v866 = vsub.f32 %v789, %v858
    %v867 = vmul.f32 %v859, 1.442695
    %v868 = vpow.pop %v867
    %v869 = vmul.f32 %v860, 1.442695
    %v870 = vpow.pop %v869
    %v871 = vmul.f32 %v861, 1.442695
    %v872 = vpow.pop %v871
    %v873 = vmul.f32 %v862, 1.442695
    %v874 = vpow.pop %v873
    %v875 = vmul.f32 %v863, 1.442695
    %v876 = vpow.pop %v875
    %v877 = vmul.f32 %v864, 1.442695
    %v878 = vpow.pop %v877
    %v879 = vmul.f32 %v865, 1.442695
    %v880 = vpow.pop %v879
    %v881 = vmul.f32 %v866, 1.442695
    %v882 = vpow.pop %v881
    %v883 = vmul.f32 %v868, %v92
    %v884 = vmul.f32 %v870, %v93
    %v885 = vmul.f32 %v872, %v94
    %v886 = vmul.f32 %v874, %v95
    %v887 = vmul.f32 %v876, %v96
    %v888 = vmul.f32 %v878, %v97
    %v889 = vmul.f32 %v880, %v98
    %v890 = vmul.f32 %v882, %v99
    %v891 = vsel %vm481, %v883, 0.0
    %v892 = vsel %vm481, %v884, 0.0
    %v893 = vadd.f32 %v891, %v892
    %v894 = vsel %vm481, %v885, 0.0
    %v895 = vadd.f32 %v893, %v894
    %v896 = vsel %vm481, %v886, 0.0
    %v897 = vadd.f32 %v895, %v896
    %v898 = vsel %vm481, %v887, 0.0
    %v899 = vadd.f32 %v897, %v898
    %v900 = vsel %vm481, %v888, 0.0
    %v901 = vadd.f32 %v899, %v900
    %v902 = vsel %vm481, %v889, 0.0
    %v903 = vadd.f32 %v901, %v902
    %v904 = vsel %vm481, %v890, 0.0
    %v905 = vadd.f32 %v903, %v904
    %v906 = vrot.slane %v905, 4
    %v907 = vadd.f32 %v905, %v906
    %v908 = vrot.slane %v907, 2
    %v909 = vadd.f32 %v907, %v908
    %v910 = vrot.slane %v909, 1
    %v911 = vadd.f32 %v909, %v910
    %v912 = vmul.f32 %v92, %v911
    %v913 = vmul.f32 %v93, %v911
    %v914 = vmul.f32 %v94, %v911
    %v915 = vmul.f32 %v95, %v911
    %v916 = vmul.f32 %v96, %v911
    %v917 = vmul.f32 %v97, %v911
    %v918 = vmul.f32 %v98, %v911
    %v919 = vmul.f32 %v99, %v911
    %v920 = vsel %vm481, %v912, 0.0
    %921 = vadd.xlane.f32.xlu0 %v920
    %v922 = vpop.xlane.xlu0 %921
    %v923 = vsel %vm481, %v913, 0.0
    %924 = vadd.xlane.f32.xlu0 %v923
    %v925 = vpop.xlane.xlu0 %924
    %v926 = vsel %vm481, %v914, 0.0
    %927 = vadd.xlane.f32.xlu0 %v926
    %v928 = vpop.xlane.xlu0 %927
    %v929 = vsel %vm481, %v915, 0.0
    %930 = vadd.xlane.f32.xlu0 %v929
    %v931 = vpop.xlane.xlu0 %930
    %v932 = vsel %vm481, %v916, 0.0
    %933 = vadd.xlane.f32.xlu0 %v932
    %v934 = vpop.xlane.xlu0 %933
    %v935 = vsel %vm481, %v917, 0.0
    %936 = vadd.xlane.f32.xlu0 %v935
    %v937 = vpop.xlane.xlu0 %936
    %v938 = vsel %vm481, %v918, 0.0
    %939 = vadd.xlane.f32.xlu0 %v938
    %v940 = vpop.xlane.xlu0 %939
    %v941 = vsel %vm481, %v919, 0.0
    %942 = vadd.xlane.f32.xlu0 %v941
    %v943 = vpop.xlane.xlu0 %942
    %v944 = vrcp.pop %v922
    %v945 = vrcp.pop %v925
    %v946 = vrcp.pop %v928
    %v947 = vrcp.pop %v931
    %v948 = vrcp.pop %v934
    %v949 = vrcp.pop %v937
    %v950 = vrcp.pop %v940
    %v951 = vrcp.pop %v943
    %v952 = vmul.f32 %v868, %v944
    %v953 = vmul.f32 %v870, %v945
    %v954 = vmul.f32 %v872, %v946
    %v955 = vmul.f32 %v874, %v947
    %v956 = vmul.f32 %v876, %v948
    %v957 = vmul.f32 %v878, %v949
    %v958 = vmul.f32 %v880, %v950
    %v959 = vmul.f32 %v882, %v951
    %v960 = vpack.c.bf16 %v953, %v952
    %v961 = vpack.c.bf16 %v955, %v954
    %v962 = vpack.c.bf16 %v957, %v956
    %v963 = vpack.c.bf16 %v959, %v958
    %v969 = vunpack.c.l.s4 839922192
    %v970 = vunpack.c.0.s8 %v969
    %v971 = vlaneseq
    %v972 = vshrl.u32 %v971, 7
    %v973 = vsub.s32 %v970, %v972
    %v974 = vrot.slane %v960, %v973
    %v976 = vunpack.c.l.s4 1985246804
    %v977 = vunpack.c.0.s8 %v976
    %v978 = vlaneseq
    %v979 = vshrl.u32 %v978, 7
    %v980 = vsub.s32 %v977, %v979
    %v981 = vrot.slane %v960, %v980
    %v983 = vunpack.c.l.s4 839922192
    %v984 = vunpack.c.0.s8 %v983
    %v985 = vlaneseq
    %v986 = vshrl.u32 %v985, 7
    %v987 = vsub.s32 %v984, %v986
    %v988 = vrot.slane %v961, %v987
    %v990 = vunpack.c.l.s4 1985246804
    %v991 = vunpack.c.0.s8 %v990
    %v992 = vlaneseq
    %v993 = vshrl.u32 %v992, 7
    %v994 = vsub.s32 %v991, %v993
    %v995 = vrot.slane %v961, %v994
    %v997 = vunpack.c.l.s4 839922192
    %v998 = vunpack.c.0.s8 %v997
    %v999 = vlaneseq
    %v1000 = vshrl.u32 %v999, 7
    %v1001 = vsub.s32 %v998, %v1000
    %v1002 = vrot.slane %v962, %v1001
    %v1004 = vunpack.c.l.s4 1985246804
    %v1005 = vunpack.c.0.s8 %v1004
    %v1006 = vlaneseq
    %v1007 = vshrl.u32 %v1006, 7
    %v1008 = vsub.s32 %v1005, %v1007
    %v1009 = vrot.slane %v962, %v1008
    %v1011 = vunpack.c.l.s4 839922192
    %v1012 = vunpack.c.0.s8 %v1011
    %v1013 = vlaneseq
    %v1014 = vshrl.u32 %v1013, 7
    %v1015 = vsub.s32 %v1012, %v1014
    %v1016 = vrot.slane %v963, %v1015
    %v1018 = vunpack.c.l.s4 1985246804
    %v1019 = vunpack.c.0.s8 %v1018
    %v1020 = vlaneseq
    %v1021 = vshrl.u32 %v1020, 7
    %v1022 = vsub.s32 %v1019, %v1021
    %v1023 = vrot.slane %v963, %v1022
    %v1032 = vmul.bf16 %v349, %v974
    %v1033 = vmul.bf16 %v350, %v981
    %v1034 = vmul.bf16 %v351, %v988
    %v1035 = vmul.bf16 %v352, %v995
    %v1036 = vmul.bf16 %v353, %v1002
    %v1037 = vmul.bf16 %v354, %v1009
    %v1038 = vmul.bf16 %v355, %v1016
    %v1039 = vmul.bf16 %v356, %v1023
    %v1040 = vld [vmem:[%s10] sm:$0xf]
    %v1041 = vld [vmem:[%s10 + $0x4] sm:$0xf]
    %v1042 = vld [vmem:[%s10 + $0x8] sm:$0xf]
    %v1043 = vld [vmem:[%s10 + $0xc] sm:$0xf]
    %v1044 = vld [vmem:[%s11] sm:$0x1]
    %v1046 = vlaneseq
    %v1047 = vshrl.u32 %v1046, 7
    %v1048 = vsub.s32 0, %v1047
    %v1049 = vrot.slane %v1044, %v1048
    %v1059 = vunpack.c.l.b16 %v1032
    %v1060 = vunpack.c.l.b16 %v1033
    %v1061 = vunpack.c.l.b16 %v1034
    %v1062 = vunpack.c.l.b16 %v1035
    %v1063 = vunpack.c.l.b16 %v1036
    %v1064 = vunpack.c.l.b16 %v1037
    %v1065 = vunpack.c.l.b16 %v1038
    %v1066 = vunpack.c.l.b16 %v1039
    %v1067 = vpack.c.b16 %v1060, %v1059
    %v1068 = vpack.c.b16 %v1062, %v1061
    %v1069 = vpack.c.b16 %v1064, %v1063
    %v1070 = vpack.c.b16 %v1066, %v1065
    %v1075 = vunpack.c.l.b16 %v1040
    %v1076 = vunpack.c.l.b16 %v1041
    %v1077 = vunpack.c.l.b16 %v1042
    %v1078 = vunpack.c.l.b16 %v1043
    %v1079 = vpack.c.b16 %v1076, %v1075
    %v1080 = vpack.c.b16 %v1078, %v1077
    %v1084 = vsel %vm377, %v1067, 0
    %v1087 = vsel %vm377, %v1068, 0
    %v1090 = vsel %vm377, %v1069, 0
    %v1093 = vsel %vm377, %v1070, 0
    %1095 = vmatprep.subr.bf16.mxu0 0
    %1096 = vmatpush1.bf16.msra.mxu0 0
    %1097 = vmatprep.subr.bf16.mxu0 0
    %1098 = vmatpush1.bf16.msra.mxu0 0
    %1099 = vmatprep.subr.bf16.mxu0 0
    %1100 = vmatpush1.bf16.msra.mxu0 0
    %1101 = vmatprep.subr.bf16.mxu0 0
    %1102 = vmatpush1.bf16.msra.mxu0 0
    %1103 = vmatprep.subr.bf16.mxu0 0
    %1104 = vmatpush1.bf16.msra.mxu0 0
    %1105 = vmatprep.subr.bf16.mxu0 0
    %1106 = vmatpush1.bf16.msra.mxu0 0
    %1107 = vmatprep.subr.bf16.mxu0 0
    %1108 = vmatpush1.bf16.msra.mxu0 %v1080
    %1109 = vmatprep.subr.bf16.mxu0 0
    %1110 = vmatpush1.bf16.msra.mxu0 %v1079
    %1111 = vmatprep.subr.bf16.mxu0 0
    %1112 = vmatpush2.bf16.msra.mxu0 0
    %1113 = vmatprep.subr.bf16.mxu0 0
    %1114 = vmatpush2.bf16.msra.mxu0 0
    %1115 = vmatprep.subr.bf16.mxu0 0
    %1116 = vmatpush2.bf16.msra.mxu0 0
    %1117 = vmatprep.subr.bf16.mxu0 0
    %1118 = vmatpush2.bf16.msra.mxu0 0
    %1119 = vmatprep.subr.bf16.mxu0 0
    %1120 = vmatpush2.bf16.msra.mxu0 0
    %1121 = vmatprep.subr.bf16.mxu0 0
    %1122 = vmatpush2.bf16.msra.mxu0 0
    %1123 = vmatprep.subr.bf16.mxu0 0
    %1124 = vmatpush2.bf16.msra.mxu0 0
    %1125 = vmatprep.subr.bf16.mxu0 0
    %1126 = vmatpush2.bf16.msra.mxu0 0
    %1127 = vmatprep.mubr.bf16.mxu0 0
    %1128 = vmatmul.mubr.bf16.gmra.mxu0 %v1084
    %v1129 = vpop.f32.mrf.mxu0
    %v1130 = vadd.f32 %v1049, %v1129
    %v1131 = vpop.f32.mrf.mxu0
    %v1132 = vpop.f32.mrf.mxu0
    %v1133 = vadd.f32 %v1049, %v1132
    %v1134 = vpop.f32.mrf.mxu0
    %1135 = vmatprep.mubr.bf16.mxu0 0
    %1136 = vmatmul.mubr.bf16.gmra.mxu0 %v1087
    %v1137 = vpop.f32.mrf.mxu0
    %v1138 = vadd.f32 %v1049, %v1137
    %v1139 = vpop.f32.mrf.mxu0
    %v1140 = vpop.f32.mrf.mxu0
    %v1141 = vadd.f32 %v1049, %v1140
    %v1142 = vpop.f32.mrf.mxu0
    %1143 = vmatprep.mubr.bf16.mxu0 0
    %1144 = vmatmul.mubr.bf16.gmra.mxu0 %v1090
    %v1145 = vpop.f32.mrf.mxu0
    %v1146 = vadd.f32 %v1049, %v1145
    %v1147 = vpop.f32.mrf.mxu0
    %v1148 = vpop.f32.mrf.mxu0
    %v1149 = vadd.f32 %v1049, %v1148
    %v1150 = vpop.f32.mrf.mxu0
    %1151 = vmatprep.mubr.bf16.mxu0 0
    %1152 = vmatmul.mubr.bf16.gmra.mxu0 %v1093
    %v1153 = vpop.f32.mrf.mxu0
    %v1154 = vadd.f32 %v1049, %v1153
    %v1155 = vpop.f32.mrf.mxu0
    %v1156 = vpop.f32.mrf.mxu0
    %v1157 = vadd.f32 %v1049, %v1156
    %v1158 = vpop.f32.mrf.mxu0
    %1159 = vdwg.mxu0
    %v1160 = vpack.c.bf16 %v1133, %v1130
    %v1161 = vpack.c.bf16 %v1141, %v1138
    %v1162 = vpack.c.bf16 %v1149, %v1146
    %v1163 = vpack.c.bf16 %v1157, %v1154
    %v1164 = vtanh.bf16.pop %v1160
    %v1165 = vtanh.bf16.pop %v1161
    %v1166 = vtanh.bf16.pop %v1162
    %v1167 = vtanh.bf16.pop %v1163
    %vm1168 = vcmask 523264
    %v1170 = vsel %vm1168, %v106, 0
    %1172 = vmatprep.subr.bf16.mxu0 0
    %1173 = vmatpush1.bf16.msra.mxu0 0
    %1174 = vmatprep.subr.bf16.mxu0 0
    %1175 = vmatpush1.bf16.msra.mxu0 0
    %1176 = vmatprep.subr.bf16.mxu0 0
    %1177 = vmatpush1.bf16.msra.mxu0 0
    %1178 = vmatprep.subr.bf16.mxu0 0
    %1179 = vmatpush1.bf16.msra.mxu0 0
    %1180 = vmatprep.subr.bf16.mxu0 0
    %1181 = vmatpush1.bf16.msra.mxu0 %v1167
    %1182 = vmatprep.subr.bf16.mxu0 0
    %1183 = vmatpush1.bf16.msra.mxu0 %v1166
    %1184 = vmatprep.subr.bf16.mxu0 0
    %1185 = vmatpush1.bf16.msra.mxu0 %v1165
    %1186 = vmatprep.subr.bf16.mxu0 0
    %1187 = vmatpush1.bf16.msra.mxu0 %v1164
    %1188 = vmatprep.subr.bf16.mxu0 0
    %1189 = vmatpush2.bf16.msra.mxu0 0
    %1190 = vmatprep.subr.bf16.mxu0 0
    %1191 = vmatpush2.bf16.msra.mxu0 0
    %1192 = vmatprep.subr.bf16.mxu0 0
    %1193 = vmatpush2.bf16.msra.mxu0 0
    %1194 = vmatprep.subr.bf16.mxu0 0
    %1195 = vmatpush2.bf16.msra.mxu0 0
    %1196 = vmatprep.subr.bf16.mxu0 0
    %1197 = vmatpush2.bf16.msra.mxu0 0
    %1198 = vmatprep.subr.bf16.mxu0 0
    %1199 = vmatpush2.bf16.msra.mxu0 0
    %1200 = vmatprep.subr.bf16.mxu0 0
    %1201 = vmatpush2.bf16.msra.mxu0 0
    %1202 = vmatprep.subr.bf16.mxu0 0
    %1203 = vmatpush2.bf16.msra.mxu0 0
    %1204 = vmatprep.mubr.bf16.mxu0 0
    %1205 = vmatmul.mubr.bf16.gmra.mxu0 %v1170
    %v1206 = vpop.f32.mrf.mxu0
    %v1207 = vadd.f32 0.0, %v1206
    %v1208 = vpop.f32.mrf.mxu0
    %v1209 = vpop.f32.mrf.mxu0
    %v1210 = vpop.f32.mrf.mxu0
    %1211 = vdwg.mxu0
    %v1212 = vpack.c.bf16 %v1207, %v1207
    %v1213 = vld [vmem:[%s12] sm:$0xf]
    %v1214 = vld [vmem:[%s12 + $0x4] sm:$0xf]
    %v1215 = vld [vmem:[%s12 + $0x8] sm:$0xf]
    %v1216 = vld [vmem:[%s12 + $0xc] sm:$0xf]
    %v1217 = vld [vmem:[%s3] sm:$0xf]
    %v1218 = vld [vmem:[%s13] sm:$0xf]
    %v1219 = vld [vmem:[%s13 + $0x4] sm:$0xf]
    %v1220 = vld [vmem:[%s13 + $0x8] sm:$0xf]
    %v1221 = vld [vmem:[%s13 + $0xc] sm:$0xf]
    %v1226 = vunpack.c.l.b16 %v1218
    %v1227 = vunpack.c.l.b16 %v1219
    %v1228 = vunpack.c.l.b16 %v1220
    %v1229 = vunpack.c.l.b16 %v1221
    %v1230 = vpack.c.b16 %v1227, %v1226
    %v1231 = vpack.c.b16 %v1229, %v1228
    %v1235 = vsel %vm377, %v1217, 0
    %1237 = vmatprep.subr.bf16.mxu0 0
    %1238 = vmatpush1.bf16.msra.mxu0 0
    %1239 = vmatprep.subr.bf16.mxu0 0
    %1240 = vmatpush1.bf16.msra.mxu0 0
    %1241 = vmatprep.subr.bf16.mxu0 0
    %1242 = vmatpush1.bf16.msra.mxu0 0
    %1243 = vmatprep.subr.bf16.mxu0 0
    %1244 = vmatpush1.bf16.msra.mxu0 0
    %1245 = vmatprep.subr.bf16.mxu0 0
    %1246 = vmatpush1.bf16.msra.mxu0 0
    %1247 = vmatprep.subr.bf16.mxu0 0
    %1248 = vmatpush1.bf16.msra.mxu0 0
    %1249 = vmatprep.subr.bf16.mxu0 0
    %1250 = vmatpush1.bf16.msra.mxu0 %v1231
    %1251 = vmatprep.subr.bf16.mxu0 0
    %1252 = vmatpush1.bf16.msra.mxu0 %v1230
    %1253 = vmatprep.subr.bf16.mxu0 0
    %1254 = vmatpush2.bf16.msra.mxu0 0
    %1255 = vmatprep.subr.bf16.mxu0 0
    %1256 = vmatpush2.bf16.msra.mxu0 0
    %1257 = vmatprep.subr.bf16.mxu0 0
    %1258 = vmatpush2.bf16.msra.mxu0 0
    %1259 = vmatprep.subr.bf16.mxu0 0
    %1260 = vmatpush2.bf16.msra.mxu0 0
    %1261 = vmatprep.subr.bf16.mxu0 0
    %1262 = vmatpush2.bf16.msra.mxu0 0
    %1263 = vmatprep.subr.bf16.mxu0 0
    %1264 = vmatpush2.bf16.msra.mxu0 0
    %1265 = vmatprep.subr.bf16.mxu0 0
    %1266 = vmatpush2.bf16.msra.mxu0 0
    %1267 = vmatprep.subr.bf16.mxu0 0
    %1268 = vmatpush2.bf16.msra.mxu0 0
    %1269 = vmatprep.mubr.bf16.mxu0 0
    %1270 = vmatmul.mubr.bf16.gmra.mxu0 %v1235
    %v1271 = vpop.f32.mrf.mxu0
    %v1272 = vadd.f32 0.0, %v1271
    %v1273 = vpop.f32.mrf.mxu0
    %v1274 = vpop.f32.mrf.mxu0
    %v1275 = vpop.f32.mrf.mxu0
    %1276 = vdwg.mxu0
    %v1281 = vunpack.c.l.b16 %v1213
    %v1282 = vunpack.c.l.b16 %v1214
    %v1283 = vunpack.c.l.b16 %v1215
    %v1284 = vunpack.c.l.b16 %v1216
    %v1285 = vpack.c.b16 %v1282, %v1281
    %v1286 = vpack.c.b16 %v1284, %v1283
    %v1290 = vsel %vm377, %v1212, 0
    %1292 = vmatprep.subr.bf16.mxu0 0
    %1293 = vmatpush1.bf16.msra.mxu0 0
    %1294 = vmatprep.subr.bf16.mxu0 0
    %1295 = vmatpush1.bf16.msra.mxu0 0
    %1296 = vmatprep.subr.bf16.mxu0 0
    %1297 = vmatpush1.bf16.msra.mxu0 0
    %1298 = vmatprep.subr.bf16.mxu0 0
    %1299 = vmatpush1.bf16.msra.mxu0 0
    %1300 = vmatprep.subr.bf16.mxu0 0
    %1301 = vmatpush1.bf16.msra.mxu0 0
    %1302 = vmatprep.subr.bf16.mxu0 0
    %1303 = vmatpush1.bf16.msra.mxu0 0
    %1304 = vmatprep.subr.bf16.mxu0 0
    %1305 = vmatpush1.bf16.msra.mxu0 %v1286
    %1306 = vmatprep.subr.bf16.mxu0 0
    %1307 = vmatpush1.bf16.msra.mxu0 %v1285
    %1308 = vmatprep.subr.bf16.mxu0 0
    %1309 = vmatpush2.bf16.msra.mxu0 0
    %1310 = vmatprep.subr.bf16.mxu0 0
    %1311 = vmatpush2.bf16.msra.mxu0 0
    %1312 = vmatprep.subr.bf16.mxu0 0
    %1313 = vmatpush2.bf16.msra.mxu0 0
    %1314 = vmatprep.subr.bf16.mxu0 0
    %1315 = vmatpush2.bf16.msra.mxu0 0
    %1316 = vmatprep.subr.bf16.mxu0 0
    %1317 = vmatpush2.bf16.msra.mxu0 0
    %1318 = vmatprep.subr.bf16.mxu0 0
    %1319 = vmatpush2.bf16.msra.mxu0 0
    %1320 = vmatprep.subr.bf16.mxu0 0
    %1321 = vmatpush2.bf16.msra.mxu0 0
    %1322 = vmatprep.subr.bf16.mxu0 0
    %1323 = vmatpush2.bf16.msra.mxu0 0
    %1324 = vmatprep.mubr.bf16.mxu0 0
    %1325 = vmatmul.mubr.bf16.gmra.mxu0 %v1290
    %v1326 = vpop.f32.mrf.mxu0
    %v1327 = vadd.f32 %v1272, %v1326
    %v1328 = vpop.f32.mrf.mxu0
    %v1329 = vpop.f32.mrf.mxu0
    %v1330 = vpop.f32.mrf.mxu0
    %1331 = vdwg.mxu0
    %v1332 = vld [vmem:[%s14] sm:$0x1]
    %v1334 = vlaneseq
    %v1335 = vshrl.u32 %v1334, 7
    %v1336 = vsub.s32 0, %v1335
    %v1337 = vrot.slane %v1332, %v1336
    %v1339 = vadd.f32 %v1327, %v1337
    %1340 = vst [vmem:[#allocation3] sm:$0xff] %v1339
    // Predicated region
    $region62: #{tpu_custom_call.1} parent=1 // pred_check
      _
    $region63: #{tpu_custom_call.1} parent=1 // pred_check_branch
      %1342 = sbr.rel (0) target = $region65
    $region64: #{tpu_custom_call.1} parent=1 // pred_region
      %s1344 = ssub.s32 128, 128
      %1345 = vsyncadd [#allocation4], %s1344
      %s1347 = sshll.u32 [#allocation3], 4
      %s1348 = int_to_ptr.vmem [resolvable:$true] %s1347
      %1350 = dma.vmem_to_hbm [thread:$0]  %s1348, 128, %s15, [#allocation4]
    $region65: #{tpu_custom_call.1} parent=1 // pred_fallthru
      _
    // Predicated region
    $region66: #{tpu_custom_call.1} parent=1 // pred_check
      _
    $region67: #{tpu_custom_call.1} parent=1 // pred_check_branch
      %1352 = sbr.rel (0) target = $region69
    $region68: #{tpu_custom_call.1} parent=1 // pred_region
      %1353 = dma.done [#allocation4], 128
    $region69: #{tpu_custom_call.1} parent=1 // pred_fallthru
      _
    %1354 = vsyncpa [#allocation4], 1

// kernel: tpu_custom_call.1
$region0: #{tpu_custom_call.1}
  #allocation0 [shape = 'u32[]', space=smem, size = 0x4, offset = 0x4, fixed_abs, tag = 'smem constant byte address 0x4 - core index']
  #allocation1 [shape = 'u32[144,128]{1,0:T(1,128)}', space=vmem, size = 0x12000, scoped, tag = 'internal scratch']
  #allocation2 [shape = 'f32[1,1]{1,0:T(1,128)S(1)}', space=vmem, size = 0x200, scoped, tag = 'scoped memory for tpu_custom_call.1']
  %s0 = inlined_call_operand.vmem [shape: bf16[64,32], index: 0, kind: input, shape index: {}]
  %s1 = inlined_call_operand.vmem [shape: bf16[32,32], index: 1, kind: input, shape index: {}]
  %s2 = inlined_call_operand.vmem [shape: bf16[64,32], index: 2, kind: input, shape index: {}]
  %s3 = inlined_call_operand.vmem [shape: bf16[8,32], index: 3, kind: input, shape index: {}]
  %s4 = inlined_call_operand.vmem [shape: f32[1,16], index: 4, kind: input, shape index: {}]
  %s5 = inlined_call_operand.<no memory space> [shape: f32[1,1], index: 5, kind: input, shape index: {}]
  %s6 = inlined_call_operand.vmem [shape: bf16[32,32], index: 6, kind: input, shape index: {}]
  %s7 = inlined_call_operand.vmem [shape: bf16[32,32], index: 7, kind: input, shape index: {}]
  %s8 = inlined_call_operand.vmem [shape: f32[1,32], index: 8, kind: input, shape index: {}]
  %s9 = inlined_call_operand.vmem [shape: f32[1,32], index: 9, kind: input, shape index: {}]
  %s10 = inlined_call_operand.vmem [shape: bf16[32,32], index: 10, kind: input, shape index: {}]
  %s11 = inlined_call_operand.vmem [shape: f32[1,32], index: 11, kind: input, shape index: {}]
  %s12 = inlined_call_operand.vmem [shape: bf16[32,128], index: 12, kind: input, shape index: {}]
  %s13 = inlined_call_operand.vmem [shape: bf16[32,128], index: 13, kind: input, shape index: {}]
  %s14 = inlined_call_operand.vmem [shape: f32[1,128], index: 14, kind: input, shape index: {}]
  %s15 = inlined_call_operand.hbm [shape: f32[8,128], index: 15, kind: output, shape index: {}]
  %s16 = sld [smem:[#allocation0]]
  $region70: #{tpu_custom_call.1} parent=0
    _
  %s18 = ssub.s32 1, %s16
  %s19 = scalar_select 0, %s18, %s16
  %v20 = vstv %s5
  %21 = vst [vmem:[#allocation2] sm:$0x1] %v20
  $region1: #{tpu_custom_call.1} parent=0
    #allocation3 [shape = 'u8[4096]{0}', space=vmem, size = 0x1000, scoped, tag = 'output window, operand 0, single buffered']
    #allocation4 [shape = 's32[1]{0}', space=sflag, size = 0x4, scoped, tag = 'scoped memory for tpu_custom_call.1']
    %22 = vsyncpa [#allocation4], 0
    // Predicated region
    $region2: #{tpu_custom_call.1} parent=1 // pred_check
      _
    $region3: #{tpu_custom_call.1} parent=1 // pred_check_branch
      %24 = sbr.rel (0) target = $region5
    $region4: #{tpu_custom_call.1} parent=1 // pred_region
      _
    $region5: #{tpu_custom_call.1} parent=1 // pred_fallthru
      _
    // Predicated region
    $region6: #{tpu_custom_call.1} parent=1 // pred_check
      _
    $region7: #{tpu_custom_call.1} parent=1 // pred_check_branch
      %26 = sbr.rel (0) target = $region9
    $region8: #{tpu_custom_call.1} parent=1 // pred_region
      _
    $region9: #{tpu_custom_call.1} parent=1 // pred_fallthru
      _
    // Predicated region
    $region10: #{tpu_custom_call.1} parent=1 // pred_check
      _
    $region11: #{tpu_custom_call.1} parent=1 // pred_check_branch
      %28 = sbr.rel (0) target = $region13
    $region12: #{tpu_custom_call.1} parent=1 // pred_region
      _
    $region13: #{tpu_custom_call.1} parent=1 // pred_fallthru
      _
    // Predicated region
    $region14: #{tpu_custom_call.1} parent=1 // pred_check
      _
    $region15: #{tpu_custom_call.1} parent=1 // pred_check_branch
      %30 = sbr.rel (0) target = $region17
    $region16: #{tpu_custom_call.1} parent=1 // pred_region
      _
    $region17: #{tpu_custom_call.1} parent=1 // pred_fallthru
      _
    // Predicated region
    $region18: #{tpu_custom_call.1} parent=1 // pred_check
      _
    $region19: #{tpu_custom_call.1} parent=1 // pred_check_branch
      %32 = sbr.rel (0) target = $region21
    $region20: #{tpu_custom_call.1} parent=1 // pred_region
      _
    $region21: #{tpu_custom_call.1} parent=1 // pred_fallthru
      _
    // Predicated region
    $region22: #{tpu_custom_call.1} parent=1 // pred_check
      _
    $region23: #{tpu_custom_call.1} parent=1 // pred_check_branch
      %34 = sbr.rel (0) target = $region25
    $region24: #{tpu_custom_call.1} parent=1 // pred_region
      _
    $region25: #{tpu_custom_call.1} parent=1 // pred_fallthru
      _
    // Predicated region
    $region26: #{tpu_custom_call.1} parent=1 // pred_check
      _
    $region27: #{tpu_custom_call.1} parent=1 // pred_check_branch
      %36 = sbr.rel (0) target = $region29
    $region28: #{tpu_custom_call.1} parent=1 // pred_region
      _
    $region29: #{tpu_custom_call.1} parent=1 // pred_fallthru
      _
    // Predicated region
    $region30: #{tpu_custom_call.1} parent=1 // pred_check
      _
    $region31: #{tpu_custom_call.1} parent=1 // pred_check_branch
      %38 = sbr.rel (0) target = $region33
    $region32: #{tpu_custom_call.1} parent=1 // pred_region
      _
    $region33: #{tpu_custom_call.1} parent=1 // pred_fallthru
      _
    // Predicated region
    $region34: #{tpu_custom_call.1} parent=1 // pred_check
      _
    $region35: #{tpu_custom_call.1} parent=1 // pred_check_branch
      %40 = sbr.rel (0) target = $region37
    $region36: #{tpu_custom_call.1} parent=1 // pred_region
      _
    $region37: #{tpu_custom_call.1} parent=1 // pred_fallthru
      _
    // Predicated region
    $region38: #{tpu_custom_call.1} parent=1 // pred_check
      _
    $region39: #{tpu_custom_call.1} parent=1 // pred_check_branch
      %42 = sbr.rel (0) target = $region41
    $region40: #{tpu_custom_call.1} parent=1 // pred_region
      _
    $region41: #{tpu_custom_call.1} parent=1 // pred_fallthru
      _
    // Predicated region
    $region42: #{tpu_custom_call.1} parent=1 // pred_check
      _
    $region43: #{tpu_custom_call.1} parent=1 // pred_check_branch
      %44 = sbr.rel (0) target = $region45
    $region44: #{tpu_custom_call.1} parent=1 // pred_region
      _
    $region45: #{tpu_custom_call.1} parent=1 // pred_fallthru
      _
    // Predicated region
    $region46: #{tpu_custom_call.1} parent=1 // pred_check
      _
    $region47: #{tpu_custom_call.1} parent=1 // pred_check_branch
      %46 = sbr.rel (0) target = $region49
    $region48: #{tpu_custom_call.1} parent=1 // pred_region
      _
    $region49: #{tpu_custom_call.1} parent=1 // pred_fallthru
      _
    // Predicated region
    $region50: #{tpu_custom_call.1} parent=1 // pred_check
      _
    $region51: #{tpu_custom_call.1} parent=1 // pred_check_branch
      %48 = sbr.rel (0) target = $region53
    $region52: #{tpu_custom_call.1} parent=1 // pred_region
      _
    $region53: #{tpu_custom_call.1} parent=1 // pred_fallthru
      _
    // Predicated region
    $region54: #{tpu_custom_call.1} parent=1 // pred_check
      _
    $region55: #{tpu_custom_call.1} parent=1 // pred_check_branch
      %50 = sbr.rel (0) target = $region57
    $region56: #{tpu_custom_call.1} parent=1 // pred_region
      _
    $region57: #{tpu_custom_call.1} parent=1 // pred_fallthru
      _
    // Predicated region
    $region58: #{tpu_custom_call.1} parent=1 // pred_check
      _
    $region59: #{tpu_custom_call.1} parent=1 // pred_check_branch
      %52 = sbr.rel (0) target = $region61
    $region60: #{tpu_custom_call.1} parent=1 // pred_region
      _
    $region61: #{tpu_custom_call.1} parent=1 // pred_fallthru
      _
    %v55 = vlaneseq
    %v56 = vshrl.u32 %v55, 7
    %v57 = vadd.s32 %v56, 8
    %v58 = vadd.s32 %v56, 16
    %v59 = vadd.s32 %v56, 24
    %v60 = vadd.s32 %v56, 32
    %v61 = vadd.s32 %v56, 40
    %v62 = vadd.s32 %v56, 48
    %v63 = vadd.s32 %v56, 56
    %v64 = vlaneseq
    %v65 = vand.u32 %v64, 127
    %v66 = vmul.u32 %v65, 8
    %vm67 = vcmp.ge.s32.totalorder %v56, %v66
    %vm68 = vcmp.ge.s32.totalorder %v57, %v66
    %vm69 = vcmp.ge.s32.totalorder %v58, %v66
    %vm70 = vcmp.ge.s32.totalorder %v59, %v66
    %vm71 = vcmp.ge.s32.totalorder %v60, %v66
    %vm72 = vcmp.ge.s32.totalorder %v61, %v66
    %vm73 = vcmp.ge.s32.totalorder %v62, %v66
    %vm74 = vcmp.ge.s32.totalorder %v63, %v66
    %v75 = vadd.s32 %v66, 8
    %vm76 = vcmp.lt.s32.totalorder %v56, %v75
    %vm77 = vcmp.lt.s32.totalorder %v57, %v75
    %vm78 = vcmp.lt.s32.totalorder %v58, %v75
    %vm79 = vcmp.lt.s32.totalorder %v59, %v75
    %vm80 = vcmp.lt.s32.totalorder %v60, %v75
    %vm81 = vcmp.lt.s32.totalorder %v61, %v75
    %vm82 = vcmp.lt.s32.totalorder %v62, %v75
    %vm83 = vcmp.lt.s32.totalorder %v63, %v75
    %vm84 = vmand %vm67, %vm76
    %vm85 = vmand %vm68, %vm77
    %vm86 = vmand %vm69, %vm78
    %vm87 = vmand %vm70, %vm79
    %vm88 = vmand %vm71, %vm80
    %vm89 = vmand %vm72, %vm81
    %vm90 = vmand %vm73, %vm82
    %vm91 = vmand %vm74, %vm83
    %v92 = vsel %vm84, 1.0, 0.0
    %v93 = vsel %vm85, 1.0, 0.0
    %v94 = vsel %vm86, 1.0, 0.0
    %v95 = vsel %vm87, 1.0, 0.0
    %v96 = vsel %vm88, 1.0, 0.0
    %v97 = vsel %vm89, 1.0, 0.0
    %v98 = vsel %vm90, 1.0, 0.0
    %v99 = vsel %vm91, 1.0, 0.0
    %v100 = vmul.u32 %v56, 8
    %vm101 = vcmp.ge.s32.totalorder %v65, %v100
    %v102 = vadd.s32 %v100, 8
    %vm103 = vcmp.lt.s32.totalorder %v65, %v102
    %vm104 = vmand %vm101, %vm103
    %v105 = vsel %vm104, 0.125, 0.0
    %v106 = vpack.c.bf16 %v105, %v105
    %v107 = vmul.u32 %v56, 4
    %vm108 = vcmp.ge.s32.totalorder %v65, %v107
    %v109 = vadd.s32 %v107, 4
    %vm110 = vcmp.lt.s32.totalorder %v65, %v109
    %vm111 = vmand %vm108, %vm110
    %v112 = vsel %vm111, 0.25, 0.0
    %v113 = vpack.c.bf16 %v112, %v112
    %v114 = vld [vmem:[%s2] sm:$0xf]
    %v115 = vld [vmem:[%s2 + $0x4] sm:$0xf]
    %v116 = vld [vmem:[%s2 + $0x8] sm:$0xf]
    %v117 = vld [vmem:[%s2 + $0xc] sm:$0xf]
    %v118 = vld [vmem:[%s2 + $0x10] sm:$0xf]
    %v119 = vld [vmem:[%s2 + $0x14] sm:$0xf]
    %v120 = vld [vmem:[%s2 + $0x18] sm:$0xf]
    %v121 = vld [vmem:[%s2 + $0x1c] sm:$0xf]
    %130 = vrot.lane.b32.xlu0 %v114, 112
    %v131 = vpop.permute.xlu0 %130
    %132 = vrot.lane.b32.xlu0 %v115, 112
    %v133 = vpop.permute.xlu0 %132
    %134 = vrot.lane.b32.xlu0 %v116, 112
    %v135 = vpop.permute.xlu0 %134
    %136 = vrot.lane.b32.xlu0 %v117, 112
    %v137 = vpop.permute.xlu0 %136
    %138 = vrot.lane.b32.xlu0 %v118, 112
    %v139 = vpop.permute.xlu0 %138
    %140 = vrot.lane.b32.xlu0 %v119, 112
    %v141 = vpop.permute.xlu0 %140
    %142 = vrot.lane.b32.xlu0 %v120, 112
    %v143 = vpop.permute.xlu0 %142
    %144 = vrot.lane.b32.xlu0 %v121, 112
    %v145 = vpop.permute.xlu0 %144
    %v154 = vmax.bf16 %v114, %v131
    %v155 = vmax.bf16 %v115, %v133
    %v156 = vmax.bf16 %v116, %v135
    %v157 = vmax.bf16 %v117, %v137
    %v158 = vmax.bf16 %v118, %v139
    %v159 = vmax.bf16 %v119, %v141
    %v160 = vmax.bf16 %v120, %v143
    %v161 = vmax.bf16 %v121, %v145
    %v162 = vunpack.c.l.bf16 %v154
    %v163 = vunpack.c.l.bf16 %v155
    %v164 = vunpack.c.l.bf16 %v156
    %v165 = vunpack.c.l.bf16 %v157
    %v166 = vunpack.c.l.bf16 %v158
    %v167 = vunpack.c.l.bf16 %v159
    %v168 = vunpack.c.l.bf16 %v160
    %v169 = vunpack.c.l.bf16 %v161
    %v170 = vld [vmem:[%s4] sm:$0x1]
    %v172 = vlaneseq
    %v173 = vshrl.u32 %v172, 7
    %v174 = vsub.s32 0, %v173
    %v175 = vrot.slane %v170, %v174
    %v177 = vmul.f32 %v162, %v175
    %v178 = vmul.f32 %v163, %v175
    %v179 = vmul.f32 %v164, %v175
    %v180 = vmul.f32 %v165, %v175
    %v181 = vmul.f32 %v166, %v175
    %v182 = vmul.f32 %v167, %v175
    %v183 = vmul.f32 %v168, %v175
    %v184 = vmul.f32 %v169, %v175
    %vm185 = vcmask 130048
    %v186 = vsel %vm185, %v177, 0.0
    %187 = vadd.xlane.f32.xlu0 %v186
    %v188 = vpop.xlane.xlu0 %187
    %v189 = vsel %vm185, %v178, 0.0
    %190 = vadd.xlane.f32.xlu0 %v189
    %v191 = vpop.xlane.xlu0 %190
    %v192 = vsel %vm185, %v179, 0.0
    %193 = vadd.xlane.f32.xlu0 %v192
    %v194 = vpop.xlane.xlu0 %193
    %v195 = vsel %vm185, %v180, 0.0
    %196 = vadd.xlane.f32.xlu0 %v195
    %v197 = vpop.xlane.xlu0 %196
    %v198 = vsel %vm185, %v181, 0.0
    %199 = vadd.xlane.f32.xlu0 %v198
    %v200 = vpop.xlane.xlu0 %199
    %v201 = vsel %vm185, %v182, 0.0
    %202 = vadd.xlane.f32.xlu0 %v201
    %v203 = vpop.xlane.xlu0 %202
    %v204 = vsel %vm185, %v183, 0.0
    %205 = vadd.xlane.f32.xlu0 %v204
    %v206 = vpop.xlane.xlu0 %205
    %v207 = vsel %vm185, %v184, 0.0
    %208 = vadd.xlane.f32.xlu0 %v207
    %v209 = vpop.xlane.xlu0 %208
    %v210 = vld [vmem:[#allocation2] sm:$0x1]
    %v212 = vlaneseq
    %v213 = vshrl.u32 %v212, 7
    %v214 = vsub.s32 0, %v213
    %v215 = vrot.slane %v210, %v214
    %v217 = vadd.f32 %v188, %v215
    %v218 = vadd.f32 %v191, %v215
    %v219 = vadd.f32 %v194, %v215
    %v220 = vadd.f32 %v197, %v215
    %v221 = vadd.f32 %v200, %v215
    %v222 = vadd.f32 %v203, %v215
    %v223 = vadd.f32 %v206, %v215
    %v224 = vadd.f32 %v209, %v215
    %v225 = vpack.c.bf16 %v218, %v217
    %v226 = vpack.c.bf16 %v220, %v219
    %v227 = vpack.c.bf16 %v222, %v221
    %v228 = vpack.c.bf16 %v224, %v223
    %v229 = vxor.u32 %v225, 2147516416
    %v230 = vxor.u32 %v226, 2147516416
    %v231 = vxor.u32 %v227, 2147516416
    %v232 = vxor.u32 %v228, 2147516416
    %v234 = vmul.bf16 %v229, 1069105081
    %v235 = vpow.bf16.pop %v234
    %v237 = vmul.bf16 %v230, 1069105081
    %v238 = vpow.bf16.pop %v237
    %v240 = vmul.bf16 %v231, 1069105081
    %v241 = vpow.bf16.pop %v240
    %v243 = vmul.bf16 %v232, 1069105081
    %v244 = vpow.bf16.pop %v243
    %v245 = vadd.bf16 %v235, 1065369472
    %v246 = vadd.bf16 %v238, 1065369472
    %v247 = vadd.bf16 %v241, 1065369472
    %v248 = vadd.bf16 %v244, 1065369472
    %v249 = vrcp.bf16.pop %v245
    %v250 = vmul.bf16 1065369472, %v249
    %v251 = vrcp.bf16.pop %v246
    %v252 = vmul.bf16 1065369472, %v251
    %v253 = vrcp.bf16.pop %v247
    %v254 = vmul.bf16 1065369472, %v253
    %v255 = vrcp.bf16.pop %v248
    %v256 = vmul.bf16 1065369472, %v255
    %v257 = vld [vmem:[%s0] sm:$0xf]
    %v258 = vld [vmem:[%s0 + $0x4] sm:$0xf]
    %v259 = vld [vmem:[%s0 + $0x8] sm:$0xf]
    %v260 = vld [vmem:[%s0 + $0xc] sm:$0xf]
    %v261 = vld [vmem:[%s0 + $0x10] sm:$0xf]
    %v262 = vld [vmem:[%s0 + $0x14] sm:$0xf]
    %v263 = vld [vmem:[%s0 + $0x18] sm:$0xf]
    %v264 = vld [vmem:[%s0 + $0x1c] sm:$0xf]
    %266 = vset.pattern.permute.xlu0 0
    %267 = vperm.xlu0 %266, %v250
    %v268 = vpop.permute.xlu0 %267
    %270 = vset.pattern.permute.xlu0 0
    %271 = vperm.xlu0 %270, %v252
    %v272 = vpop.permute.xlu0 %271
    %274 = vset.pattern.permute.xlu0 0
    %275 = vperm.xlu0 %274, %v254
    %v276 = vpop.permute.xlu0 %275
    %278 = vset.pattern.permute.xlu0 0
    %279 = vperm.xlu0 %278, %v256
    %v280 = vpop.permute.xlu0 %279
    %v286 = vunpack.c.l.s4 839922192
    %v287 = vunpack.c.0.s8 %v286
    %v288 = vlaneseq
    %v289 = vshrl.u32 %v288, 7
    %v290 = vsub.s32 %v287, %v289
    %v291 = vrot.slane %v268, %v290
    %v293 = vunpack.c.l.s4 1985246804
    %v294 = vunpack.c.0.s8 %v293
    %v295 = vlaneseq
    %v296 = vshrl.u32 %v295, 7
    %v297 = vsub.s32 %v294, %v296
    %v298 = vrot.slane %v268, %v297
    %v300 = vunpack.c.l.s4 839922192
    %v301 = vunpack.c.0.s8 %v300
    %v302 = vlaneseq
    %v303 = vshrl.u32 %v302, 7
    %v304 = vsub.s32 %v301, %v303
    %v305 = vrot.slane %v272, %v304
    %v307 = vunpack.c.l.s4 1985246804
    %v308 = vunpack.c.0.s8 %v307
    %v309 = vlaneseq
    %v310 = vshrl.u32 %v309, 7
    %v311 = vsub.s32 %v308, %v310
    %v312 = vrot.slane %v272, %v311
    %v314 = vunpack.c.l.s4 839922192
    %v315 = vunpack.c.0.s8 %v314
    %v316 = vlaneseq
    %v317 = vshrl.u32 %v316, 7
    %v318 = vsub.s32 %v315, %v317
    %v319 = vrot.slane %v276, %v318
    %v321 = vunpack.c.l.s4 1985246804
    %v322 = vunpack.c.0.s8 %v321
    %v323 = vlaneseq
    %v324 = vshrl.u32 %v323, 7
    %v325 = vsub.s32 %v322, %v324
    %v326 = vrot.slane %v276, %v325
    %v328 = vunpack.c.l.s4 839922192
    %v329 = vunpack.c.0.s8 %v328
    %v330 = vlaneseq
    %v331 = vshrl.u32 %v330, 7
    %v332 = vsub.s32 %v329, %v331
    %v333 = vrot.slane %v280, %v332
    %v335 = vunpack.c.l.s4 1985246804
    %v336 = vunpack.c.0.s8 %v335
    %v337 = vlaneseq
    %v338 = vshrl.u32 %v337, 7
    %v339 = vsub.s32 %v336, %v338
    %v340 = vrot.slane %v280, %v339
    %v349 = vmul.bf16 %v257, %v291
    %v350 = vmul.bf16 %v258, %v298
    %v351 = vmul.bf16 %v259, %v305
    %v352 = vmul.bf16 %v260, %v312
    %v353 = vmul.bf16 %v261, %v319
    %v354 = vmul.bf16 %v262, %v326
    %v355 = vmul.bf16 %v263, %v333
    %v356 = vmul.bf16 %v264, %v340
    %v357 = vld [vmem:[%s6] sm:$0xf]
    %v358 = vld [vmem:[%s6 + $0x4] sm:$0xf]
    %v359 = vld [vmem:[%s6 + $0x8] sm:$0xf]
    %v360 = vld [vmem:[%s6 + $0xc] sm:$0xf]
    %v361 = vld [vmem:[%s1] sm:$0xf]
    %v362 = vld [vmem:[%s1 + $0x4] sm:$0xf]
    %v363 = vld [vmem:[%s1 + $0x8] sm:$0xf]
    %v364 = vld [vmem:[%s1 + $0xc] sm:$0xf]
    %v369 = vunpack.c.l.b16 %v361
    %v370 = vunpack.c.l.b16 %v362
    %v371 = vunpack.c.l.b16 %v363
    %v372 = vunpack.c.l.b16 %v364
    %v373 = vpack.c.b16 %v370, %v369
    %v374 = vpack.c.b16 %v372, %v371
    %vm377 = vcmask 261120
    %v379 = vsel %vm377, %v113, 0
    %381 = vmatprep.subr.bf16.mxu0 0
    %382 = vmatpush1.bf16.msra.mxu0 0
    %383 = vmatprep.subr.bf16.mxu0 0
    %384 = vmatpush1.bf16.msra.mxu0 0
    %385 = vmatprep.subr.bf16.mxu0 0
    %386 = vmatpush1.bf16.msra.mxu0 0
    %387 = vmatprep.subr.bf16.mxu0 0
    %388 = vmatpush1.bf16.msra.mxu0 0
    %389 = vmatprep.subr.bf16.mxu0 0
    %390 = vmatpush1.bf16.msra.mxu0 0
    %391 = vmatprep.subr.bf16.mxu0 0
    %392 = vmatpush1.bf16.msra.mxu0 0
    %393 = vmatprep.subr.bf16.mxu0 0
    %394 = vmatpush1.bf16.msra.mxu0 %v374
    %395 = vmatprep.subr.bf16.mxu0 0
    %396 = vmatpush1.bf16.msra.mxu0 %v373
    %397 = vmatprep.subr.bf16.mxu0 0
    %398 = vmatpush2.bf16.msra.mxu0 0
    %399 = vmatprep.subr.bf16.mxu0 0
    %400 = vmatpush2.bf16.msra.mxu0 0
    %401 = vmatprep.subr.bf16.mxu0 0
    %402 = vmatpush2.bf16.msra.mxu0 0
    %403 = vmatprep.subr.bf16.mxu0 0
    %404 = vmatpush2.bf16.msra.mxu0 0
    %405 = vmatprep.subr.bf16.mxu0 0
    %406 = vmatpush2.bf16.msra.mxu0 0
    %407 = vmatprep.subr.bf16.mxu0 0
    %408 = vmatpush2.bf16.msra.mxu0 0
    %409 = vmatprep.subr.bf16.mxu0 0
    %410 = vmatpush2.bf16.msra.mxu0 0
    %411 = vmatprep.subr.bf16.mxu0 0
    %412 = vmatpush2.bf16.msra.mxu0 0
    %413 = vmatprep.mubr.bf16.mxu0 0
    %414 = vmatmul.mubr.bf16.gmra.mxu0 %v379
    %v415 = vpop.f32.mrf.mxu0
    %v416 = vadd.f32 0.0, %v415
    %v417 = vpop.f32.mrf.mxu0
    %v418 = vpop.f32.mrf.mxu0
    %v419 = vpop.f32.mrf.mxu0
    %420 = vdwg.mxu0
    %v421 = vpack.c.bf16 %v416, %v416
    %v422 = vld [vmem:[%s7] sm:$0xf]
    %v423 = vld [vmem:[%s7 + $0x4] sm:$0xf]
    %v424 = vld [vmem:[%s7 + $0x8] sm:$0xf]
    %v425 = vld [vmem:[%s7 + $0xc] sm:$0xf]
    %v430 = vunpack.c.l.b16 %v422
    %v431 = vunpack.c.l.b16 %v423
    %v432 = vunpack.c.l.b16 %v424
    %v433 = vunpack.c.l.b16 %v425
    %v434 = vpack.c.b16 %v431, %v430
    %v435 = vpack.c.b16 %v433, %v432
    %v439 = vsel %vm377, %v421, 0
    %441 = vmatprep.subr.bf16.mxu0 0
    %442 = vmatpush1.bf16.msra.mxu0 0
    %443 = vmatprep.subr.bf16.mxu0 0
    %444 = vmatpush1.bf16.msra.mxu0 0
    %445 = vmatprep.subr.bf16.mxu0 0
    %446 = vmatpush1.bf16.msra.mxu0 0
    %447 = vmatprep.subr.bf16.mxu0 0
    %448 = vmatpush1.bf16.msra.mxu0 0
    %449 = vmatprep.subr.bf16.mxu0 0
    %450 = vmatpush1.bf16.msra.mxu0 0
    %451 = vmatprep.subr.bf16.mxu0 0
    %452 = vmatpush1.bf16.msra.mxu0 0
    %453 = vmatprep.subr.bf16.mxu0 0
    %454 = vmatpush1.bf16.msra.mxu0 %v435
    %455 = vmatprep.subr.bf16.mxu0 0
    %456 = vmatpush1.bf16.msra.mxu0 %v434
    %457 = vmatprep.subr.bf16.mxu0 0
    %458 = vmatpush2.bf16.msra.mxu0 0
    %459 = vmatprep.subr.bf16.mxu0 0
    %460 = vmatpush2.bf16.msra.mxu0 0
    %461 = vmatprep.subr.bf16.mxu0 0
    %462 = vmatpush2.bf16.msra.mxu0 0
    %463 = vmatprep.subr.bf16.mxu0 0
    %464 = vmatpush2.bf16.msra.mxu0 0
    %465 = vmatprep.subr.bf16.mxu0 0
    %466 = vmatpush2.bf16.msra.mxu0 0
    %467 = vmatprep.subr.bf16.mxu0 0
    %468 = vmatpush2.bf16.msra.mxu0 0
    %469 = vmatprep.subr.bf16.mxu0 0
    %470 = vmatpush2.bf16.msra.mxu0 0
    %471 = vmatprep.subr.bf16.mxu0 0
    %472 = vmatpush2.bf16.msra.mxu0 0
    %473 = vmatprep.mubr.bf16.mxu0 0
    %474 = vmatmul.mubr.bf16.gmra.mxu0 %v439
    %v475 = vpop.f32.mrf.mxu0
    %v476 = vadd.f32 0.0, %v475
    %v477 = vpop.f32.mrf.mxu0
    %v478 = vpop.f32.mrf.mxu0
    %v479 = vpop.f32.mrf.mxu0
    %480 = vdwg.mxu0
    %vm481 = vcmask 64512
    %v483 = vsel %vm481, %v92, 0
    %v486 = vsel %vm481, %v93, 0
    %v489 = vsel %vm481, %v94, 0
    %v492 = vsel %vm481, %v95, 0
    %v495 = vsel %vm481, %v96, 0
    %v498 = vsel %vm481, %v97, 0
    %v501 = vsel %vm481, %v98, 0
    %v504 = vsel %vm481, %v99, 0
    %506 = vmatprep.subr.mxu0 0.0
    %507 = vmatpush1.msra.mxu0 0.0
    %508 = vmatprep.subr.mxu0 0.0
    %509 = vmatpush1.msra.mxu0 0.0
    %510 = vmatprep.subr.mxu0 0.0
    %511 = vmatpush1.msra.mxu0 0.0
    %512 = vmatprep.subr.mxu0 0.0
    %513 = vmatpush1.msra.mxu0 0.0
    %514 = vmatprep.subr.mxu0 0.0
    %515 = vmatpush1.msra.mxu0 0.0
    %516 = vmatprep.subr.mxu0 0.0
    %517 = vmatpush1.msra.mxu0 0.0
    %518 = vmatprep.subr.mxu0 0.0
    %519 = vmatpush1.msra.mxu0 0.0
    %520 = vmatprep.subr.mxu0 0.0
    %521 = vmatpush1.msra.mxu0 0.0
    %522 = vmatprep.subr.mxu0 0.0
    %523 = vmatpush1.msra.mxu0 0.0
    %524 = vmatprep.subr.mxu0 0.0
    %525 = vmatpush1.msra.mxu0 0.0
    %526 = vmatprep.subr.mxu0 0.0
    %527 = vmatpush1.msra.mxu0 0.0
    %528 = vmatprep.subr.mxu0 0.0
    %529 = vmatpush1.msra.mxu0 0.0
    %530 = vmatprep.subr.mxu0 0.0
    %531 = vmatpush1.msra.mxu0 0.0
    %532 = vmatprep.subr.mxu0 0.0
    %533 = vmatpush1.msra.mxu0 0.0
    %534 = vmatprep.subr.mxu0 0.0
    %535 = vmatpush1.msra.mxu0 0.0
    %536 = vmatprep.subr.mxu0 0.0
    %537 = vmatpush1.msra.mxu0 %v476
    %538 = vmatprep.subr.mxu0 0.0
    %539 = vmatpush2.msra.mxu0 0.0
    %540 = vmatprep.subr.mxu0 0.0
    %541 = vmatpush2.msra.mxu0 0.0
    %542 = vmatprep.subr.mxu0 0.0
    %543 = vmatpush2.msra.mxu0 0.0
    %544 = vmatprep.subr.mxu0 0.0
    %545 = vmatpush2.msra.mxu0 0.0
    %546 = vmatprep.subr.mxu0 0.0
    %547 = vmatpush2.msra.mxu0 0.0
    %548 = vmatprep.subr.mxu0 0.0
    %549 = vmatpush2.msra.mxu0 0.0
    %550 = vmatprep.subr.mxu0 0.0
    %551 = vmatpush2.msra.mxu0 0.0
    %552 = vmatprep.subr.mxu0 0.0
    %553 = vmatpush2.msra.mxu0 0.0
    %554 = vmatprep.subr.mxu0 0.0
    %555 = vmatpush2.msra.mxu0 0.0
    %556 = vmatprep.subr.mxu0 0.0
    %557 = vmatpush2.msra.mxu0 0.0
    %558 = vmatprep.subr.mxu0 0.0
    %559 = vmatpush2.msra.mxu0 0.0
    %560 = vmatprep.subr.mxu0 0.0
    %561 = vmatpush2.msra.mxu0 0.0
    %562 = vmatprep.subr.mxu0 0.0
    %563 = vmatpush2.msra.mxu0 0.0
    %564 = vmatprep.subr.mxu0 0.0
    %565 = vmatpush2.msra.mxu0 0.0
    %566 = vmatprep.subr.mxu0 0.0
    %567 = vmatpush2.msra.mxu0 0.0
    %568 = vmatprep.subr.mxu0 0.0
    %569 = vmatpush2.msra.mxu0 0.0
    %570 = vmatprep.mubr.f32.mxu0 0.0
    %571 = vmatmul.mubr.f32.gmra.mxu0 %v483
    %v572 = vpop.f32.mrf.mxu0
    %v573 = vadd.f32 0.0, %v572
    %v574 = vpop.f32.mrf.mxu0
    %575 = vmatprep.mubr.f32.mxu0 0.0
    %576 = vmatmul.mubr.f32.gmra.mxu0 %v486
    %v577 = vpop.f32.mrf.mxu0
    %v578 = vadd.f32 0.0, %v577
    %v579 = vpop.f32.mrf.mxu0
    %580 = vmatprep.mubr.f32.mxu0 0.0
    %581 = vmatmul.mubr.f32.gmra.mxu0 %v489
    %v582 = vpop.f32.mrf.mxu0
    %v583 = vadd.f32 0.0, %v582
    %v584 = vpop.f32.mrf.mxu0
    %585 = vmatprep.mubr.f32.mxu0 0.0
    %586 = vmatmul.mubr.f32.gmra.mxu0 %v492
    %v587 = vpop.f32.mrf.mxu0
    %v588 = vadd.f32 0.0, %v587
    %v589 = vpop.f32.mrf.mxu0
    %590 = vmatprep.mubr.f32.mxu0 0.0
    %591 = vmatmul.mubr.f32.gmra.mxu0 %v495
    %v592 = vpop.f32.mrf.mxu0
    %v593 = vadd.f32 0.0, %v592
    %v594 = vpop.f32.mrf.mxu0
    %595 = vmatprep.mubr.f32.mxu0 0.0
    %596 = vmatmul.mubr.f32.gmra.mxu0 %v498
    %v597 = vpop.f32.mrf.mxu0
    %v598 = vadd.f32 0.0, %v597
    %v599 = vpop.f32.mrf.mxu0
    %600 = vmatprep.mubr.f32.mxu0 0.0
    %601 = vmatmul.mubr.f32.gmra.mxu0 %v501
    %v602 = vpop.f32.mrf.mxu0
    %v603 = vadd.f32 0.0, %v602
    %v604 = vpop.f32.mrf.mxu0
    %605 = vmatprep.mubr.f32.mxu0 0.0
    %606 = vmatmul.mubr.f32.gmra.mxu0 %v504
    %v607 = vpop.f32.mrf.mxu0
    %v608 = vadd.f32 0.0, %v607
    %v609 = vpop.f32.mrf.mxu0
    %610 = vdwg.mxu0
    %v619 = vunpack.c.l.b16 %v349
    %v620 = vunpack.c.l.b16 %v350
    %v621 = vunpack.c.l.b16 %v351
    %v622 = vunpack.c.l.b16 %v352
    %v623 = vunpack.c.l.b16 %v353
    %v624 = vunpack.c.l.b16 %v354
    %v625 = vunpack.c.l.b16 %v355
    %v626 = vunpack.c.l.b16 %v356
    %v627 = vpack.c.b16 %v620, %v619
    %v628 = vpack.c.b16 %v622, %v621
    %v629 = vpack.c.b16 %v624, %v623
    %v630 = vpack.c.b16 %v626, %v625
    %v635 = vunpack.c.l.b16 %v357
    %v636 = vunpack.c.l.b16 %v358
    %v637 = vunpack.c.l.b16 %v359
    %v638 = vunpack.c.l.b16 %v360
    %v639 = vpack.c.b16 %v636, %v635
    %v640 = vpack.c.b16 %v638, %v637
    %v644 = vsel %vm377, %v627, 0
    %v647 = vsel %vm377, %v628, 0
    %v650 = vsel %vm377, %v629, 0
    %v653 = vsel %vm377, %v630, 0
    %655 = vmatprep.subr.bf16.mxu0 0
    %656 = vmatpush1.bf16.msra.mxu0 0
    %657 = vmatprep.subr.bf16.mxu0 0
    %658 = vmatpush1.bf16.msra.mxu0 0
    %659 = vmatprep.subr.bf16.mxu0 0
    %660 = vmatpush1.bf16.msra.mxu0 0
    %661 = vmatprep.subr.bf16.mxu0 0
    %662 = vmatpush1.bf16.msra.mxu0 0
    %663 = vmatprep.subr.bf16.mxu0 0
    %664 = vmatpush1.bf16.msra.mxu0 0
    %665 = vmatprep.subr.bf16.mxu0 0
    %666 = vmatpush1.bf16.msra.mxu0 0
    %667 = vmatprep.subr.bf16.mxu0 0
    %668 = vmatpush1.bf16.msra.mxu0 %v640
    %669 = vmatprep.subr.bf16.mxu0 0
    %670 = vmatpush1.bf16.msra.mxu0 %v639
    %671 = vmatprep.subr.bf16.mxu0 0
    %672 = vmatpush2.bf16.msra.mxu0 0
    %673 = vmatprep.subr.bf16.mxu0 0
    %674 = vmatpush2.bf16.msra.mxu0 0
    %675 = vmatprep.subr.bf16.mxu0 0
    %676 = vmatpush2.bf16.msra.mxu0 0
    %677 = vmatprep.subr.bf16.mxu0 0
    %678 = vmatpush2.bf16.msra.mxu0 0
    %679 = vmatprep.subr.bf16.mxu0 0
    %680 = vmatpush2.bf16.msra.mxu0 0
    %681 = vmatprep.subr.bf16.mxu0 0
    %682 = vmatpush2.bf16.msra.mxu0 0
    %683 = vmatprep.subr.bf16.mxu0 0
    %684 = vmatpush2.bf16.msra.mxu0 0
    %685 = vmatprep.subr.bf16.mxu0 0
    %686 = vmatpush2.bf16.msra.mxu0 0
    %687 = vmatprep.mubr.bf16.mxu0 0
    %688 = vmatmul.mubr.bf16.gmra.mxu0 %v644
    %v689 = vpop.f32.mrf.mxu0
    %v690 = vadd.f32 %v573, %v689
    %v691 = vpop.f32.mrf.mxu0
    %v692 = vpop.f32.mrf.mxu0
    %v693 = vadd.f32 %v578, %v692
    %v694 = vpop.f32.mrf.mxu0
    %695 = vmatprep.mubr.bf16.mxu0 0
    %696 = vmatmul.mubr.bf16.gmra.mxu0 %v647
    %v697 = vpop.f32.mrf.mxu0
    %v698 = vadd.f32 %v583, %v697
    %v699 = vpop.f32.mrf.mxu0
    %v700 = vpop.f32.mrf.mxu0
    %v701 = vadd.f32 %v588, %v700
    %v702 = vpop.f32.mrf.mxu0
    %703 = vmatprep.mubr.bf16.mxu0 0
    %704 = vmatmul.mubr.bf16.gmra.mxu0 %v650
    %v705 = vpop.f32.mrf.mxu0
    %v706 = vadd.f32 %v593, %v705
    %v707 = vpop.f32.mrf.mxu0
    %v708 = vpop.f32.mrf.mxu0
    %v709 = vadd.f32 %v598, %v708
    %v710 = vpop.f32.mrf.mxu0
    %711 = vmatprep.mubr.bf16.mxu0 0
    %712 = vmatmul.mubr.bf16.gmra.mxu0 %v653
    %v713 = vpop.f32.mrf.mxu0
    %v714 = vadd.f32 %v603, %v713
    %v715 = vpop.f32.mrf.mxu0
    %v716 = vpop.f32.mrf.mxu0
    %v717 = vadd.f32 %v608, %v716
    %v718 = vpop.f32.mrf.mxu0
    %719 = vdwg.mxu0
    %v720 = vld [vmem:[%s8] sm:$0x1]
    %v722 = vlaneseq
    %v723 = vshrl.u32 %v722, 7
    %v724 = vsub.s32 0, %v723
    %v725 = vrot.slane %v720, %v724
    %v727 = vadd.f32 %v690, %v725
    %v728 = vadd.f32 %v693, %v725
    %v729 = vadd.f32 %v698, %v725
    %v730 = vadd.f32 %v701, %v725
    %v731 = vadd.f32 %v706, %v725
    %v732 = vadd.f32 %v709, %v725
    %v733 = vadd.f32 %v714, %v725
    %v734 = vadd.f32 %v717, %v725
    %v735 = vpack.c.bf16 %v728, %v727
    %v736 = vpack.c.bf16 %v730, %v729
    %v737 = vpack.c.bf16 %v732, %v731
    %v738 = vpack.c.bf16 %v734, %v733
    %v739 = vtanh.bf16.pop %v735
    %v740 = vtanh.bf16.pop %v736
    %v741 = vtanh.bf16.pop %v737
    %v742 = vtanh.bf16.pop %v738
    %v743 = vld [vmem:[%s9] sm:$0x1]
    %v744 = vunpack.c.l.bf16 %v739
    %v745 = vunpack.c.h.bf16 %v739
    %v746 = vunpack.c.l.bf16 %v740
    %v747 = vunpack.c.h.bf16 %v740
    %v748 = vunpack.c.l.bf16 %v741
    %v749 = vunpack.c.h.bf16 %v741
    %v750 = vunpack.c.l.bf16 %v742
    %v751 = vunpack.c.h.bf16 %v742
    %v753 = vlaneseq
    %v754 = vshrl.u32 %v753, 7
    %v755 = vsub.s32 0, %v754
    %v756 = vrot.slane %v743, %v755
    %v758 = vmul.f32 %v744, %v756
    %v759 = vmul.f32 %v745, %v756
    %v760 = vmul.f32 %v746, %v756
    %v761 = vmul.f32 %v747, %v756
    %v762 = vmul.f32 %v748, %v756
    %v763 = vmul.f32 %v749, %v756
    %v764 = vmul.f32 %v750, %v756
    %v765 = vmul.f32 %v751, %v756
    %v766 = vsel %vm377, %v758, 0.0
    %767 = vadd.xlane.f32.xlu0 %v766
    %v768 = vpop.xlane.xlu0 %767
    %v769 = vsel %vm377, %v759, 0.0
    %770 = vadd.xlane.f32.xlu0 %v769
    %v771 = vpop.xlane.xlu0 %770
    %v772 = vsel %vm377, %v760, 0.0
    %773 = vadd.xlane.f32.xlu0 %v772
    %v774 = vpop.xlane.xlu0 %773
    %v775 = vsel %vm377, %v761, 0.0
    %776 = vadd.xlane.f32.xlu0 %v775
    %v777 = vpop.xlane.xlu0 %776
    %v778 = vsel %vm377, %v762, 0.0
    %779 = vadd.xlane.f32.xlu0 %v778
    %v780 = vpop.xlane.xlu0 %779
    %v781 = vsel %vm377, %v763, 0.0
    %782 = vadd.xlane.f32.xlu0 %v781
    %v783 = vpop.xlane.xlu0 %782
    %v784 = vsel %vm377, %v764, 0.0
    %785 = vadd.xlane.f32.xlu0 %v784
    %v786 = vpop.xlane.xlu0 %785
    %v787 = vsel %vm377, %v765, 0.0
    %788 = vadd.xlane.f32.xlu0 %v787
    %v789 = vpop.xlane.xlu0 %788
    %vm790 = vcmp.gt.f32.partialorder %v92, 0.5
    %vm791 = vcmp.gt.f32.partialorder %v93, 0.5
    %vm792 = vcmp.gt.f32.partialorder %v94, 0.5
    %vm793 = vcmp.gt.f32.partialorder %v95, 0.5
    %vm794 = vcmp.gt.f32.partialorder %v96, 0.5
    %vm795 = vcmp.gt.f32.partialorder %v97, 0.5
    %vm796 = vcmp.gt.f32.partialorder %v98, 0.5
    %vm797 = vcmp.gt.f32.partialorder %v99, 0.5
    %v798 = vsel %vm790, %v768, -1e+30
    %v799 = vsel %vm791, %v771, -1e+30
    %v800 = vsel %vm792, %v774, -1e+30
    %v801 = vsel %vm793, %v777, -1e+30
    %v802 = vsel %vm794, %v780, -1e+30
    %v803 = vsel %vm795, %v783, -1e+30
    %v804 = vsel %vm796, %v786, -1e+30
    %v805 = vsel %vm797, %v789, -1e+30
    %v806 = vsel %vm481, %v798, -inf
    %v807 = vsel %vm481, %v799, -inf
    %v808 = vsel %vm481, %v800, -inf
    %v809 = vsel %vm481, %v801, -inf
    %v810 = vsel %vm481, %v802, -inf
    %v811 = vmax.f32 %v806, %v810
    %v812 = vsel %vm481, %v803, -inf
    %v813 = vmax.f32 %v807, %v812
    %v814 = vsel %vm481, %v804, -inf
    %v815 = vmax.f32 %v808, %v814
    %v816 = vsel %vm481, %v805, -inf
    %v817 = vmax.f32 %v809, %v816
    %v818 = vmax.f32 %v811, %v813
    %v819 = vmax.f32 %v815, %v817
    %v820 = vmax.f32 %v818, %v819
    %v821 = vrot.slane %v820, 4
    %v822 = vmax.f32 %v820, %v821
    %v823 = vrot.slane %v822, 2
    %v824 = vmax.f32 %v822, %v823
    %v825 = vrot.slane %v824, 1
    %v826 = vmax.f32 %v824, %v825
    %v827 = vmul.f32 %v92, %v826
    %v828 = vmul.f32 %v93, %v826
    %v829 = vmul.f32 %v94, %v826
    %v830 = vmul.f32 %v95, %v826
    %v831 = vmul.f32 %v96, %v826
    %v832 = vmul.f32 %v97, %v826
    %v833 = vmul.f32 %v98, %v826
    %v834 = vmul.f32 %v99, %v826
    %v835 = vsel %vm481, %v827, 0.0
    %836 = vadd.xlane.f32.xlu0 %v835
    %v837 = vpop.xlane.xlu0 %836
    %v838 = vsel %vm481, %v828, 0.0
    %839 = vadd.xlane.f32.xlu0 %v838
    %v840 = vpop.xlane.xlu0 %839
    %v841 = vsel %vm481, %v829, 0.0
    %842 = vadd.xlane.f32.xlu0 %v841
    %v843 = vpop.xlane.xlu0 %842
    %v844 = vsel %vm481, %v830, 0.0
    %845 = vadd.xlane.f32.xlu0 %v844
    %v846 = vpop.xlane.xlu0 %845
    %v847 = vsel %vm481, %v831, 0.0
    %848 = vadd.xlane.f32.xlu0 %v847
    %v849 = vpop.xlane.xlu0 %848
    %v850 = vsel %vm481, %v832, 0.0
    %851 = vadd.xlane.f32.xlu0 %v850
    %v852 = vpop.xlane.xlu0 %851
    %v853 = vsel %vm481, %v833, 0.0
    %854 = vadd.xlane.f32.xlu0 %v853
    %v855 = vpop.xlane.xlu0 %854
    %v856 = vsel %vm481, %v834, 0.0
    %857 = vadd.xlane.f32.xlu0 %v856
    %v858 = vpop.xlane.xlu0 %857
    %v859 = vsub.f32 %v768, %v837
    %v860 = vsub.f32 %v771, %v840
    %v861 = vsub.f32 %v774, %v843
    %v862 = vsub.f32 %v777, %v846
    %v863 = vsub.f32 %v780, %v849
    %v864 = vsub.f32 %v783, %v852
    %v865 = vsub.f32 %v786, %v855
    %v866 = vsub.f32 %v789, %v858
    %v867 = vmul.f32 %v859, 1.442695
    %v868 = vpow.pop %v867
    %v869 = vmul.f32 %v860, 1.442695
    %v870 = vpow.pop %v869
    %v871 = vmul.f32 %v861, 1.442695
    %v872 = vpow.pop %v871
    %v873 = vmul.f32 %v862, 1.442695
    %v874 = vpow.pop %v873
    %v875 = vmul.f32 %v863, 1.442695
    %v876 = vpow.pop %v875
    %v877 = vmul.f32 %v864, 1.442695
    %v878 = vpow.pop %v877
    %v879 = vmul.f32 %v865, 1.442695
    %v880 = vpow.pop %v879
    %v881 = vmul.f32 %v866, 1.442695
    %v882 = vpow.pop %v881
    %v883 = vmul.f32 %v868, %v92
    %v884 = vmul.f32 %v870, %v93
    %v885 = vmul.f32 %v872, %v94
    %v886 = vmul.f32 %v874, %v95
    %v887 = vmul.f32 %v876, %v96
    %v888 = vmul.f32 %v878, %v97
    %v889 = vmul.f32 %v880, %v98
    %v890 = vmul.f32 %v882, %v99
    %v891 = vsel %vm481, %v883, 0.0
    %v892 = vsel %vm481, %v884, 0.0
    %v893 = vadd.f32 %v891, %v892
    %v894 = vsel %vm481, %v885, 0.0
    %v895 = vadd.f32 %v893, %v894
    %v896 = vsel %vm481, %v886, 0.0
    %v897 = vadd.f32 %v895, %v896
    %v898 = vsel %vm481, %v887, 0.0
    %v899 = vadd.f32 %v897, %v898
    %v900 = vsel %vm481, %v888, 0.0
    %v901 = vadd.f32 %v899, %v900
    %v902 = vsel %vm481, %v889, 0.0
    %v903 = vadd.f32 %v901, %v902
    %v904 = vsel %vm481, %v890, 0.0
    %v905 = vadd.f32 %v903, %v904
    %v906 = vrot.slane %v905, 4
    %v907 = vadd.f32 %v905, %v906
    %v908 = vrot.slane %v907, 2
    %v909 = vadd.f32 %v907, %v908
    %v910 = vrot.slane %v909, 1
    %v911 = vadd.f32 %v909, %v910
    %v912 = vmul.f32 %v92, %v911
    %v913 = vmul.f32 %v93, %v911
    %v914 = vmul.f32 %v94, %v911
    %v915 = vmul.f32 %v95, %v911
    %v916 = vmul.f32 %v96, %v911
    %v917 = vmul.f32 %v97, %v911
    %v918 = vmul.f32 %v98, %v911
    %v919 = vmul.f32 %v99, %v911
    %v920 = vsel %vm481, %v912, 0.0
    %921 = vadd.xlane.f32.xlu0 %v920
    %v922 = vpop.xlane.xlu0 %921
    %v923 = vsel %vm481, %v913, 0.0
    %924 = vadd.xlane.f32.xlu0 %v923
    %v925 = vpop.xlane.xlu0 %924
    %v926 = vsel %vm481, %v914, 0.0
    %927 = vadd.xlane.f32.xlu0 %v926
    %v928 = vpop.xlane.xlu0 %927
    %v929 = vsel %vm481, %v915, 0.0
    %930 = vadd.xlane.f32.xlu0 %v929
    %v931 = vpop.xlane.xlu0 %930
    %v932 = vsel %vm481, %v916, 0.0
    %933 = vadd.xlane.f32.xlu0 %v932
    %v934 = vpop.xlane.xlu0 %933
    %v935 = vsel %vm481, %v917, 0.0
    %936 = vadd.xlane.f32.xlu0 %v935
    %v937 = vpop.xlane.xlu0 %936
    %v938 = vsel %vm481, %v918, 0.0
    %939 = vadd.xlane.f32.xlu0 %v938
    %v940 = vpop.xlane.xlu0 %939
    %v941 = vsel %vm481, %v919, 0.0
    %942 = vadd.xlane.f32.xlu0 %v941
    %v943 = vpop.xlane.xlu0 %942
    %v944 = vrcp.pop %v922
    %v945 = vrcp.pop %v925
    %v946 = vrcp.pop %v928
    %v947 = vrcp.pop %v931
    %v948 = vrcp.pop %v934
    %v949 = vrcp.pop %v937
    %v950 = vrcp.pop %v940
    %v951 = vrcp.pop %v943
    %v952 = vmul.f32 %v868, %v944
    %v953 = vmul.f32 %v870, %v945
    %v954 = vmul.f32 %v872, %v946
    %v955 = vmul.f32 %v874, %v947
    %v956 = vmul.f32 %v876, %v948
    %v957 = vmul.f32 %v878, %v949
    %v958 = vmul.f32 %v880, %v950
    %v959 = vmul.f32 %v882, %v951
    %v960 = vpack.c.bf16 %v953, %v952
    %v961 = vpack.c.bf16 %v955, %v954
    %v962 = vpack.c.bf16 %v957, %v956
    %v963 = vpack.c.bf16 %v959, %v958
    %v969 = vunpack.c.l.s4 839922192
    %v970 = vunpack.c.0.s8 %v969
    %v971 = vlaneseq
    %v972 = vshrl.u32 %v971, 7
    %v973 = vsub.s32 %v970, %v972
    %v974 = vrot.slane %v960, %v973
    %v976 = vunpack.c.l.s4 1985246804
    %v977 = vunpack.c.0.s8 %v976
    %v978 = vlaneseq
    %v979 = vshrl.u32 %v978, 7
    %v980 = vsub.s32 %v977, %v979
    %v981 = vrot.slane %v960, %v980
    %v983 = vunpack.c.l.s4 839922192
    %v984 = vunpack.c.0.s8 %v983
    %v985 = vlaneseq
    %v986 = vshrl.u32 %v985, 7
    %v987 = vsub.s32 %v984, %v986
    %v988 = vrot.slane %v961, %v987
    %v990 = vunpack.c.l.s4 1985246804
    %v991 = vunpack.c.0.s8 %v990
    %v992 = vlaneseq
    %v993 = vshrl.u32 %v992, 7
    %v994 = vsub.s32 %v991, %v993
    %v995 = vrot.slane %v961, %v994
    %v997 = vunpack.c.l.s4 839922192
    %v998 = vunpack.c.0.s8 %v997
    %v999 = vlaneseq
    %v1000 = vshrl.u32 %v999, 7
    %v1001 = vsub.s32 %v998, %v1000
    %v1002 = vrot.slane %v962, %v1001
    %v1004 = vunpack.c.l.s4 1985246804
    %v1005 = vunpack.c.0.s8 %v1004
    %v1006 = vlaneseq
    %v1007 = vshrl.u32 %v1006, 7
    %v1008 = vsub.s32 %v1005, %v1007
    %v1009 = vrot.slane %v962, %v1008
    %v1011 = vunpack.c.l.s4 839922192
    %v1012 = vunpack.c.0.s8 %v1011
    %v1013 = vlaneseq
    %v1014 = vshrl.u32 %v1013, 7
    %v1015 = vsub.s32 %v1012, %v1014
    %v1016 = vrot.slane %v963, %v1015
    %v1018 = vunpack.c.l.s4 1985246804
    %v1019 = vunpack.c.0.s8 %v1018
    %v1020 = vlaneseq
    %v1021 = vshrl.u32 %v1020, 7
    %v1022 = vsub.s32 %v1019, %v1021
    %v1023 = vrot.slane %v963, %v1022
    %v1032 = vmul.bf16 %v349, %v974
    %v1033 = vmul.bf16 %v350, %v981
    %v1034 = vmul.bf16 %v351, %v988
    %v1035 = vmul.bf16 %v352, %v995
    %v1036 = vmul.bf16 %v353, %v1002
    %v1037 = vmul.bf16 %v354, %v1009
    %v1038 = vmul.bf16 %v355, %v1016
    %v1039 = vmul.bf16 %v356, %v1023
    %v1040 = vld [vmem:[%s10] sm:$0xf]
    %v1041 = vld [vmem:[%s10 + $0x4] sm:$0xf]
    %v1042 = vld [vmem:[%s10 + $0x8] sm:$0xf]
    %v1043 = vld [vmem:[%s10 + $0xc] sm:$0xf]
    %v1044 = vld [vmem:[%s11] sm:$0x1]
    %v1046 = vlaneseq
    %v1047 = vshrl.u32 %v1046, 7
    %v1048 = vsub.s32 0, %v1047
    %v1049 = vrot.slane %v1044, %v1048
    %v1059 = vunpack.c.l.b16 %v1032
    %v1060 = vunpack.c.l.b16 %v1033
    %v1061 = vunpack.c.l.b16 %v1034
    %v1062 = vunpack.c.l.b16 %v1035
    %v1063 = vunpack.c.l.b16 %v1036
    %v1064 = vunpack.c.l.b16 %v1037
    %v1065 = vunpack.c.l.b16 %v1038
    %v1066 = vunpack.c.l.b16 %v1039
    %v1067 = vpack.c.b16 %v1060, %v1059
    %v1068 = vpack.c.b16 %v1062, %v1061
    %v1069 = vpack.c.b16 %v1064, %v1063
    %v1070 = vpack.c.b16 %v1066, %v1065
    %v1075 = vunpack.c.l.b16 %v1040
    %v1076 = vunpack.c.l.b16 %v1041
    %v1077 = vunpack.c.l.b16 %v1042
    %v1078 = vunpack.c.l.b16 %v1043
    %v1079 = vpack.c.b16 %v1076, %v1075
    %v1080 = vpack.c.b16 %v1078, %v1077
    %v1084 = vsel %vm377, %v1067, 0
    %v1087 = vsel %vm377, %v1068, 0
    %v1090 = vsel %vm377, %v1069, 0
    %v1093 = vsel %vm377, %v1070, 0
    %1095 = vmatprep.subr.bf16.mxu0 0
    %1096 = vmatpush1.bf16.msra.mxu0 0
    %1097 = vmatprep.subr.bf16.mxu0 0
    %1098 = vmatpush1.bf16.msra.mxu0 0
    %1099 = vmatprep.subr.bf16.mxu0 0
    %1100 = vmatpush1.bf16.msra.mxu0 0
    %1101 = vmatprep.subr.bf16.mxu0 0
    %1102 = vmatpush1.bf16.msra.mxu0 0
    %1103 = vmatprep.subr.bf16.mxu0 0
    %1104 = vmatpush1.bf16.msra.mxu0 0
    %1105 = vmatprep.subr.bf16.mxu0 0
    %1106 = vmatpush1.bf16.msra.mxu0 0
    %1107 = vmatprep.subr.bf16.mxu0 0
    %1108 = vmatpush1.bf16.msra.mxu0 %v1080
    %1109 = vmatprep.subr.bf16.mxu0 0
    %1110 = vmatpush1.bf16.msra.mxu0 %v1079
    %1111 = vmatprep.subr.bf16.mxu0 0
    %1112 = vmatpush2.bf16.msra.mxu0 0
    %1113 = vmatprep.subr.bf16.mxu0 0
    %1114 = vmatpush2.bf16.msra.mxu0 0
    %1115 = vmatprep.subr.bf16.mxu0 0
    %1116 = vmatpush2.bf16.msra.mxu0 0
    %1117 = vmatprep.subr.bf16.mxu0 0
    %1118 = vmatpush2.bf16.msra.mxu0 0
    %1119 = vmatprep.subr.bf16.mxu0 0
    %1120 = vmatpush2.bf16.msra.mxu0 0
    %1121 = vmatprep.subr.bf16.mxu0 0
    %1122 = vmatpush2.bf16.msra.mxu0 0
    %1123 = vmatprep.subr.bf16.mxu0 0
    %1124 = vmatpush2.bf16.msra.mxu0 0
    %1125 = vmatprep.subr.bf16.mxu0 0
    %1126 = vmatpush2.bf16.msra.mxu0 0
    %1127 = vmatprep.mubr.bf16.mxu0 0
    %1128 = vmatmul.mubr.bf16.gmra.mxu0 %v1084
    %v1129 = vpop.f32.mrf.mxu0
    %v1130 = vadd.f32 %v1049, %v1129
    %v1131 = vpop.f32.mrf.mxu0
    %v1132 = vpop.f32.mrf.mxu0
    %v1133 = vadd.f32 %v1049, %v1132
    %v1134 = vpop.f32.mrf.mxu0
    %1135 = vmatprep.mubr.bf16.mxu0 0
    %1136 = vmatmul.mubr.bf16.gmra.mxu0 %v1087
    %v1137 = vpop.f32.mrf.mxu0
    %v1138 = vadd.f32 %v1049, %v1137
    %v1139 = vpop.f32.mrf.mxu0
    %v1140 = vpop.f32.mrf.mxu0
    %v1141 = vadd.f32 %v1049, %v1140
    %v1142 = vpop.f32.mrf.mxu0
    %1143 = vmatprep.mubr.bf16.mxu0 0
    %1144 = vmatmul.mubr.bf16.gmra.mxu0 %v1090
    %v1145 = vpop.f32.mrf.mxu0
    %v1146 = vadd.f32 %v1049, %v1145
    %v1147 = vpop.f32.mrf.mxu0
    %v1148 = vpop.f32.mrf.mxu0
    %v1149 = vadd.f32 %v1049, %v1148
    %v1150 = vpop.f32.mrf.mxu0
    %1151 = vmatprep.mubr.bf16.mxu0 0
    %1152 = vmatmul.mubr.bf16.gmra.mxu0 %v1093
    %v1153 = vpop.f32.mrf.mxu0
    %v1154 = vadd.f32 %v1049, %v1153
    %v1155 = vpop.f32.mrf.mxu0
    %v1156 = vpop.f32.mrf.mxu0
    %v1157 = vadd.f32 %v1049, %v1156
    %v1158 = vpop.f32.mrf.mxu0
    %1159 = vdwg.mxu0
    %v1160 = vpack.c.bf16 %v1133, %v1130
    %v1161 = vpack.c.bf16 %v1141, %v1138
    %v1162 = vpack.c.bf16 %v1149, %v1146
    %v1163 = vpack.c.bf16 %v1157, %v1154
    %v1164 = vtanh.bf16.pop %v1160
    %v1165 = vtanh.bf16.pop %v1161
    %v1166 = vtanh.bf16.pop %v1162
    %v1167 = vtanh.bf16.pop %v1163
    %vm1168 = vcmask 523264
    %v1170 = vsel %vm1168, %v106, 0
    %1172 = vmatprep.subr.bf16.mxu0 0
    %1173 = vmatpush1.bf16.msra.mxu0 0
    %1174 = vmatprep.subr.bf16.mxu0 0
    %1175 = vmatpush1.bf16.msra.mxu0 0
    %1176 = vmatprep.subr.bf16.mxu0 0
    %1177 = vmatpush1.bf16.msra.mxu0 0
    %1178 = vmatprep.subr.bf16.mxu0 0
    %1179 = vmatpush1.bf16.msra.mxu0 0
    %1180 = vmatprep.subr.bf16.mxu0 0
    %1181 = vmatpush1.bf16.msra.mxu0 %v1167
    %1182 = vmatprep.subr.bf16.mxu0 0
    %1183 = vmatpush1.bf16.msra.mxu0 %v1166
    %1184 = vmatprep.subr.bf16.mxu0 0
    %1185 = vmatpush1.bf16.msra.mxu0 %v1165
    %1186 = vmatprep.subr.bf16.mxu0 0
    %1187 = vmatpush1.bf16.msra.mxu0 %v1164
    %1188 = vmatprep.subr.bf16.mxu0 0
    %1189 = vmatpush2.bf16.msra.mxu0 0
    %1190 = vmatprep.subr.bf16.mxu0 0
    %1191 = vmatpush2.bf16.msra.mxu0 0
    %1192 = vmatprep.subr.bf16.mxu0 0
    %1193 = vmatpush2.bf16.msra.mxu0 0
    %1194 = vmatprep.subr.bf16.mxu0 0
    %1195 = vmatpush2.bf16.msra.mxu0 0
    %1196 = vmatprep.subr.bf16.mxu0 0
    %1197 = vmatpush2.bf16.msra.mxu0 0
    %1198 = vmatprep.subr.bf16.mxu0 0
    %1199 = vmatpush2.bf16.msra.mxu0 0
    %1200 = vmatprep.subr.bf16.mxu0 0
    %1201 = vmatpush2.bf16.msra.mxu0 0
    %1202 = vmatprep.subr.bf16.mxu0 0
    %1203 = vmatpush2.bf16.msra.mxu0 0
    %1204 = vmatprep.mubr.bf16.mxu0 0
    %1205 = vmatmul.mubr.bf16.gmra.mxu0 %v1170
    %v1206 = vpop.f32.mrf.mxu0
    %v1207 = vadd.f32 0.0, %v1206
    %v1208 = vpop.f32.mrf.mxu0
    %v1209 = vpop.f32.mrf.mxu0
    %v1210 = vpop.f32.mrf.mxu0
    %1211 = vdwg.mxu0
    %v1212 = vpack.c.bf16 %v1207, %v1207
    %v1213 = vld [vmem:[%s12] sm:$0xf]
    %v1214 = vld [vmem:[%s12 + $0x4] sm:$0xf]
    %v1215 = vld [vmem:[%s12 + $0x8] sm:$0xf]
    %v1216 = vld [vmem:[%s12 + $0xc] sm:$0xf]
    %v1217 = vld [vmem:[%s3] sm:$0xf]
    %v1218 = vld [vmem:[%s13] sm:$0xf]
    %v1219 = vld [vmem:[%s13 + $0x4] sm:$0xf]
    %v1220 = vld [vmem:[%s13 + $0x8] sm:$0xf]
    %v1221 = vld [vmem:[%s13 + $0xc] sm:$0xf]
    %v1226 = vunpack.c.l.b16 %v1218
    %v1227 = vunpack.c.l.b16 %v1219
    %v1228 = vunpack.c.l.b16 %v1220
    %v1229 = vunpack.c.l.b16 %v1221
    %v1230 = vpack.c.b16 %v1227, %v1226
    %v1231 = vpack.c.b16 %v1229, %v1228
    %v1235 = vsel %vm377, %v1217, 0
    %1237 = vmatprep.subr.bf16.mxu0 0
    %1238 = vmatpush1.bf16.msra.mxu0 0
    %1239 = vmatprep.subr.bf16.mxu0 0
    %1240 = vmatpush1.bf16.msra.mxu0 0
    %1241 = vmatprep.subr.bf16.mxu0 0
    %1242 = vmatpush1.bf16.msra.mxu0 0
    %1243 = vmatprep.subr.bf16.mxu0 0
    %1244 = vmatpush1.bf16.msra.mxu0 0
    %1245 = vmatprep.subr.bf16.mxu0 0
    %1246 = vmatpush1.bf16.msra.mxu0 0
    %1247 = vmatprep.subr.bf16.mxu0 0
    %1248 = vmatpush1.bf16.msra.mxu0 0
    %1249 = vmatprep.subr.bf16.mxu0 0
    %1250 = vmatpush1.bf16.msra.mxu0 %v1231
    %1251 = vmatprep.subr.bf16.mxu0 0
    %1252 = vmatpush1.bf16.msra.mxu0 %v1230
    %1253 = vmatprep.subr.bf16.mxu0 0
    %1254 = vmatpush2.bf16.msra.mxu0 0
    %1255 = vmatprep.subr.bf16.mxu0 0
    %1256 = vmatpush2.bf16.msra.mxu0 0
    %1257 = vmatprep.subr.bf16.mxu0 0
    %1258 = vmatpush2.bf16.msra.mxu0 0
    %1259 = vmatprep.subr.bf16.mxu0 0
    %1260 = vmatpush2.bf16.msra.mxu0 0
    %1261 = vmatprep.subr.bf16.mxu0 0
    %1262 = vmatpush2.bf16.msra.mxu0 0
    %1263 = vmatprep.subr.bf16.mxu0 0
    %1264 = vmatpush2.bf16.msra.mxu0 0
    %1265 = vmatprep.subr.bf16.mxu0 0
    %1266 = vmatpush2.bf16.msra.mxu0 0
    %1267 = vmatprep.subr.bf16.mxu0 0
    %1268 = vmatpush2.bf16.msra.mxu0 0
    %1269 = vmatprep.mubr.bf16.mxu0 0
    %1270 = vmatmul.mubr.bf16.gmra.mxu0 %v1235
    %v1271 = vpop.f32.mrf.mxu0
    %v1272 = vadd.f32 0.0, %v1271
    %v1273 = vpop.f32.mrf.mxu0
    %v1274 = vpop.f32.mrf.mxu0
    %v1275 = vpop.f32.mrf.mxu0
    %1276 = vdwg.mxu0
    %v1281 = vunpack.c.l.b16 %v1213
    %v1282 = vunpack.c.l.b16 %v1214
    %v1283 = vunpack.c.l.b16 %v1215
    %v1284 = vunpack.c.l.b16 %v1216
    %v1285 = vpack.c.b16 %v1282, %v1281
    %v1286 = vpack.c.b16 %v1284, %v1283
    %v1290 = vsel %vm377, %v1212, 0
    %1292 = vmatprep.subr.bf16.mxu0 0
    %1293 = vmatpush1.bf16.msra.mxu0 0
    %1294 = vmatprep.subr.bf16.mxu0 0
    %1295 = vmatpush1.bf16.msra.mxu0 0
    %1296 = vmatprep.subr.bf16.mxu0 0
    %1297 = vmatpush1.bf16.msra.mxu0 0
    %1298 = vmatprep.subr.bf16.mxu0 0
    %1299 = vmatpush1.bf16.msra.mxu0 0
    %1300 = vmatprep.subr.bf16.mxu0 0
    %1301 = vmatpush1.bf16.msra.mxu0 0
    %1302 = vmatprep.subr.bf16.mxu0 0
    %1303 = vmatpush1.bf16.msra.mxu0 0
    %1304 = vmatprep.subr.bf16.mxu0 0
    %1305 = vmatpush1.bf16.msra.mxu0 %v1286
    %1306 = vmatprep.subr.bf16.mxu0 0
    %1307 = vmatpush1.bf16.msra.mxu0 %v1285
    %1308 = vmatprep.subr.bf16.mxu0 0
    %1309 = vmatpush2.bf16.msra.mxu0 0
    %1310 = vmatprep.subr.bf16.mxu0 0
    %1311 = vmatpush2.bf16.msra.mxu0 0
    %1312 = vmatprep.subr.bf16.mxu0 0
    %1313 = vmatpush2.bf16.msra.mxu0 0
    %1314 = vmatprep.subr.bf16.mxu0 0
    %1315 = vmatpush2.bf16.msra.mxu0 0
    %1316 = vmatprep.subr.bf16.mxu0 0
    %1317 = vmatpush2.bf16.msra.mxu0 0
    %1318 = vmatprep.subr.bf16.mxu0 0
    %1319 = vmatpush2.bf16.msra.mxu0 0
    %1320 = vmatprep.subr.bf16.mxu0 0
    %1321 = vmatpush2.bf16.msra.mxu0 0
    %1322 = vmatprep.subr.bf16.mxu0 0
    %1323 = vmatpush2.bf16.msra.mxu0 0
    %1324 = vmatprep.mubr.bf16.mxu0 0
    %1325 = vmatmul.mubr.bf16.gmra.mxu0 %v1290
    %v1326 = vpop.f32.mrf.mxu0
    %v1327 = vadd.f32 %v1272, %v1326
    %v1328 = vpop.f32.mrf.mxu0
    %v1329 = vpop.f32.mrf.mxu0
    %v1330 = vpop.f32.mrf.mxu0
    %1331 = vdwg.mxu0
    %v1332 = vld [vmem:[%s14] sm:$0x1]
    %v1334 = vlaneseq
    %v1335 = vshrl.u32 %v1334, 7
    %v1336 = vsub.s32 0, %v1335
    %v1337 = vrot.slane %v1332, %v1336
    %v1339 = vadd.f32 %v1327, %v1337
    %1340 = vst [vmem:[#allocation3] sm:$0xff] %v1339
    // Predicated region
    $region62: #{tpu_custom_call.1} parent=1 // pred_check
      _
    $region63: #{tpu_custom_call.1} parent=1 // pred_check_branch
      %1342 = sbr.rel (0) target = $region65
    $region64: #{tpu_custom_call.1} parent=1 // pred_region
      %s1344 = ssub.s32 128, 128
      %1345 = vsyncadd [#allocation4], %s1344
      %s1347 = sshll.u32 [#allocation3], 4
      %s1348 = int_to_ptr.vmem [resolvable:$true] %s1347
      %1350 = dma.vmem_to_hbm [thread:$0]  %s1348, 128, %s15, [#allocation4]
    $region65: #{tpu_custom_call.1} parent=1 // pred_fallthru
      _
    // Predicated region
    $region66: #{tpu_custom_call.1} parent=1 // pred_check
      _
    $region67: #{tpu_custom_call.1} parent=1 // pred_check_branch
      %1352 = sbr.rel (0) target = $region69
    $region68: #{tpu_custom_call.1} parent=1 // pred_region
      %1353 = dma.done [#allocation4], 128
    $region69: #{tpu_custom_call.1} parent=1 // pred_fallthru
      _
    %1354 = vsyncpa [#allocation4], 1

</llo_original>
